<compile_context>
chip_gen: v5e
topology: v5e:2x2
jax: 0.10.0
libtpu: 0.0.40
codegen_flags: <defaults>
</compile_context>

<pallas_src>
import functools

import jax
import jax.numpy as jnp
from jax.experimental import pallas as pl
from jax.experimental.pallas import tpu as pltpu

# ----------------------------- synthetic config -----------------------------
IMG = 32                       # stand-in for 384 (small, per instructions)
PATCH = 8
IN_CH = 3
NUM_PATCHES = (IMG // PATCH) ** 2          # 16
DIN = IN_CH * PATCH * PATCH                # 192
DIN_PAD = 256                              # K / lane aligned (192 -> 256)
NUM_FEATURES = 128             # swinv2_model.num_features (lane-dense stand-in)
LSTM_HIDDEN = 128              # HIDDEN_SIZE; keeps every gate slice a lane tile
LSTM_LAYERS = 1                # config.MODEL.LSTM_PARAMS.NUM_LAYERS
NUM_CLASSES = 3
PAD_CLS = 128                  # classifier heads padded to one full lane tile
MULTICLASSIFIER = True         # config.MODEL.E2E and config.MODEL.MULTICLASSIFIER
INFERENCE = False              # config.MODEL.INFERENCE


# ------------------------------ Pallas kernels ------------------------------
def _gates_kernel(x_ref, wg_ref, bg_ref, gate_ref):
    # x_ref:    (TM, P, DIN_PAD) bf16  unfolded (zero-padded) patches of TM frames
    # wg_ref:   (DIN_PAD, 4H)    bf16  combined (embed_w / P) @ W_ih
    # bg_ref:   (1, 4H)          f32   combined embed_b @ W_ih + b_ih + b_hh
    # gate_ref: (TM, 4H)         f32
    #
    # Pool-before-matmul with the 1/P scale folded into wg -> a plain SUM here,
    # then a single wide bf16 MXU dot with f32 accumulation.
    pooled = jnp.sum(x_ref[...].astype(jnp.float32), axis=1)      # (TM, DIN_PAD)
    gate_ref[...] = (
        jnp.dot(pooled.astype(jnp.bfloat16), wg_ref[...],
                preferred_element_type=jnp.float32)
        + bg_ref[...])


def _recurrence_heads_kernel(gx_ref, whh_ref, xlast_ref, wswin_ref, bswin_ref,
                             wlstm_ref, blstm_ref, out_ref, *, seq_len, hidden):
    # gx_ref:    (B, S, 4H)       f32   precomputed x_t @ W_ih + b (batch-major)
    # whh_ref:   (H, 4H)          bf16
    # xlast_ref: (B, P, DIN_PAD)  bf16  last-frame patches (for fused fc_swin)
    # wswin_ref: (DIN_PAD, PAD_CLS) bf16 / bswin_ref: (1, PAD_CLS) f32
    # wlstm_ref: (H, PAD_CLS)       bf16 / blstm_ref: (1, PAD_CLS) f32
    # out_ref:   (2, B, PAD_CLS)  f32   row 0 = swin head, row 1 = lstm head
    whh = whh_ref[...]                               # resident, loaded once
    bsz = gx_ref.shape[0]
    h = jnp.zeros((bsz, hidden), jnp.float32)
    c = jnp.zeros((bsz, hidden), jnp.float32)

    # seq_len is static and there is no tail padding -> no per-step masking.
    # Static unroll keeps every gx slice a static (sub)lane slice.
    for k in range(seq_len):
        gates = gx_ref[:, k, :] + jnp.dot(
            h.astype(jnp.bfloat16), whh, preferred_element_type=jnp.float32)
        # PyTorch nn.LSTM gate ordering: i, f, g, o.  hidden == 128 keeps every
        # slice a full tile-aligned 128-lane block (no relayout).
        i = jax.nn.sigmoid(gates[:, 0 * hidden:1 * hidden])
        f = jax.nn.sigmoid(gates[:, 1 * hidden:2 * hidden])
        g = jnp.tanh(gates[:, 2 * hidden:3 * hidden])
        o = jax.nn.sigmoid(gates[:, 3 * hidden:4 * hidden])
        c = f * c + i * g
        h = o * jnp.tanh(c)

    # Fused classifier heads (lane-dense padded outputs; sliced in the wrapper).
    # fc_swin is applied to the pooled last-frame patches with the patch-embed
    # weight folded in (W_swin = (embed_w / P) @ fc_swin_w).
    pooled_last = jnp.sum(xlast_ref[...].astype(jnp.float32), axis=1)
    out_ref[0] = (jnp.dot(pooled_last.astype(jnp.bfloat16), wswin_ref[...],
                          preferred_element_type=jnp.float32) + bswin_ref[...])
    out_ref[1] = (jnp.dot(h.astype(jnp.bfloat16), wlstm_ref[...],
                          preferred_element_type=jnp.float32) + blstm_ref[...])


# ------------------------------ Pallas wrappers ------------------------------
def _pick_tile(n):
    # Keep >= 2 grid steps when possible (v7x megacore), rows toward 128.
    if n <= 8 or n % 8 != 0:
        return n
    t = max(8, min(128, (n // 2) // 8 * 8))
    while n % t:
        t -= 8
    return t


def compute_gates(patches, w_gate, b_gate):
    # patches: (N, P, DIN_PAD) bf16 -> gate pre-activations (N, 4H) f32
    n, p, dpad = patches.shape
    g4 = w_gate.shape[1]
    tile = _pick_tile(n)
    # TODO(synk): at the real IMG=384 config shrink `tile` (v7x) or raise
    # vmem_limit_bytes (v6e) so the double-buffered patch block fits VMEM.
    return pl.pallas_call(
        _gates_kernel,
        out_shape=jax.ShapeDtypeStruct((n, g4), jnp.float32),
        grid=(n // tile,),
        in_specs=[
            pl.BlockSpec((tile, p, dpad), lambda i: (i, 0, 0)),
            pl.BlockSpec((dpad, g4), lambda i: (0, 0)),
            pl.BlockSpec((1, g4), lambda i: (0, 0)),
        ],
        out_specs=pl.BlockSpec((tile, g4), lambda i: (i, 0)),
        compiler_params=pltpu.CompilerParams(
            dimension_semantics=("parallel",)),   # frame axis: megacore-shardable
    )(patches, w_gate, b_gate)


def recurrence_and_heads(gx, xlast, whh, w_swin, b_swin, w_lstm, b_lstm, *,
                         seq_len):
    # gx: (B, S, 4H) f32 batch-major; single grid step (whole sequence resident)
    bsz, seq, g4 = gx.shape
    hdim = whh.shape[0]
    p, dpad = xlast.shape[1], xlast.shape[2]
    pad_cls = w_lstm.shape[1]
    kernel = functools.partial(_recurrence_heads_kernel,
                               seq_len=seq_len, hidden=hdim)
    return pl.pallas_call(
        kernel,
        out_shape=jax.ShapeDtypeStruct((2, bsz, pad_cls), jnp.float32),
        grid=(1,),
        in_specs=[
            pl.BlockSpec((bsz, seq, g4), lambda t: (0, 0, 0)),
            pl.BlockSpec((hdim, g4), lambda t: (0, 0)),
            pl.BlockSpec((bsz, p, dpad), lambda t: (0, 0, 0)),
            pl.BlockSpec((dpad, pad_cls), lambda t: (0, 0)),
            pl.BlockSpec((1, pad_cls), lambda t: (0, 0)),
            pl.BlockSpec((hdim, pad_cls), lambda t: (0, 0)),
            pl.BlockSpec((1, pad_cls), lambda t: (0, 0)),
        ],
        out_specs=pl.BlockSpec((2, bsz, pad_cls), lambda t: (0, 0, 0)),
        compiler_params=pltpu.CompilerParams(
            dimension_semantics=("arbitrary",)),  # inherently sequential
    )(gx, whh, xlast, w_swin, b_swin, w_lstm, b_lstm)


# ------------------------------- parameters ---------------------------------
def _uniform(key, shape, scale):
    return jax.random.uniform(key, shape, jnp.float32, -scale, scale)


def init_params(key):
    ks = jax.random.split(key, 12)
    params = {}
    # synthetic backbone patch embed (conv k=p stride=p as matmul)
    params["embed_w"] = _uniform(ks[0], (DIN, NUM_FEATURES), DIN ** -0.5)
    params["embed_b"] = _uniform(ks[1], (1, NUM_FEATURES), DIN ** -0.5)
    # LSTM layers (PyTorch param shapes transposed for x @ W convention)
    kstd = LSTM_HIDDEN ** -0.5
    layers = []
    for layer in range(LSTM_LAYERS):
        din = NUM_FEATURES if layer == 0 else LSTM_HIDDEN
        kk = jax.random.split(ks[2 + layer], 4)
        w_ih_t = _uniform(kk[0], (din, 4 * LSTM_HIDDEN), kstd)
        w_hh_t = _uniform(kk[1], (LSTM_HIDDEN, 4 * LSTM_HIDDEN), kstd)
        b_ih = _uniform(kk[2], (1, 4 * LSTM_HIDDEN), kstd)
        b_hh = _uniform(kk[3], (1, 4 * LSTM_HIDDEN), kstd)
        layers.append((w_ih_t, w_hh_t, b_ih + b_hh))
    params["lstm"] = layers
    params["fc_lstm_w"] = _uniform(ks[8], (LSTM_HIDDEN, NUM_CLASSES), LSTM_HIDDEN ** -0.5)
    params["fc_lstm_b"] = _uniform(ks[9], (1, NUM_CLASSES), LSTM_HIDDEN ** -0.5)
    params["fc_swin_w"] = _uniform(ks[10], (NUM_FEATURES, NUM_CLASSES), NUM_FEATURES ** -0.5)
    params["fc_swin_b"] = _uniform(ks[11], (1, NUM_CLASSES), NUM_FEATURES ** -0.5)
    return params


def fold_params(params):
    """One-time offline fold / pad / cast of all kernel weights (outside jit)."""
    assert LSTM_LAYERS == 1
    w_ih_t, w_hh_t, lstm_b = params["lstm"][0]
    embed_w_scaled = params["embed_w"] / float(NUM_PATCHES)   # fold mean's 1/P
    # gates path:  pooled_sum @ (embed_w/P @ W_ih) + (embed_b @ W_ih + b)
    w_gate = embed_w_scaled @ w_ih_t                          # (192, 4H)
    b_gate = params["embed_b"] @ w_ih_t + lstm_b              # (1, 4H)
    # swin head:   pooled_sum_last @ (embed_w/P @ fc_swin_w) + (embed_b @ fc_swin_w + b)
    w_swin = embed_w_scaled @ params["fc_swin_w"]             # (192, 3)
    b_swin = params["embed_b"] @ params["fc_swin_w"] + params["fc_swin_b"]
    # pad K rows 192 -> 256 (matches zero-padded patch lanes)
    pad_k = DIN_PAD - DIN
    w_gate = jnp.pad(w_gate, ((0, pad_k), (0, 0)))
    w_swin = jnp.pad(w_swin, ((0, pad_k), (0, 0)))
    # pad classifier columns 3 -> 128 (full lane tile, unmasked stores)
    pad_c = PAD_CLS - NUM_CLASSES
    w_swin = jnp.pad(w_swin, ((0, 0), (0, pad_c)))
    b_swin = jnp.pad(b_swin, ((0, 0), (0, pad_c)))
    w_lstm = jnp.pad(params["fc_lstm_w"], ((0, 0), (0, pad_c)))
    b_lstm = jnp.pad(params["fc_lstm_b"], ((0, 0), (0, pad_c)))
    return {
        "w_gate": w_gate.astype(jnp.bfloat16),
        "b_gate": b_gate,                                 # f32
        "w_hh": w_hh_t.astype(jnp.bfloat16),
        "w_swin": w_swin.astype(jnp.bfloat16),
        "b_swin": b_swin,                                 # f32
        "w_lstm": w_lstm.astype(jnp.bfloat16),
        "b_lstm": b_lstm,                                 # f32
    }


# --------------------------------- forward ----------------------------------
def _extract_patches(frames):
    # frames: (N, 3, IMG, IMG) NCHW -> (N, num_patches, 3*p*p)
    n = frames.shape[0]
    gh = gw = IMG // PATCH
    x = frames.reshape(n, IN_CH, gh, PATCH, gw, PATCH)
    x = jnp.transpose(x, (0, 2, 4, 1, 3, 5))          # (N, gh, gw, C, p, p)
    return x.reshape(n, gh * gw, DIN)


@jax.jit
def swincvs_forward(fparams, x):
    # x: (B, S, 3, IMG, IMG)
    bsz, seq = x.shape[0], x.shape[1]
    frames = x.reshape(-1, IN_CH, IMG, IMG)           # x.view(-1, 3, H, W)
    patches = _extract_patches(frames)                # (N, P, 192)
    # Zero-pad K to 256 and cast the dominant slab to bf16 (half the DMA bytes).
    patches = jnp.pad(patches, ((0, 0), (0, 0), (0, DIN_PAD - DIN)))
    patches = patches.astype(jnp.bfloat16)

    # Kernel 1: fused synthetic-swin embed + hoisted LSTM input projection
    # (single wide MXU dot per frame tile; no feats writeback).
    gates = compute_gates(patches, fparams["w_gate"], fparams["b_gate"])

    # Batch-major gate pre-activations: free reshape, no time-major transpose.
    gx = gates.reshape(bsz, seq, 4 * LSTM_HIDDEN)

    # Last-frame patches feed the fused fc_swin head (matches `[:, -1, :]`).
    xlast = patches.reshape(bsz, seq, NUM_PATCHES, DIN_PAD)[:, -1]

    # Kernel 2: whole LSTM recurrence + both classifier heads, grid=(1,).
    heads = recurrence_and_heads(
        gx, xlast, fparams["w_hh"], fparams["w_swin"], fparams["b_swin"],
        fparams["w_lstm"], fparams["b_lstm"], seq_len=seq)   # (2, B, PAD_CLS)

    swin_cls = heads[0, :, :NUM_CLASSES]
    lstm_cls = heads[1, :, :NUM_CLASSES]
    if MULTICLASSIFIER and not INFERENCE:
        return swin_cls, lstm_cls
    return lstm_cls


# ------------------------- pure-JAX reference (check) ------------------------
def _reference_forward(params, x):
    bsz, seq = x.shape[0], x.shape[1]
    frames = x.reshape(-1, IN_CH, IMG, IMG)
    patches = _extract_patches(frames)
    pooled = jnp.mean(patches, axis=1)
    feats = pooled @ params["embed_w"] + params["embed_b"]          # (N, F)
    feat_last = feats.reshape(bsz, seq, NUM_FEATURES)[:, -1, :]
    swin_cls = feat_last @ params["fc_swin_w"] + params["fc_swin_b"]
    w_ih_t, w_hh_t, b = params["lstm"][0]
    h = jnp.zeros((bsz, LSTM_HIDDEN), jnp.float32)
    c = jnp.zeros((bsz, LSTM_HIDDEN), jnp.float32)
    feats_bs = feats.reshape(bsz, seq, NUM_FEATURES)
    hd = LSTM_HIDDEN
    for t in range(seq):
        gates = feats_bs[:, t, :] @ w_ih_t + h @ w_hh_t + b
        i = jax.nn.sigmoid(gates[:, 0 * hd:1 * hd])
        f = jax.nn.sigmoid(gates[:, 1 * hd:2 * hd])
        g = jnp.tanh(gates[:, 2 * hd:3 * hd])
        o = jax.nn.sigmoid(gates[:, 3 * hd:4 * hd])
        c = f * c + i * g
        h = o * jnp.tanh(c)
    lstm_cls = h @ params["fc_lstm_w"] + params["fc_lstm_b"]
    return swin_cls, lstm_cls


# ----------------------------------- main ------------------------------------
if __name__ == "__main__":
    key = jax.random.PRNGKey(0)
    k_param, k_x = jax.random.split(key)

    B, S = 2, 8
    x = jax.random.normal(k_x, (B, S, IN_CH, IMG, IMG), jnp.float32)
    params = init_params(k_param)
    fparams = fold_params(params)       # weight folding / padding / cast: once

    out = swincvs_forward(fparams, x)
    out = jax.block_until_ready(out)

    swin_head, lstm_head = out
    assert swin_head.shape == (B, NUM_CLASSES)
    assert lstm_head.shape == (B, NUM_CLASSES)

    ref_swin, ref_lstm = _reference_forward(params, x)
    assert jnp.allclose(swin_head, ref_swin, atol=5e-2, rtol=5e-2)
    assert jnp.allclose(lstm_head, ref_lstm, atol=5e-2, rtol=5e-2)

    print("KERNEL_OK")
</pallas_src>

<mosaic_0001>
module attributes {stable_mosaic.version = 11 : i64} {
  func.func @_gates_kernel(%arg0: i32, %arg1: memref<8x16x256xbf16, #tpu.memory_space<vmem>>, %arg2: memref<256x512xbf16, #tpu.memory_space<vmem>>, %arg3: memref<1x512xf32, #tpu.memory_space<vmem>>, %arg4: memref<8x512xf32, #tpu.memory_space<vmem>>) attributes {dimension_semantics = [#tpu.dimension_semantics<parallel>], iteration_bounds = array<i64: 2>, scalar_prefetch = 0 : i64, scratch_operands = 0 : i64, tpu.core_type = #tpu.core_type<tc>, window_params = [{transform_indices = @transform_0, window_bounds = array<i64: 8, 16, 256>}, {pipeline_mode = #tpu.pipeline_mode<synchronous>, transform_indices = @transform_1, window_bounds = array<i64: 256, 512>}, {pipeline_mode = #tpu.pipeline_mode<synchronous>, transform_indices = @transform_2, window_bounds = array<i64: 1, 512>}, {transform_indices = @transform_3, window_bounds = array<i64: 8, 512>}]} {
    %c0 = arith.constant 0 : index
    %c0_0 = arith.constant 0 : index
    %c0_1 = arith.constant 0 : index
    %0 = vector.load %arg1[%c0, %c0_0, %c0_1] : memref<8x16x256xbf16, #tpu.memory_space<vmem>>, vector<8x16x256xbf16>
    %1 = arith.extf %0 : vector<8x16x256xbf16> to vector<8x16x256xf32>
    %cst = arith.constant dense<0.000000e+00> : vector<8x256xf32>
    %2 = vector.multi_reduction <add>, %1, %cst [1] : vector<8x16x256xf32> to vector<8x256xf32>
    %3 = arith.truncf %2 : vector<8x256xf32> to vector<8x256xbf16>
    %c0_2 = arith.constant 0 : index
    %c0_3 = arith.constant 0 : index
    %4 = vector.load %arg2[%c0_2, %c0_3] : memref<256x512xbf16, #tpu.memory_space<vmem>>, vector<256x512xbf16>
    %cst_4 = arith.constant dense<0.000000e+00> : vector<8x512xf32>
    %5 = tpu.matmul %3, %4, %cst_4 {dimension_numbers = #tpu.dot_dimension_numbers<[1], [0], [0], [1], [0, 0, 1, 1], [], []>} : vector<8x256xbf16>, vector<256x512xbf16>, vector<8x512xf32> -> vector<8x512xf32>
    %c0_5 = arith.constant 0 : index
    %c0_6 = arith.constant 0 : index
    %6 = vector.load %arg3[%c0_5, %c0_6] : memref<1x512xf32, #tpu.memory_space<vmem>>, vector<1x512xf32>
    %7 = vector.broadcast %6 : vector<1x512xf32> to vector<8x512xf32>
    %8 = arith.addf %5, %7 : vector<8x512xf32>
    %c0_7 = arith.constant 0 : index
    %c0_8 = arith.constant 0 : index
    %9 = vector.load %arg4[%c0_7, %c0_8] : memref<8x512xf32, #tpu.memory_space<vmem>>, vector<8x512xf32>
    tpu.vector_store %arg4[%c0_7, %c0_8], %8 {strides = array<i32>} : memref<8x512xf32, #tpu.memory_space<vmem>>, vector<8x512xf32>,
    return
  }
  func.func @transform_0(%arg0: i32) -> (i32, i32, i32) {
    %c0_i32 = arith.constant 0 : i32
    %c0_i32_0 = arith.constant 0 : i32
    %c0_i32_1 = arith.constant 0 : i32
    return %arg0, %c0_i32, %c0_i32_0 : i32, i32, i32
  }
  func.func @transform_1(%arg0: i32) -> (i32, i32) {
    %c0_i32 = arith.constant 0 : i32
    %c0_i32_0 = arith.constant 0 : i32
    %c0_i32_1 = arith.constant 0 : i32
    return %c0_i32, %c0_i32_0 : i32, i32
  }
  func.func @transform_2(%arg0: i32) -> (i32, i32) {
    %c0_i32 = arith.constant 0 : i32
    %c0_i32_0 = arith.constant 0 : i32
    %c0_i32_1 = arith.constant 0 : i32
    return %c0_i32, %c0_i32_0 : i32, i32
  }
  func.func @transform_3(%arg0: i32) -> (i32, i32) {
    %c0_i32 = arith.constant 0 : i32
    %c0_i32_0 = arith.constant 0 : i32
    return %arg0, %c0_i32 : i32, i32
  }
}

module attributes {stable_mosaic.version = 11 : i64} {
  func.func @_recurrence_heads_kernel(%arg0: i32, %arg1: memref<2x8x512xf32, #tpu.memory_space<vmem>>, %arg2: memref<128x512xbf16, #tpu.memory_space<vmem>>, %arg3: memref<2x16x256xbf16, #tpu.memory_space<vmem>>, %arg4: memref<256x128xbf16, #tpu.memory_space<vmem>>, %arg5: memref<1x128xf32, #tpu.memory_space<vmem>>, %arg6: memref<128x128xbf16, #tpu.memory_space<vmem>>, %arg7: memref<1x128xf32, #tpu.memory_space<vmem>>, %arg8: memref<2x2x128xf32, #tpu.memory_space<vmem>>) attributes {dimension_semantics = [#tpu.dimension_semantics<arbitrary>], iteration_bounds = array<i64: 1>, scalar_prefetch = 0 : i64, scratch_operands = 0 : i64, tpu.core_type = #tpu.core_type<tc>, window_params = [{pipeline_mode = #tpu.pipeline_mode<synchronous>, transform_indices = @transform_0, window_bounds = array<i64: 2, 8, 512>}, {pipeline_mode = #tpu.pipeline_mode<synchronous>, transform_indices = @transform_1, window_bounds = array<i64: 128, 512>}, {pipeline_mode = #tpu.pipeline_mode<synchronous>, transform_indices = @transform_2, window_bounds = array<i64: 2, 16, 256>}, {pipeline_mode = #tpu.pipeline_mode<synchronous>, transform_indices = @transform_3, window_bounds = array<i64: 256, 128>}, {pipeline_mode = #tpu.pipeline_mode<synchronous>, transform_indices = @transform_4, window_bounds = array<i64: 1, 128>}, {pipeline_mode = #tpu.pipeline_mode<synchronous>, transform_indices = @transform_5, window_bounds = array<i64: 128, 128>}, {pipeline_mode = #tpu.pipeline_mode<synchronous>, transform_indices = @transform_6, window_bounds = array<i64: 1, 128>}, {pipeline_mode = #tpu.pipeline_mode<synchronous>, transform_indices = @transform_7, window_bounds = array<i64: 2, 2, 128>}]} {
    %c0 = arith.constant 0 : index
    %c0_0 = arith.constant 0 : index
    %0 = vector.load %arg2[%c0, %c0_0] : memref<128x512xbf16, #tpu.memory_space<vmem>>, vector<128x512xbf16>
    %cst = arith.constant 0.000000e+00 : f32
    %1 = vector.broadcast %cst : f32 to vector<2x128xf32>
    %cst_1 = arith.constant 0.000000e+00 : f32
    %2 = vector.broadcast %cst_1 : f32 to vector<2x128xf32>
    %c0_2 = arith.constant 0 : index
    %c0_3 = arith.constant 0 : index
    %c0_4 = arith.constant 0 : index
    %3 = vector.load %arg1[%c0_2, %c0_3, %c0_4] : memref<2x8x512xf32, #tpu.memory_space<vmem>>, vector<2x1x512xf32>
    %4 = vector.shape_cast %3 : vector<2x1x512xf32> to vector<2x512xf32>
    %5 = arith.truncf %1 : vector<2x128xf32> to vector<2x128xbf16>
    %cst_5 = arith.constant dense<0.000000e+00> : vector<2x512xf32>
    %6 = tpu.matmul %5, %0, %cst_5 {dimension_numbers = #tpu.dot_dimension_numbers<[1], [0], [0], [1], [0, 0, 1, 1], [], []>} : vector<2x128xbf16>, vector<128x512xbf16>, vector<2x512xf32> -> vector<2x512xf32>
    %7 = arith.addf %4, %6 : vector<2x512xf32>
    %8 = vector.extract_strided_slice %7 {offsets = [0, 0], sizes = [2, 128], strides = [1, 1]} : vector<2x512xf32> to vector<2x128xf32>
    %9 = arith.negf %8 : vector<2x128xf32>
    %10 = math.exp %9 : vector<2x128xf32>
    %cst_6 = arith.constant 1.000000e+00 : f32
    %11 = vector.broadcast %cst_6 : f32 to vector<2x128xf32>
    %12 = arith.addf %11, %10 : vector<2x128xf32>
    %13 = arith.divf %11, %12 : vector<2x128xf32>
    %14 = vector.extract_strided_slice %7 {offsets = [0, 128], sizes = [2, 128], strides = [1, 1]} : vector<2x512xf32> to vector<2x128xf32>
    %15 = arith.negf %14 : vector<2x128xf32>
    %16 = math.exp %15 : vector<2x128xf32>
    %cst_7 = arith.constant 1.000000e+00 : f32
    %17 = vector.broadcast %cst_7 : f32 to vector<2x128xf32>
    %18 = arith.addf %17, %16 : vector<2x128xf32>
    %19 = arith.divf %17, %18 : vector<2x128xf32>
    %20 = vector.extract_strided_slice %7 {offsets = [0, 256], sizes = [2, 128], strides = [1, 1]} : vector<2x512xf32> to vector<2x128xf32>
    %21 = math.tanh %20 : vector<2x128xf32>
    %22 = vector.extract_strided_slice %7 {offsets = [0, 384], sizes = [2, 128], strides = [1, 1]} : vector<2x512xf32> to vector<2x128xf32>
    %23 = arith.negf %22 : vector<2x128xf32>
    %24 = math.exp %23 : vector<2x128xf32>
    %cst_8 = arith.constant 1.000000e+00 : f32
    %25 = vector.broadcast %cst_8 : f32 to vector<2x128xf32>
    %26 = arith.addf %25, %24 : vector<2x128xf32>
    %27 = arith.divf %25, %26 : vector<2x128xf32>
    %28 = arith.mulf %19, %2 : vector<2x128xf32>
    %29 = arith.mulf %13, %21 : vector<2x128xf32>
    %30 = arith.addf %28, %29 : vector<2x128xf32>
    %31 = math.tanh %30 : vector<2x128xf32>
    %32 = arith.mulf %27, %31 : vector<2x128xf32>
    %c0_9 = arith.constant 0 : index
    %c1 = arith.constant 1 : index
    %c0_10 = arith.constant 0 : index
    %33 = vector.load %arg1[%c0_9, %c1, %c0_10] : memref<2x8x512xf32, #tpu.memory_space<vmem>>, vector<2x1x512xf32>
    %34 = vector.shape_cast %33 : vector<2x1x512xf32> to vector<2x512xf32>
    %35 = arith.truncf %32 : vector<2x128xf32> to vector<2x128xbf16>
    %cst_11 = arith.constant dense<0.000000e+00> : vector<2x512xf32>
    %36 = tpu.matmul %35, %0, %cst_11 {dimension_numbers = #tpu.dot_dimension_numbers<[1], [0], [0], [1], [0, 0, 1, 1], [], []>} : vector<2x128xbf16>, vector<128x512xbf16>, vector<2x512xf32> -> vector<2x512xf32>
    %37 = arith.addf %34, %36 : vector<2x512xf32>
    %38 = vector.extract_strided_slice %37 {offsets = [0, 0], sizes = [2, 128], strides = [1, 1]} : vector<2x512xf32> to vector<2x128xf32>
    %39 = arith.negf %38 : vector<2x128xf32>
    %40 = math.exp %39 : vector<2x128xf32>
    %cst_12 = arith.constant 1.000000e+00 : f32
    %41 = vector.broadcast %cst_12 : f32 to vector<2x128xf32>
    %42 = arith.addf %41, %40 : vector<2x128xf32>
    %43 = arith.divf %41, %42 : vector<2x128xf32>
    %44 = vector.extract_strided_slice %37 {offsets = [0, 128], sizes = [2, 128], strides = [1, 1]} : vector<2x512xf32> to vector<2x128xf32>
    %45 = arith.negf %44 : vector<2x128xf32>
    %46 = math.exp %45 : vector<2x128xf32>
    %cst_13 = arith.constant 1.000000e+00 : f32
    %47 = vector.broadcast %cst_13 : f32 to vector<2x128xf32>
    %48 = arith.addf %47, %46 : vector<2x128xf32>
    %49 = arith.divf %47, %48 : vector<2x128xf32>
    %50 = vector.extract_strided_slice %37 {offsets = [0, 256], sizes = [2, 128], strides = [1, 1]} : vector<2x512xf32> to vector<2x128xf32>
    %51 = math.tanh %50 : vector<2x128xf32>
    %52 = vector.extract_strided_slice %37 {offsets = [0, 384], sizes = [2, 128], strides = [1, 1]} : vector<2x512xf32> to vector<2x128xf32>
    %53 = arith.negf %52 : vector<2x128xf32>
    %54 = math.exp %53 : vector<2x128xf32>
    %cst_14 = arith.constant 1.000000e+00 : f32
    %55 = vector.broadcast %cst_14 : f32 to vector<2x128xf32>
    %56 = arith.addf %55, %54 : vector<2x128xf32>
    %57 = arith.divf %55, %56 : vector<2x128xf32>
    %58 = arith.mulf %49, %30 : vector<2x128xf32>
    %59 = arith.mulf %43, %51 : vector<2x128xf32>
    %60 = arith.addf %58, %59 : vector<2x128xf32>
    %61 = math.tanh %60 : vector<2x128xf32>
    %62 = arith.mulf %57, %61 : vector<2x128xf32>
    %c0_15 = arith.constant 0 : index
    %c2 = arith.constant 2 : index
    %c0_16 = arith.constant 0 : index
    %63 = vector.load %arg1[%c0_15, %c2, %c0_16] : memref<2x8x512xf32, #tpu.memory_space<vmem>>, vector<2x1x512xf32>
    %64 = vector.shape_cast %63 : vector<2x1x512xf32> to vector<2x512xf32>
    %65 = arith.truncf %62 : vector<2x128xf32> to vector<2x128xbf16>
    %cst_17 = arith.constant dense<0.000000e+00> : vector<2x512xf32>
    %66 = tpu.matmul %65, %0, %cst_17 {dimension_numbers = #tpu.dot_dimension_numbers<[1], [0], [0], [1], [0, 0, 1, 1], [], []>} : vector<2x128xbf16>, vector<128x512xbf16>, vector<2x512xf32> -> vector<2x512xf32>
    %67 = arith.addf %64, %66 : vector<2x512xf32>
    %68 = vector.extract_strided_slice %67 {offsets = [0, 0], sizes = [2, 128], strides = [1, 1]} : vector<2x512xf32> to vector<2x128xf32>
    %69 = arith.negf %68 : vector<2x128xf32>
    %70 = math.exp %69 : vector<2x128xf32>
    %cst_18 = arith.constant 1.000000e+00 : f32
    %71 = vector.broadcast %cst_18 : f32 to vector<2x128xf32>
    %72 = arith.addf %71, %70 : vector<2x128xf32>
    %73 = arith.divf %71, %72 : vector<2x128xf32>
    %74 = vector.extract_strided_slice %67 {offsets = [0, 128], sizes = [2, 128], strides = [1, 1]} : vector<2x512xf32> to vector<2x128xf32>
    %75 = arith.negf %74 : vector<2x128xf32>
    %76 = math.exp %75 : vector<2x128xf32>
    %cst_19 = arith.constant 1.000000e+00 : f32
    %77 = vector.broadcast %cst_19 : f32 to vector<2x128xf32>
    %78 = arith.addf %77, %76 : vector<2x128xf32>
    %79 = arith.divf %77, %78 : vector<2x128xf32>
    %80 = vector.extract_strided_slice %67 {offsets = [0, 256], sizes = [2, 128], strides = [1, 1]} : vector<2x512xf32> to vector<2x128xf32>
    %81 = math.tanh %80 : vector<2x128xf32>
    %82 = vector.extract_strided_slice %67 {offsets = [0, 384], sizes = [2, 128], strides = [1, 1]} : vector<2x512xf32> to vector<2x128xf32>
    %83 = arith.negf %82 : vector<2x128xf32>
    %84 = math.exp %83 : vector<2x128xf32>
    %cst_20 = arith.constant 1.000000e+00 : f32
    %85 = vector.broadcast %cst_20 : f32 to vector<2x128xf32>
    %86 = arith.addf %85, %84 : vector<2x128xf32>
    %87 = arith.divf %85, %86 : vector<2x128xf32>
    %88 = arith.mulf %79, %60 : vector<2x128xf32>
    %89 = arith.mulf %73, %81 : vector<2x128xf32>
    %90 = arith.addf %88, %89 : vector<2x128xf32>
    %91 = math.tanh %90 : vector<2x128xf32>
    %92 = arith.mulf %87, %91 : vector<2x128xf32>
    %c0_21 = arith.constant 0 : index
    %c3 = arith.constant 3 : index
    %c0_22 = arith.constant 0 : index
    %93 = vector.load %arg1[%c0_21, %c3, %c0_22] : memref<2x8x512xf32, #tpu.memory_space<vmem>>, vector<2x1x512xf32>
    %94 = vector.shape_cast %93 : vector<2x1x512xf32> to vector<2x512xf32>
    %95 = arith.truncf %92 : vector<2x128xf32> to vector<2x128xbf16>
    %cst_23 = arith.constant dense<0.000000e+00> : vector<2x512xf32>
    %96 = tpu.matmul %95, %0, %cst_23 {dimension_numbers = #tpu.dot_dimension_numbers<[1], [0], [0], [1], [0, 0, 1, 1], [], []>} : vector<2x128xbf16>, vector<128x512xbf16>, vector<2x512xf32> -> vector<2x512xf32>
    %97 = arith.addf %94, %96 : vector<2x512xf32>
    %98 = vector.extract_strided_slice %97 {offsets = [0, 0], sizes = [2, 128], strides = [1, 1]} : vector<2x512xf32> to vector<2x128xf32>
    %99 = arith.negf %98 : vector<2x128xf32>
    %100 = math.exp %99 : vector<2x128xf32>
    %cst_24 = arith.constant 1.000000e+00 : f32
    %101 = vector.broadcast %cst_24 : f32 to vector<2x128xf32>
    %102 = arith.addf %101, %100 : vector<2x128xf32>
    %103 = arith.divf %101, %102 : vector<2x128xf32>
    %104 = vector.extract_strided_slice %97 {offsets = [0, 128], sizes = [2, 128], strides = [1, 1]} : vector<2x512xf32> to vector<2x128xf32>
    %105 = arith.negf %104 : vector<2x128xf32>
    %106 = math.exp %105 : vector<2x128xf32>
    %cst_25 = arith.constant 1.000000e+00 : f32
    %107 = vector.broadcast %cst_25 : f32 to vector<2x128xf32>
    %108 = arith.addf %107, %106 : vector<2x128xf32>
    %109 = arith.divf %107, %108 : vector<2x128xf32>
    %110 = vector.extract_strided_slice %97 {offsets = [0, 256], sizes = [2, 128], strides = [1, 1]} : vector<2x512xf32> to vector<2x128xf32>
    %111 = math.tanh %110 : vector<2x128xf32>
    %112 = vector.extract_strided_slice %97 {offsets = [0, 384], sizes = [2, 128], strides = [1, 1]} : vector<2x512xf32> to vector<2x128xf32>
    %113 = arith.negf %112 : vector<2x128xf32>
    %114 = math.exp %113 : vector<2x128xf32>
    %cst_26 = arith.constant 1.000000e+00 : f32
    %115 = vector.broadcast %cst_26 : f32 to vector<2x128xf32>
    %116 = arith.addf %115, %114 : vector<2x128xf32>
    %117 = arith.divf %115, %116 : vector<2x128xf32>
    %118 = arith.mulf %109, %90 : vector<2x128xf32>
    %119 = arith.mulf %103, %111 : vector<2x128xf32>
    %120 = arith.addf %118, %119 : vector<2x128xf32>
    %121 = math.tanh %120 : vector<2x128xf32>
    %122 = arith.mulf %117, %121 : vector<2x128xf32>
    %c0_27 = arith.constant 0 : index
    %c4 = arith.constant 4 : index
    %c0_28 = arith.constant 0 : index
    %123 = vector.load %arg1[%c0_27, %c4, %c0_28] : memref<2x8x512xf32, #tpu.memory_space<vmem>>, vector<2x1x512xf32>
    %124 = vector.shape_cast %123 : vector<2x1x512xf32> to vector<2x512xf32>
    %125 = arith.truncf %122 : vector<2x128xf32> to vector<2x128xbf16>
    %cst_29 = arith.constant dense<0.000000e+00> : vector<2x512xf32>
    %126 = tpu.matmul %125, %0, %cst_29 {dimension_numbers = #tpu.dot_dimension_numbers<[1], [0], [0], [1], [0, 0, 1, 1], [], []>} : vector<2x128xbf16>, vector<128x512xbf16>, vector<2x512xf32> -> vector<2x512xf32>
    %127 = arith.addf %124, %126 : vector<2x512xf32>
    %128 = vector.extract_strided_slice %127 {offsets = [0, 0], sizes = [2, 128], strides = [1, 1]} : vector<2x512xf32> to vector<2x128xf32>
    %129 = arith.negf %128 : vector<2x128xf32>
    %130 = math.exp %129 : vector<2x128xf32>
    %cst_30 = arith.constant 1.000000e+00 : f32
    %131 = vector.broadcast %cst_30 : f32 to vector<2x128xf32>
    %132 = arith.addf %131, %130 : vector<2x128xf32>
    %133 = arith.divf %131, %132 : vector<2x128xf32>
    %134 = vector.extract_strided_slice %127 {offsets = [0, 128], sizes = [2, 128], strides = [1, 1]} : vector<2x512xf32> to vector<2x128xf32>
    %135 = arith.negf %134 : vector<2x128xf32>
    %136 = math.exp %135 : vector<2x128xf32>
    %cst_31 = arith.constant 1.000000e+00 : f32
    %137 = vector.broadcast %cst_31 : f32 to vector<2x128xf32>
    %138 = arith.addf %137, %136 : vector<2x128xf32>
    %139 = arith.divf %137, %138 : vector<2x128xf32>
    %140 = vector.extract_strided_slice %127 {offsets = [0, 256], sizes = [2, 128], strides = [1, 1]} : vector<2x512xf32> to vector<2x128xf32>
    %141 = math.tanh %140 : vector<2x128xf32>
    %142 = vector.extract_strided_slice %127 {offsets = [0, 384], sizes = [2, 128], strides = [1, 1]} : vector<2x512xf32> to vector<2x128xf32>
    %143 = arith.negf %142 : vector<2x128xf32>
    %144 = math.exp %143 : vector<2x128xf32>
    %cst_32 = arith.constant 1.000000e+00 : f32
    %145 = vector.broadcast %cst_32 : f32 to vector<2x128xf32>
    %146 = arith.addf %145, %144 : vector<2x128xf32>
    %147 = arith.divf %145, %146 : vector<2x128xf32>
    %148 = arith.mulf %139, %120 : vector<2x128xf32>
    %149 = arith.mulf %133, %141 : vector<2x128xf32>
    %150 = arith.addf %148, %149 : vector<2x128xf32>
    %151 = math.tanh %150 : vector<2x128xf32>
    %152 = arith.mulf %147, %151 : vector<2x128xf32>
    %c0_33 = arith.constant 0 : index
    %c5 = arith.constant 5 : index
    %c0_34 = arith.constant 0 : index
    %153 = vector.load %arg1[%c0_33, %c5, %c0_34] : memref<2x8x512xf32, #tpu.memory_space<vmem>>, vector<2x1x512xf32>
    %154 = vector.shape_cast %153 : vector<2x1x512xf32> to vector<2x512xf32>
    %155 = arith.truncf %152 : vector<2x128xf32> to vector<2x128xbf16>
    %cst_35 = arith.constant dense<0.000000e+00> : vector<2x512xf32>
    %156 = tpu.matmul %155, %0, %cst_35 {dimension_numbers = #tpu.dot_dimension_numbers<[1], [0], [0], [1], [0, 0, 1, 1], [], []>} : vector<2x128xbf16>, vector<128x512xbf16>, vector<2x512xf32> -> vector<2x512xf32>
    %157 = arith.addf %154, %156 : vector<2x512xf32>
    %158 = vector.extract_strided_slice %157 {offsets = [0, 0], sizes = [2, 128], strides = [1, 1]} : vector<2x512xf32> to vector<2x128xf32>
    %159 = arith.negf %158 : vector<2x128xf32>
    %160 = math.exp %159 : vector<2x128xf32>
    %cst_36 = arith.constant 1.000000e+00 : f32
    %161 = vector.broadcast %cst_36 : f32 to vector<2x128xf32>
    %162 = arith.addf %161, %160 : vector<2x128xf32>
    %163 = arith.divf %161, %162 : vector<2x128xf32>
    %164 = vector.extract_strided_slice %157 {offsets = [0, 128], sizes = [2, 128], strides = [1, 1]} : vector<2x512xf32> to vector<2x128xf32>
    %165 = arith.negf %164 : vector<2x128xf32>
    %166 = math.exp %165 : vector<2x128xf32>
    %cst_37 = arith.constant 1.000000e+00 : f32
    %167 = vector.broadcast %cst_37 : f32 to vector<2x128xf32>
    %168 = arith.addf %167, %166 : vector<2x128xf32>
    %169 = arith.divf %167, %168 : vector<2x128xf32>
    %170 = vector.extract_strided_slice %157 {offsets = [0, 256], sizes = [2, 128], strides = [1, 1]} : vector<2x512xf32> to vector<2x128xf32>
    %171 = math.tanh %170 : vector<2x128xf32>
    %172 = vector.extract_strided_slice %157 {offsets = [0, 384], sizes = [2, 128], strides = [1, 1]} : vector<2x512xf32> to vector<2x128xf32>
    %173 = arith.negf %172 : vector<2x128xf32>
    %174 = math.exp %173 : vector<2x128xf32>
    %cst_38 = arith.constant 1.000000e+00 : f32
    %175 = vector.broadcast %cst_38 : f32 to vector<2x128xf32>
    %176 = arith.addf %175, %174 : vector<2x128xf32>
    %177 = arith.divf %175, %176 : vector<2x128xf32>
    %178 = arith.mulf %169, %150 : vector<2x128xf32>
    %179 = arith.mulf %163, %171 : vector<2x128xf32>
    %180 = arith.addf %178, %179 : vector<2x128xf32>
    %181 = math.tanh %180 : vector<2x128xf32>
    %182 = arith.mulf %177, %181 : vector<2x128xf32>
    %c0_39 = arith.constant 0 : index
    %c6 = arith.constant 6 : index
    %c0_40 = arith.constant 0 : index
    %183 = vector.load %arg1[%c0_39, %c6, %c0_40] : memref<2x8x512xf32, #tpu.memory_space<vmem>>, vector<2x1x512xf32>
    %184 = vector.shape_cast %183 : vector<2x1x512xf32> to vector<2x512xf32>
    %185 = arith.truncf %182 : vector<2x128xf32> to vector<2x128xbf16>
    %cst_41 = arith.constant dense<0.000000e+00> : vector<2x512xf32>
    %186 = tpu.matmul %185, %0, %cst_41 {dimension_numbers = #tpu.dot_dimension_numbers<[1], [0], [0], [1], [0, 0, 1, 1], [], []>} : vector<2x128xbf16>, vector<128x512xbf16>, vector<2x512xf32> -> vector<2x512xf32>
    %187 = arith.addf %184, %186 : vector<2x512xf32>
    %188 = vector.extract_strided_slice %187 {offsets = [0, 0], sizes = [2, 128], strides = [1, 1]} : vector<2x512xf32> to vector<2x128xf32>
    %189 = arith.negf %188 : vector<2x128xf32>
    %190 = math.exp %189 : vector<2x128xf32>
    %cst_42 = arith.constant 1.000000e+00 : f32
    %191 = vector.broadcast %cst_42 : f32 to vector<2x128xf32>
    %192 = arith.addf %191, %190 : vector<2x128xf32>
    %193 = arith.divf %191, %192 : vector<2x128xf32>
    %194 = vector.extract_strided_slice %187 {offsets = [0, 128], sizes = [2, 128], strides = [1, 1]} : vector<2x512xf32> to vector<2x128xf32>
    %195 = arith.negf %194 : vector<2x128xf32>
    %196 = math.exp %195 : vector<2x128xf32>
    %cst_43 = arith.constant 1.000000e+00 : f32
    %197 = vector.broadcast %cst_43 : f32 to vector<2x128xf32>
    %198 = arith.addf %197, %196 : vector<2x128xf32>
    %199 = arith.divf %197, %198 : vector<2x128xf32>
    %200 = vector.extract_strided_slice %187 {offsets = [0, 256], sizes = [2, 128], strides = [1, 1]} : vector<2x512xf32> to vector<2x128xf32>
    %201 = math.tanh %200 : vector<2x128xf32>
    %202 = vector.extract_strided_slice %187 {offsets = [0, 384], sizes = [2, 128], strides = [1, 1]} : vector<2x512xf32> to vector<2x128xf32>
    %203 = arith.negf %202 : vector<2x128xf32>
    %204 = math.exp %203 : vector<2x128xf32>
    %cst_44 = arith.constant 1.000000e+00 : f32
    %205 = vector.broadcast %cst_44 : f32 to vector<2x128xf32>
    %206 = arith.addf %205, %204 : vector<2x128xf32>
    %207 = arith.divf %205, %206 : vector<2x128xf32>
    %208 = arith.mulf %199, %180 : vector<2x128xf32>
    %209 = arith.mulf %193, %201 : vector<2x128xf32>
    %210 = arith.addf %208, %209 : vector<2x128xf32>
    %211 = math.tanh %210 : vector<2x128xf32>
    %212 = arith.mulf %207, %211 : vector<2x128xf32>
    %c0_45 = arith.constant 0 : index
    %c7 = arith.constant 7 : index
    %c0_46 = arith.constant 0 : index
    %213 = vector.load %arg1[%c0_45, %c7, %c0_46] : memref<2x8x512xf32, #tpu.memory_space<vmem>>, vector<2x1x512xf32>
    %214 = vector.shape_cast %213 : vector<2x1x512xf32> to vector<2x512xf32>
    %215 = arith.truncf %212 : vector<2x128xf32> to vector<2x128xbf16>
    %cst_47 = arith.constant dense<0.000000e+00> : vector<2x512xf32>
    %216 = tpu.matmul %215, %0, %cst_47 {dimension_numbers = #tpu.dot_dimension_numbers<[1], [0], [0], [1], [0, 0, 1, 1], [], []>} : vector<2x128xbf16>, vector<128x512xbf16>, vector<2x512xf32> -> vector<2x512xf32>
    %217 = arith.addf %214, %216 : vector<2x512xf32>
    %218 = vector.extract_strided_slice %217 {offsets = [0, 0], sizes = [2, 128], strides = [1, 1]} : vector<2x512xf32> to vector<2x128xf32>
    %219 = arith.negf %218 : vector<2x128xf32>
    %220 = math.exp %219 : vector<2x128xf32>
    %cst_48 = arith.constant 1.000000e+00 : f32
    %221 = vector.broadcast %cst_48 : f32 to vector<2x128xf32>
    %222 = arith.addf %221, %220 : vector<2x128xf32>
    %223 = arith.divf %221, %222 : vector<2x128xf32>
    %224 = vector.extract_strided_slice %217 {offsets = [0, 128], sizes = [2, 128], strides = [1, 1]} : vector<2x512xf32> to vector<2x128xf32>
    %225 = arith.negf %224 : vector<2x128xf32>
    %226 = math.exp %225 : vector<2x128xf32>
    %cst_49 = arith.constant 1.000000e+00 : f32
    %227 = vector.broadcast %cst_49 : f32 to vector<2x128xf32>
    %228 = arith.addf %227, %226 : vector<2x128xf32>
    %229 = arith.divf %227, %228 : vector<2x128xf32>
    %230 = vector.extract_strided_slice %217 {offsets = [0, 256], sizes = [2, 128], strides = [1, 1]} : vector<2x512xf32> to vector<2x128xf32>
    %231 = math.tanh %230 : vector<2x128xf32>
    %232 = vector.extract_strided_slice %217 {offsets = [0, 384], sizes = [2, 128], strides = [1, 1]} : vector<2x512xf32> to vector<2x128xf32>
    %233 = arith.negf %232 : vector<2x128xf32>
    %234 = math.exp %233 : vector<2x128xf32>
    %cst_50 = arith.constant 1.000000e+00 : f32
    %235 = vector.broadcast %cst_50 : f32 to vector<2x128xf32>
    %236 = arith.addf %235, %234 : vector<2x128xf32>
    %237 = arith.divf %235, %236 : vector<2x128xf32>
    %238 = arith.mulf %229, %210 : vector<2x128xf32>
    %239 = arith.mulf %223, %231 : vector<2x128xf32>
    %240 = arith.addf %238, %239 : vector<2x128xf32>
    %241 = math.tanh %240 : vector<2x128xf32>
    %242 = arith.mulf %237, %241 : vector<2x128xf32>
    %c0_51 = arith.constant 0 : index
    %c0_52 = arith.constant 0 : index
    %c0_53 = arith.constant 0 : index
    %243 = vector.load %arg3[%c0_51, %c0_52, %c0_53] : memref<2x16x256xbf16, #tpu.memory_space<vmem>>, vector<2x16x256xbf16>
    %244 = arith.extf %243 : vector<2x16x256xbf16> to vector<2x16x256xf32>
    %cst_54 = arith.constant dense<0.000000e+00> : vector<2x256xf32>
    %245 = vector.multi_reduction <add>, %244, %cst_54 [1] : vector<2x16x256xf32> to vector<2x256xf32>
    %246 = arith.truncf %245 : vector<2x256xf32> to vector<2x256xbf16>
    %c0_55 = arith.constant 0 : index
    %c0_56 = arith.constant 0 : index
    %247 = vector.load %arg4[%c0_55, %c0_56] : memref<256x128xbf16, #tpu.memory_space<vmem>>, vector<256x128xbf16>
    %cst_57 = arith.constant dense<0.000000e+00> : vector<2x128xf32>
    %248 = tpu.matmul %246, %247, %cst_57 {dimension_numbers = #tpu.dot_dimension_numbers<[1], [0], [0], [1], [0, 0, 1, 1], [], []>} : vector<2x256xbf16>, vector<256x128xbf16>, vector<2x128xf32> -> vector<2x128xf32>
    %c0_58 = arith.constant 0 : index
    %c0_59 = arith.constant 0 : index
    %249 = vector.load %arg5[%c0_58, %c0_59] : memref<1x128xf32, #tpu.memory_space<vmem>>, vector<1x128xf32>
    %250 = vector.broadcast %249 : vector<1x128xf32> to vector<2x128xf32>
    %251 = arith.addf %248, %250 : vector<2x128xf32>
    %c0_60 = arith.constant 0 : index
    %c0_61 = arith.constant 0 : index
    %c0_62 = arith.constant 0 : index
    %252 = vector.load %arg8[%c0_60, %c0_61, %c0_62] : memref<2x2x128xf32, #tpu.memory_space<vmem>>, vector<1x2x128xf32>
    %253 = vector.shape_cast %252 : vector<1x2x128xf32> to vector<2x128xf32>
    %254 = vector.shape_cast %251 : vector<2x128xf32> to vector<1x2x128xf32>
    tpu.vector_store %arg8[%c0_60, %c0_61, %c0_62], %254 {strides = array<i32>} : memref<2x2x128xf32, #tpu.memory_space<vmem>>, vector<1x2x128xf32>,
    %255 = arith.truncf %242 : vector<2x128xf32> to vector<2x128xbf16>
    %c0_63 = arith.constant 0 : index
    %c0_64 = arith.constant 0 : index
    %256 = vector.load %arg6[%c0_63, %c0_64] : memref<128x128xbf16, #tpu.memory_space<vmem>>, vector<128x128xbf16>
    %cst_65 = arith.constant dense<0.000000e+00> : vector<2x128xf32>
    %257 = tpu.matmul %255, %256, %cst_65 {dimension_numbers = #tpu.dot_dimension_numbers<[1], [0], [0], [1], [0, 0, 1, 1], [], []>} : vector<2x128xbf16>, vector<128x128xbf16>, vector<2x128xf32> -> vector<2x128xf32>
    %c0_66 = arith.constant 0 : index
    %c0_67 = arith.constant 0 : index
    %258 = vector.load %arg7[%c0_66, %c0_67] : memref<1x128xf32, #tpu.memory_space<vmem>>, vector<1x128xf32>
    %259 = vector.broadcast %258 : vector<1x128xf32> to vector<2x128xf32>
    %260 = arith.addf %257, %259 : vector<2x128xf32>
    %c1_68 = arith.constant 1 : index
    %c0_69 = arith.constant 0 : index
    %c0_70 = arith.constant 0 : index
    %261 = vector.load %arg8[%c1_68, %c0_69, %c0_70] : memref<2x2x128xf32, #tpu.memory_space<vmem>>, vector<1x2x128xf32>
    %262 = vector.shape_cast %261 : vector<1x2x128xf32> to vector<2x128xf32>
    %263 = vector.shape_cast %260 : vector<2x128xf32> to vector<1x2x128xf32>
    tpu.vector_store %arg8[%c1_68, %c0_69, %c0_70], %263 {strides = array<i32>} : memref<2x2x128xf32, #tpu.memory_space<vmem>>, vector<1x2x128xf32>,
    return
  }
  func.func @transform_0(%arg0: i32) -> (i32, i32, i32) {
    %c0_i32 = arith.constant 0 : i32
    %c0_i32_0 = arith.constant 0 : i32
    %c0_i32_1 = arith.constant 0 : i32
    %c0_i32_2 = arith.constant 0 : i32
    return %c0_i32, %c0_i32_0, %c0_i32_1 : i32, i32, i32
  }
  func.func @transform_1(%arg0: i32) -> (i32, i32) {
    %c0_i32 = arith.constant 0 : i32
    %c0_i32_0 = arith.constant 0 : i32
    %c0_i32_1 = arith.constant 0 : i32
    return %c0_i32, %c0_i32_0 : i32, i32
  }
  func.func @transform_2(%arg0: i32) -> (i32, i32, i32) {
    %c0_i32 = arith.constant 0 : i32
    %c0_i32_0 = arith.constant 0 : i32
    %c0_i32_1 = arith.constant 0 : i32
    %c0_i32_2 = arith.constant 0 : i32
    return %c0_i32, %c0_i32_0, %c0_i32_1 : i32, i32, i32
  }
  func.func @transform_3(%arg0: i32) -> (i32, i32) {
    %c0_i32 = arith.constant 0 : i32
    %c0_i32_0 = arith.constant 0 : i32
    %c0_i32_1 = arith.constant 0 : i32
    return %c0_i32, %c0_i32_0 : i32, i32
  }
  func.func @transform_4(%arg0: i32) -> (i32, i32) {
    %c0_i32 = arith.constant 0 : i32
    %c0_i32_0 = arith.constant 0 : i32
    %c0_i32_1 = arith.constant 0 : i32
    return %c0_i32, %c0_i32_0 : i32, i32
  }
  func.func @transform_5(%arg0: i32) -> (i32, i32) {
    %c0_i32 = arith.constant 0 : i32
    %c0_i32_0 = arith.constant 0 : i32
    %c0_i32_1 = arith.constant 0 : i32
    return %c0_i32, %c0_i32_0 : i32, i32
  }
  func.func @transform_6(%arg0: i32) -> (i32, i32) {
    %c0_i32 = arith.constant 0 : i32
    %c0_i32_0 = arith.constant 0 : i32
    %c0_i32_1 = arith.constant 0 : i32
    return %c0_i32, %c0_i32_0 : i32, i32
  }
  func.func @transform_7(%arg0: i32) -> (i32, i32, i32) {
    %c0_i32 = arith.constant 0 : i32
    %c0_i32_0 = arith.constant 0 : i32
    %c0_i32_1 = arith.constant 0 : i32
    %c0_i32_2 = arith.constant 0 : i32
    return %c0_i32, %c0_i32_0, %c0_i32_1 : i32, i32, i32
  }
}

</mosaic_0001>

<llo_original>
// kernel: swincvs_forward.2
$region0: #{swincvs_forward.2}
  #allocation0 [shape = 'u32[]', space=smem, size = 0x4, offset = 0x4, fixed_abs, tag = 'smem constant byte address 0x4 - core index']
  #allocation1 [shape = 'u32[72,128]{1,0:T(1,128)}', space=vmem, size = 0x9000, scoped, tag = 'internal scratch']
  %s0 = inlined_call_operand.vmem [shape: bf16[16,16,256], index: 0, kind: input, shape index: {}]
  %s1 = inlined_call_operand.vmem [shape: bf16[256,512], index: 1, kind: input, shape index: {}]
  %s2 = inlined_call_operand.vmem [shape: f32[1,512], index: 2, kind: input, shape index: {}]
  %s3 = inlined_call_operand.vmem [shape: f32[16,512], index: 3, kind: output, shape index: {}]
  %s4 = sld [smem:[#allocation0]]
  $region45: #{swincvs_forward.2} parent=0
    _
  %s6 = ssub.s32 1, %s4
  %s7 = scalar_select 0, %s6, %s4
  loop: start=0, step=1, limit=4
  $region2: #{swincvs_forward.2} parent=0 // loop_pre_header
    _
  $region3: #{swincvs_forward.2} parent=0 // loop_header
    %s9 = sphi 0, %s13
    %p10 = scmp.ge.s32.totalorder %s9, 4
    %s19 = sphi 0, %s21
    %s22 = sphi 0, %s19
    %s23 = sphi 0, %s22
    %s39 = sphi 0, %s23
    %s43 = sphi 0, %s43
    %s45 = sphi 0, %s43
    %s46 = sphi 0, %s45
    %s60 = sphi 0, %s46
    %s64 = sphi 0, %s64
    %s66 = sphi 0, %s64
    %s67 = sphi 0, %s66
    %s81 = sphi 0, %s67
    %s87 = sphi 0, %s89
    %s90 = sphi 0, %s87
    %s91 = sphi 0, %s90
    %s107 = sphi 0, %s91
  $region4: #{swincvs_forward.2} parent=0 // loop_header_branch
    %12 = sbr.rel (%p10) target = $region8
  $region5: #{swincvs_forward.2} parent=0 // loop_body
    %s14 = ssub.s32 %s9, 1
    %s15 = ssub.s32 %s9, 2
    %s16 = sadd.s32 %s9, 1
    %s17 = ssub.s32 %s9, %s16
    %p18 = scmp.eq.s32.totalorder %s17, 0
    %s20 = sadd.s32 %s19, 1
    %s21 = scalar_select %p18, %s19, %s20
    %p24 = pneg %p18
    %p25 = scmp.eq.s32.totalorder %s9, 1
    %p26 = por %p24, %p25
    %p27 = scmp.ne.s32.totalorder %s19, %s22
    %p28 = scmp.eq.s32.totalorder %s9, 0
    %p29 = por %p27, %p28
    %p30 = scmp.ne.s32.totalorder %s19, %s22
    %p31 = scmp.eq.s32.totalorder %s14, 1
    %p32 = por %p30, %p31
    %p33 = scmp.ne.s32.totalorder %s22, %s23
    %p34 = scmp.eq.s32.totalorder %s14, 0
    %p35 = por %p33, %p34
    %p36 = scmp.ne.s32.totalorder %s22, %s23
    %p37 = scmp.eq.s32.totalorder %s15, 1
    %p38 = por %p36, %p37
    %p40 = scmp.ne.s32.totalorder %s23, %s39
    %p41 = scmp.eq.s32.totalorder %s15, 0
    %p42 = por %p40, %p41
    %s44 = sadd.s32 %s43, 1
    %p47 = scmp.eq.s32.totalorder %s9, 1
    %p48 = scmp.ne.s32.totalorder %s43, %s45
    %p49 = scmp.eq.s32.totalorder %s9, 0
    %p50 = por %p48, %p49
    %p51 = scmp.ne.s32.totalorder %s43, %s45
    %p52 = scmp.eq.s32.totalorder %s14, 1
    %p53 = por %p51, %p52
    %p54 = scmp.ne.s32.totalorder %s45, %s46
    %p55 = scmp.eq.s32.totalorder %s14, 0
    %p56 = por %p54, %p55
    %p57 = scmp.ne.s32.totalorder %s45, %s46
    %p58 = scmp.eq.s32.totalorder %s15, 1
    %p59 = por %p57, %p58
    %p61 = scmp.ne.s32.totalorder %s46, %s60
    %p62 = scmp.eq.s32.totalorder %s15, 0
    %p63 = por %p61, %p62
    %s65 = sadd.s32 %s64, 1
    %p68 = scmp.eq.s32.totalorder %s9, 1
    %p69 = scmp.ne.s32.totalorder %s64, %s66
    %p70 = scmp.eq.s32.totalorder %s9, 0
    %p71 = por %p69, %p70
    %p72 = scmp.ne.s32.totalorder %s64, %s66
    %p73 = scmp.eq.s32.totalorder %s14, 1
    %p74 = por %p72, %p73
    %p75 = scmp.ne.s32.totalorder %s66, %s67
    %p76 = scmp.eq.s32.totalorder %s14, 0
    %p77 = por %p75, %p76
    %p78 = scmp.ne.s32.totalorder %s66, %s67
    %p79 = scmp.eq.s32.totalorder %s15, 1
    %p80 = por %p78, %p79
    %p82 = scmp.ne.s32.totalorder %s67, %s81
    %p83 = scmp.eq.s32.totalorder %s15, 0
    %p84 = por %p82, %p83
    %s85 = ssub.s32 %s9, %s16
    %p86 = scmp.eq.s32.totalorder %s85, 0
    %s88 = sadd.s32 %s87, 1
    %s89 = scalar_select %p86, %s87, %s88
    %p92 = pneg %p86
    %p93 = scmp.eq.s32.totalorder %s9, 1
    %p94 = por %p92, %p93
    %p95 = scmp.ne.s32.totalorder %s87, %s90
    %p96 = scmp.eq.s32.totalorder %s9, 0
    %p97 = por %p95, %p96
    %p98 = scmp.ne.s32.totalorder %s87, %s90
    %p99 = scmp.eq.s32.totalorder %s14, 1
    %p100 = por %p98, %p99
    %p101 = scmp.ne.s32.totalorder %s90, %s91
    %p102 = scmp.eq.s32.totalorder %s14, 0
    %p103 = por %p101, %p102
    %p104 = scmp.ne.s32.totalorder %s90, %s91
    %p105 = scmp.eq.s32.totalorder %s15, 1
    %p106 = por %p104, %p105
    %p108 = scmp.ne.s32.totalorder %s91, %s107
    %p109 = scmp.eq.s32.totalorder %s15, 0
    %p110 = por %p108, %p109
    %p111 = scmp.le.s32.totalorder 1, %s9
    %p112 = scmp.lt.s32.totalorder %s9, 3
    %p113 = pnand %p111, %p112
    %p114 = pneg %p113
    // Predicated region
    $region9: #{swincvs_forward.2} parent=5 // pred_check
      _
    $region10: #{swincvs_forward.2} parent=5 // pred_check_branch
      %116 = sbr.rel (%p113) target = $region12
    $region11: #{swincvs_forward.2} parent=5 // pred_region
      %s117 = ssub.s32 %s9, 1
      // Predicated region
      $region13: #{swincvs_forward.2} parent=11 // pred_check
        %p118 = pneg %p56
      $region14: #{swincvs_forward.2} parent=11 // pred_check_branch
        %120 = sbr.rel (%p118) target = $region16
      $region15: #{swincvs_forward.2} parent=11 // pred_region
        _
      $region16: #{swincvs_forward.2} parent=11 // pred_fallthru
        _
      // Predicated region
      $region17: #{swincvs_forward.2} parent=11 // pred_check
        %p121 = pneg %p77
      $region18: #{swincvs_forward.2} parent=11 // pred_check_branch
        %123 = sbr.rel (%p121) target = $region20
      $region19: #{swincvs_forward.2} parent=11 // pred_region
        _
      $region20: #{swincvs_forward.2} parent=11 // pred_fallthru
        _
    $region12: #{swincvs_forward.2} parent=5 // pred_fallthru
      _
    %p124 = scmp.lt.s32.totalorder %s9, 2
    // Predicated region
    $region21: #{swincvs_forward.2} parent=5 // pred_check
      %p125 = pneg %p124
    $region22: #{swincvs_forward.2} parent=5 // pred_check_branch
      %127 = sbr.rel (%p125) target = $region24
    $region23: #{swincvs_forward.2} parent=5 // pred_region
      // Predicated region
      $region25: #{swincvs_forward.2} parent=23 // pred_check
        %p128 = pneg %p29
      $region26: #{swincvs_forward.2} parent=23 // pred_check_branch
        %130 = sbr.rel (%p128) target = $region28
      $region27: #{swincvs_forward.2} parent=23 // pred_region
        %s131 = smul.u32 8, %s9
        %p132 = scmp.lt.s32.totalorder %s131, 15
        %s133 = scalar_select %p132, %s131, 15
        %s134 = smul.addr %s133, 4
        %s135 = smul.addr %s134, 4
        %s136 = scalar_lea.vmem %s0, %s135
        %s137 = smul.u32 8, %s9
      $region28: #{swincvs_forward.2} parent=23 // pred_fallthru
        _
    $region24: #{swincvs_forward.2} parent=5 // pred_fallthru
      _
    %p138 = scmp.le.s32.totalorder 1, %s9
    %p139 = scmp.lt.s32.totalorder %s9, 3
    %p140 = pnand %p138, %p139
    %p141 = pneg %p140
    // Predicated region
    $region29: #{swincvs_forward.2} parent=5 // pred_check
      _
    $region30: #{swincvs_forward.2} parent=5 // pred_check_branch
      %143 = sbr.rel (%p140) target = $region32
    $region31: #{swincvs_forward.2} parent=5 // pred_region
      %s144 = ssub.s32 %s9, 1
      %s145 = smul.u32 8, %s14
      %p146 = scmp.lt.s32.totalorder %s145, 15
      %s147 = scalar_select %p146, %s145, 15
      %s148 = smul.addr %s147, 4
      %s149 = smul.addr %s148, 4
      %s150 = scalar_lea.vmem %s0, %s149
      %p151 = pneg %p35
      %p152 = pneg %p32
      %p153 = pneg %p56
      %p154 = pneg %p53
      %p155 = pneg %p77
      %p156 = pneg %p74
      %p157 = pneg %p103
      %p158 = pneg %p100
      %p159 = scmp.lt.s32.totalorder %s14, 1
      %s160 = scalar_select %p159, %s14, 1
      %s161 = smul.addr %s160, 4
      %s162 = smul.addr %s161, 8
      %s163 = scalar_lea.vmem %s3, %s162
      %s164 = smul.u32 8, %s14
      %p165 = scmp.lt.s32.totalorder %s164, 15
      %s166 = scalar_select %p165, %s164, 15
      %s167 = smul.addr %s166, 4
      %s168 = smul.addr %s167, 4
      %s169 = scalar_lea.vmem %s0, %s168
      %s170 = smul.u32 8, %s14
      %p171 = scmp.lt.s32.totalorder %s14, 1
      %s172 = scalar_select %p171, %s14, 1
      %s173 = smul.addr %s172, 4
      %s174 = smul.addr %s173, 8
      %s175 = scalar_lea.vmem %s3, %s174
      %v176 = vld [vmem:[%s169] sm:$0xff]
      %v177 = vld [vmem:[%s169 + $0x8] sm:$0xff]
      %v178 = vld [vmem:[%s169 + $0x10] sm:$0xff]
      %v179 = vld [vmem:[%s169 + $0x18] sm:$0xff]
      %v180 = vld [vmem:[%s169 + $0x20] sm:$0xff]
      %v181 = vld [vmem:[%s169 + $0x28] sm:$0xff]
      %v182 = vld [vmem:[%s169 + $0x30] sm:$0xff]
      %v183 = vld [vmem:[%s169 + $0x38] sm:$0xff]
      %v184 = vld [vmem:[%s169 + $0x40] sm:$0xff]
      %v185 = vld [vmem:[%s169 + $0x48] sm:$0xff]
      %v186 = vld [vmem:[%s169 + $0x50] sm:$0xff]
      %v187 = vld [vmem:[%s169 + $0x58] sm:$0xff]
      %v188 = vld [vmem:[%s169 + $0x60] sm:$0xff]
      %v189 = vld [vmem:[%s169 + $0x68] sm:$0xff]
      %v190 = vld [vmem:[%s169 + $0x70] sm:$0xff]
      %v191 = vld [vmem:[%s169 + $0x78] sm:$0xff]
      %v192 = vunpack.c.l.bf16 %v176
      %v193 = vunpack.c.h.bf16 %v176
      %v194 = vunpack.c.l.bf16 %v177
      %v195 = vunpack.c.h.bf16 %v177
      %v196 = vunpack.c.l.bf16 %v178
      %v197 = vunpack.c.h.bf16 %v178
      %v198 = vunpack.c.l.bf16 %v179
      %v199 = vunpack.c.h.bf16 %v179
      %v200 = vunpack.c.l.bf16 %v180
      %v201 = vunpack.c.h.bf16 %v180
      %v202 = vunpack.c.l.bf16 %v181
      %v203 = vunpack.c.h.bf16 %v181
      %v204 = vunpack.c.l.bf16 %v182
      %v205 = vunpack.c.h.bf16 %v182
      %v206 = vunpack.c.l.bf16 %v183
      %v207 = vunpack.c.h.bf16 %v183
      %v208 = vunpack.c.l.bf16 %v184
      %v209 = vunpack.c.h.bf16 %v184
      %v210 = vunpack.c.l.bf16 %v185
      %v211 = vunpack.c.h.bf16 %v185
      %v212 = vunpack.c.l.bf16 %v186
      %v213 = vunpack.c.h.bf16 %v186
      %v214 = vunpack.c.l.bf16 %v187
      %v215 = vunpack.c.h.bf16 %v187
      %v216 = vunpack.c.l.bf16 %v188
      %v217 = vunpack.c.h.bf16 %v188
      %v218 = vunpack.c.l.bf16 %v189
      %v219 = vunpack.c.h.bf16 %v189
      %v220 = vunpack.c.l.bf16 %v190
      %v221 = vunpack.c.h.bf16 %v190
      %v222 = vunpack.c.l.bf16 %v191
      %v223 = vunpack.c.h.bf16 %v191
      %v224 = vadd.f32 %v192, %v194
      %v225 = vrot.slane %v224, 4
      %v226 = vadd.f32 %v224, %v225
      %v227 = vrot.slane %v226, 2
      %v228 = vadd.f32 %v226, %v227
      %v229 = vrot.slane %v228, 1
      %v230 = vadd.f32 %v228, %v229
      %v231 = vadd.f32 %v193, %v195
      %v232 = vrot.slane %v231, 4
      %v233 = vadd.f32 %v231, %v232
      %v234 = vrot.slane %v233, 2
      %v235 = vadd.f32 %v233, %v234
      %v236 = vrot.slane %v235, 1
      %v237 = vadd.f32 %v235, %v236
      %v238 = vadd.f32 %v196, %v198
      %v239 = vrot.slane %v238, 4
      %v240 = vadd.f32 %v238, %v239
      %v241 = vrot.slane %v240, 2
      %v242 = vadd.f32 %v240, %v241
      %v243 = vrot.slane %v242, 1
      %v244 = vadd.f32 %v242, %v243
      %v245 = vadd.f32 %v197, %v199
      %v246 = vrot.slane %v245, 4
      %v247 = vadd.f32 %v245, %v246
      %v248 = vrot.slane %v247, 2
      %v249 = vadd.f32 %v247, %v248
      %v250 = vrot.slane %v249, 1
      %v251 = vadd.f32 %v249, %v250
      %v252 = vadd.f32 %v200, %v202
      %v253 = vrot.slane %v252, 4
      %v254 = vadd.f32 %v252, %v253
      %v255 = vrot.slane %v254, 2
      %v256 = vadd.f32 %v254, %v255
      %v257 = vrot.slane %v256, 1
      %v258 = vadd.f32 %v256, %v257
      %v259 = vadd.f32 %v201, %v203
      %v260 = vrot.slane %v259, 4
      %v261 = vadd.f32 %v259, %v260
      %v262 = vrot.slane %v261, 2
      %v263 = vadd.f32 %v261, %v262
      %v264 = vrot.slane %v263, 1
      %v265 = vadd.f32 %v263, %v264
      %v266 = vadd.f32 %v204, %v206
      %v267 = vrot.slane %v266, 4
      %v268 = vadd.f32 %v266, %v267
      %v269 = vrot.slane %v268, 2
      %v270 = vadd.f32 %v268, %v269
      %v271 = vrot.slane %v270, 1
      %v272 = vadd.f32 %v270, %v271
      %v273 = vadd.f32 %v205, %v207
      %v274 = vrot.slane %v273, 4
      %v275 = vadd.f32 %v273, %v274
      %v276 = vrot.slane %v275, 2
      %v277 = vadd.f32 %v275, %v276
      %v278 = vrot.slane %v277, 1
      %v279 = vadd.f32 %v277, %v278
      %v280 = vadd.f32 %v208, %v210
      %v281 = vrot.slane %v280, 4
      %v282 = vadd.f32 %v280, %v281
      %v283 = vrot.slane %v282, 2
      %v284 = vadd.f32 %v282, %v283
      %v285 = vrot.slane %v284, 1
      %v286 = vadd.f32 %v284, %v285
      %v287 = vadd.f32 %v209, %v211
      %v288 = vrot.slane %v287, 4
      %v289 = vadd.f32 %v287, %v288
      %v290 = vrot.slane %v289, 2
      %v291 = vadd.f32 %v289, %v290
      %v292 = vrot.slane %v291, 1
      %v293 = vadd.f32 %v291, %v292
      %v294 = vadd.f32 %v212, %v214
      %v295 = vrot.slane %v294, 4
      %v296 = vadd.f32 %v294, %v295
      %v297 = vrot.slane %v296, 2
      %v298 = vadd.f32 %v296, %v297
      %v299 = vrot.slane %v298, 1
      %v300 = vadd.f32 %v298, %v299
      %v301 = vadd.f32 %v213, %v215
      %v302 = vrot.slane %v301, 4
      %v303 = vadd.f32 %v301, %v302
      %v304 = vrot.slane %v303, 2
      %v305 = vadd.f32 %v303, %v304
      %v306 = vrot.slane %v305, 1
      %v307 = vadd.f32 %v305, %v306
      %v308 = vadd.f32 %v216, %v218
      %v309 = vrot.slane %v308, 4
      %v310 = vadd.f32 %v308, %v309
      %v311 = vrot.slane %v310, 2
      %v312 = vadd.f32 %v310, %v311
      %v313 = vrot.slane %v312, 1
      %v314 = vadd.f32 %v312, %v313
      %v315 = vadd.f32 %v217, %v219
      %v316 = vrot.slane %v315, 4
      %v317 = vadd.f32 %v315, %v316
      %v318 = vrot.slane %v317, 2
      %v319 = vadd.f32 %v317, %v318
      %v320 = vrot.slane %v319, 1
      %v321 = vadd.f32 %v319, %v320
      %v322 = vadd.f32 %v220, %v222
      %v323 = vrot.slane %v322, 4
      %v324 = vadd.f32 %v322, %v323
      %v325 = vrot.slane %v324, 2
      %v326 = vadd.f32 %v324, %v325
      %v327 = vrot.slane %v326, 1
      %v328 = vadd.f32 %v326, %v327
      %v329 = vadd.f32 %v221, %v223
      %v330 = vrot.slane %v329, 4
      %v331 = vadd.f32 %v329, %v330
      %v332 = vrot.slane %v331, 2
      %v333 = vadd.f32 %v331, %v332
      %v334 = vrot.slane %v333, 1
      %v335 = vadd.f32 %v333, %v334
      %v336 = vpack.c.bf16 %v230, %v230
      %v337 = vpack.c.bf16 %v237, %v237
      %v338 = vpack.c.bf16 %v244, %v244
      %v339 = vpack.c.bf16 %v251, %v251
      %v340 = vpack.c.bf16 %v258, %v258
      %v341 = vpack.c.bf16 %v265, %v265
      %v342 = vpack.c.bf16 %v272, %v272
      %v343 = vpack.c.bf16 %v279, %v279
      %v344 = vpack.c.bf16 %v286, %v286
      %v345 = vpack.c.bf16 %v293, %v293
      %v346 = vpack.c.bf16 %v300, %v300
      %v347 = vpack.c.bf16 %v307, %v307
      %v348 = vpack.c.bf16 %v314, %v314
      %v349 = vpack.c.bf16 %v321, %v321
      %v350 = vpack.c.bf16 %v328, %v328
      %v351 = vpack.c.bf16 %v335, %v335
      %v352 = vld [vmem:[%s1] sm:$0xff]
      %v353 = vld [vmem:[%s1 + $0x8] sm:$0xff]
      %v354 = vld [vmem:[%s1 + $0x10] sm:$0xff]
      %v355 = vld [vmem:[%s1 + $0x18] sm:$0xff]
      %v356 = vld [vmem:[%s1 + $0x20] sm:$0xff]
      %v357 = vld [vmem:[%s1 + $0x28] sm:$0xff]
      %v358 = vld [vmem:[%s1 + $0x30] sm:$0xff]
      %v359 = vld [vmem:[%s1 + $0x38] sm:$0xff]
      %v360 = vld [vmem:[%s1 + $0x40] sm:$0xff]
      %v361 = vld [vmem:[%s1 + $0x48] sm:$0xff]
      %v362 = vld [vmem:[%s1 + $0x50] sm:$0xff]
      %v363 = vld [vmem:[%s1 + $0x58] sm:$0xff]
      %v364 = vld [vmem:[%s1 + $0x60] sm:$0xff]
      %v365 = vld [vmem:[%s1 + $0x68] sm:$0xff]
      %v366 = vld [vmem:[%s1 + $0x70] sm:$0xff]
      %v367 = vld [vmem:[%s1 + $0x78] sm:$0xff]
      %v368 = vld [vmem:[%s1 + $0x80] sm:$0xff]
      %v369 = vld [vmem:[%s1 + $0x88] sm:$0xff]
      %v370 = vld [vmem:[%s1 + $0x90] sm:$0xff]
      %v371 = vld [vmem:[%s1 + $0x98] sm:$0xff]
      %v372 = vld [vmem:[%s1 + $0xa0] sm:$0xff]
      %v373 = vld [vmem:[%s1 + $0xa8] sm:$0xff]
      %v374 = vld [vmem:[%s1 + $0xb0] sm:$0xff]
      %v375 = vld [vmem:[%s1 + $0xb8] sm:$0xff]
      %v376 = vld [vmem:[%s1 + $0xc0] sm:$0xff]
      %v377 = vld [vmem:[%s1 + $0xc8] sm:$0xff]
      %v378 = vld [vmem:[%s1 + $0xd0] sm:$0xff]
      %v379 = vld [vmem:[%s1 + $0xd8] sm:$0xff]
      %v380 = vld [vmem:[%s1 + $0xe0] sm:$0xff]
      %v381 = vld [vmem:[%s1 + $0xe8] sm:$0xff]
      %v382 = vld [vmem:[%s1 + $0xf0] sm:$0xff]
      %v383 = vld [vmem:[%s1 + $0xf8] sm:$0xff]
      %v384 = vld [vmem:[%s1 + $0x100] sm:$0xff]
      %v385 = vld [vmem:[%s1 + $0x108] sm:$0xff]
      %v386 = vld [vmem:[%s1 + $0x110] sm:$0xff]
      %v387 = vld [vmem:[%s1 + $0x118] sm:$0xff]
      %v388 = vld [vmem:[%s1 + $0x120] sm:$0xff]
      %v389 = vld [vmem:[%s1 + $0x128] sm:$0xff]
      %v390 = vld [vmem:[%s1 + $0x130] sm:$0xff]
      %v391 = vld [vmem:[%s1 + $0x138] sm:$0xff]
      %v392 = vld [vmem:[%s1 + $0x140] sm:$0xff]
      %v393 = vld [vmem:[%s1 + $0x148] sm:$0xff]
      %v394 = vld [vmem:[%s1 + $0x150] sm:$0xff]
      %v395 = vld [vmem:[%s1 + $0x158] sm:$0xff]
      %v396 = vld [vmem:[%s1 + $0x160] sm:$0xff]
      %v397 = vld [vmem:[%s1 + $0x168] sm:$0xff]
      %v398 = vld [vmem:[%s1 + $0x170] sm:$0xff]
      %v399 = vld [vmem:[%s1 + $0x178] sm:$0xff]
      %v400 = vld [vmem:[%s1 + $0x180] sm:$0xff]
      %v401 = vld [vmem:[%s1 + $0x188] sm:$0xff]
      %v402 = vld [vmem:[%s1 + $0x190] sm:$0xff]
      %v403 = vld [vmem:[%s1 + $0x198] sm:$0xff]
      %v404 = vld [vmem:[%s1 + $0x1a0] sm:$0xff]
      %v405 = vld [vmem:[%s1 + $0x1a8] sm:$0xff]
      %v406 = vld [vmem:[%s1 + $0x1b0] sm:$0xff]
      %v407 = vld [vmem:[%s1 + $0x1b8] sm:$0xff]
      %v408 = vld [vmem:[%s1 + $0x1c0] sm:$0xff]
      %v409 = vld [vmem:[%s1 + $0x1c8] sm:$0xff]
      %v410 = vld [vmem:[%s1 + $0x1d0] sm:$0xff]
      %v411 = vld [vmem:[%s1 + $0x1d8] sm:$0xff]
      %v412 = vld [vmem:[%s1 + $0x1e0] sm:$0xff]
      %v413 = vld [vmem:[%s1 + $0x1e8] sm:$0xff]
      %v414 = vld [vmem:[%s1 + $0x1f0] sm:$0xff]
      %v415 = vld [vmem:[%s1 + $0x1f8] sm:$0xff]
      %v416 = vld [vmem:[%s2] sm:$0xf]
      %v418 = vperm.slane %v416, 0
      %v419 = vperm.slane %v416, 1
      %v420 = vperm.slane %v416, 2
      %v421 = vperm.slane %v416, 3
      %v442 = vunpack.c.l.b16 %v336
      %v443 = vunpack.c.l.b16 %v337
      %v444 = vunpack.c.l.b16 %v338
      %v445 = vunpack.c.l.b16 %v339
      %v446 = vunpack.c.l.b16 %v340
      %v447 = vunpack.c.l.b16 %v341
      %v448 = vunpack.c.l.b16 %v342
      %v449 = vunpack.c.l.b16 %v343
      %v450 = vunpack.c.l.b16 %v344
      %v451 = vunpack.c.l.b16 %v345
      %v452 = vunpack.c.l.b16 %v346
      %v453 = vunpack.c.l.b16 %v347
      %v454 = vunpack.c.l.b16 %v348
      %v455 = vunpack.c.l.b16 %v349
      %v456 = vunpack.c.l.b16 %v350
      %v457 = vunpack.c.l.b16 %v351
      %vm458 = vcmask 1041409
      %v459 = vsel %vm458, %v444, %v442
      %vm460 = vcmask 1042434
      %v461 = vsel %vm460, %v446, %v459
      %vm462 = vcmask 1043459
      %v463 = vsel %vm462, %v448, %v461
      %vm464 = vcmask 1044484
      %v465 = vsel %vm464, %v450, %v463
      %vm466 = vcmask 1045509
      %v467 = vsel %vm466, %v452, %v465
      %vm468 = vcmask 1046534
      %v469 = vsel %vm468, %v454, %v467
      %vm470 = vcmask 1047559
      %v471 = vsel %vm470, %v456, %v469
      %v472 = vsel %vm458, %v445, %v443
      %v473 = vsel %vm460, %v447, %v472
      %v474 = vsel %vm462, %v449, %v473
      %v475 = vsel %vm464, %v451, %v474
      %v476 = vsel %vm466, %v453, %v475
      %v477 = vsel %vm468, %v455, %v476
      %v478 = vsel %vm470, %v457, %v477
      %v479 = vpack.c.b16 %v471, %v471
      %v480 = vpack.c.b16 %v478, %v478
      %v547 = vunpack.c.l.b16 %v352
      %v548 = vunpack.c.h.b16 %v352
      %v549 = vunpack.c.l.b16 %v353
      %v550 = vunpack.c.h.b16 %v353
      %v551 = vunpack.c.l.b16 %v354
      %v552 = vunpack.c.h.b16 %v354
      %v553 = vunpack.c.l.b16 %v355
      %v554 = vunpack.c.h.b16 %v355
      %v555 = vunpack.c.l.b16 %v356
      %v556 = vunpack.c.h.b16 %v356
      %v557 = vunpack.c.l.b16 %v357
      %v558 = vunpack.c.h.b16 %v357
      %v559 = vunpack.c.l.b16 %v358
      %v560 = vunpack.c.h.b16 %v358
      %v561 = vunpack.c.l.b16 %v359
      %v562 = vunpack.c.h.b16 %v359
      %v563 = vunpack.c.l.b16 %v360
      %v564 = vunpack.c.h.b16 %v360
      %v565 = vunpack.c.l.b16 %v361
      %v566 = vunpack.c.h.b16 %v361
      %v567 = vunpack.c.l.b16 %v362
      %v568 = vunpack.c.h.b16 %v362
      %v569 = vunpack.c.l.b16 %v363
      %v570 = vunpack.c.h.b16 %v363
      %v571 = vunpack.c.l.b16 %v364
      %v572 = vunpack.c.h.b16 %v364
      %v573 = vunpack.c.l.b16 %v365
      %v574 = vunpack.c.h.b16 %v365
      %v575 = vunpack.c.l.b16 %v366
      %v576 = vunpack.c.h.b16 %v366
      %v577 = vunpack.c.l.b16 %v367
      %v578 = vunpack.c.h.b16 %v367
      %v579 = vunpack.c.l.b16 %v368
      %v580 = vunpack.c.h.b16 %v368
      %v581 = vunpack.c.l.b16 %v369
      %v582 = vunpack.c.h.b16 %v369
      %v583 = vunpack.c.l.b16 %v370
      %v584 = vunpack.c.h.b16 %v370
      %v585 = vunpack.c.l.b16 %v371
      %v586 = vunpack.c.h.b16 %v371
      %v587 = vunpack.c.l.b16 %v372
      %v588 = vunpack.c.h.b16 %v372
      %v589 = vunpack.c.l.b16 %v373
      %v590 = vunpack.c.h.b16 %v373
      %v591 = vunpack.c.l.b16 %v374
      %v592 = vunpack.c.h.b16 %v374
      %v593 = vunpack.c.l.b16 %v375
      %v594 = vunpack.c.h.b16 %v375
      %v595 = vunpack.c.l.b16 %v376
      %v596 = vunpack.c.h.b16 %v376
      %v597 = vunpack.c.l.b16 %v377
      %v598 = vunpack.c.h.b16 %v377
      %v599 = vunpack.c.l.b16 %v378
      %v600 = vunpack.c.h.b16 %v378
      %v601 = vunpack.c.l.b16 %v379
      %v602 = vunpack.c.h.b16 %v379
      %v603 = vunpack.c.l.b16 %v380
      %v604 = vunpack.c.h.b16 %v380
      %v605 = vunpack.c.l.b16 %v381
      %v606 = vunpack.c.h.b16 %v381
      %v607 = vunpack.c.l.b16 %v382
      %v608 = vunpack.c.h.b16 %v382
      %v609 = vunpack.c.l.b16 %v383
      %v610 = vunpack.c.h.b16 %v383
      %v611 = vunpack.c.l.b16 %v384
      %v612 = vunpack.c.h.b16 %v384
      %v613 = vunpack.c.l.b16 %v385
      %v614 = vunpack.c.h.b16 %v385
      %v615 = vunpack.c.l.b16 %v386
      %v616 = vunpack.c.h.b16 %v386
      %v617 = vunpack.c.l.b16 %v387
      %v618 = vunpack.c.h.b16 %v387
      %v619 = vunpack.c.l.b16 %v388
      %v620 = vunpack.c.h.b16 %v388
      %v621 = vunpack.c.l.b16 %v389
      %v622 = vunpack.c.h.b16 %v389
      %v623 = vunpack.c.l.b16 %v390
      %v624 = vunpack.c.h.b16 %v390
      %v625 = vunpack.c.l.b16 %v391
      %v626 = vunpack.c.h.b16 %v391
      %v627 = vunpack.c.l.b16 %v392
      %v628 = vunpack.c.h.b16 %v392
      %v629 = vunpack.c.l.b16 %v393
      %v630 = vunpack.c.h.b16 %v393
      %v631 = vunpack.c.l.b16 %v394
      %v632 = vunpack.c.h.b16 %v394
      %v633 = vunpack.c.l.b16 %v395
      %v634 = vunpack.c.h.b16 %v395
      %v635 = vunpack.c.l.b16 %v396
      %v636 = vunpack.c.h.b16 %v396
      %v637 = vunpack.c.l.b16 %v397
      %v638 = vunpack.c.h.b16 %v397
      %v639 = vunpack.c.l.b16 %v398
      %v640 = vunpack.c.h.b16 %v398
      %v641 = vunpack.c.l.b16 %v399
      %v642 = vunpack.c.h.b16 %v399
      %v643 = vunpack.c.l.b16 %v400
      %v644 = vunpack.c.h.b16 %v400
      %v645 = vunpack.c.l.b16 %v401
      %v646 = vunpack.c.h.b16 %v401
      %v647 = vunpack.c.l.b16 %v402
      %v648 = vunpack.c.h.b16 %v402
      %v649 = vunpack.c.l.b16 %v403
      %v650 = vunpack.c.h.b16 %v403
      %v651 = vunpack.c.l.b16 %v404
      %v652 = vunpack.c.h.b16 %v404
      %v653 = vunpack.c.l.b16 %v405
      %v654 = vunpack.c.h.b16 %v405
      %v655 = vunpack.c.l.b16 %v406
      %v656 = vunpack.c.h.b16 %v406
      %v657 = vunpack.c.l.b16 %v407
      %v658 = vunpack.c.h.b16 %v407
      %v659 = vunpack.c.l.b16 %v408
      %v660 = vunpack.c.h.b16 %v408
      %v661 = vunpack.c.l.b16 %v409
      %v662 = vunpack.c.h.b16 %v409
      %v663 = vunpack.c.l.b16 %v410
      %v664 = vunpack.c.h.b16 %v410
      %v665 = vunpack.c.l.b16 %v411
      %v666 = vunpack.c.h.b16 %v411
      %v667 = vunpack.c.l.b16 %v412
      %v668 = vunpack.c.h.b16 %v412
      %v669 = vunpack.c.l.b16 %v413
      %v670 = vunpack.c.h.b16 %v413
      %v671 = vunpack.c.l.b16 %v414
      %v672 = vunpack.c.h.b16 %v414
      %v673 = vunpack.c.l.b16 %v415
      %v674 = vunpack.c.h.b16 %v415
      %v675 = vpack.c.b16 %v551, %v547
      %v676 = vpack.c.b16 %v552, %v548
      %v677 = vpack.c.b16 %v553, %v549
      %v678 = vpack.c.b16 %v554, %v550
      %v679 = vpack.c.b16 %v559, %v555
      %v680 = vpack.c.b16 %v560, %v556
      %v681 = vpack.c.b16 %v561, %v557
      %v682 = vpack.c.b16 %v562, %v558
      %v683 = vpack.c.b16 %v567, %v563
      %v684 = vpack.c.b16 %v568, %v564
      %v685 = vpack.c.b16 %v569, %v565
      %v686 = vpack.c.b16 %v570, %v566
      %v687 = vpack.c.b16 %v575, %v571
      %v688 = vpack.c.b16 %v576, %v572
      %v689 = vpack.c.b16 %v577, %v573
      %v690 = vpack.c.b16 %v578, %v574
      %v691 = vpack.c.b16 %v583, %v579
      %v692 = vpack.c.b16 %v584, %v580
      %v693 = vpack.c.b16 %v585, %v581
      %v694 = vpack.c.b16 %v586, %v582
      %v695 = vpack.c.b16 %v591, %v587
      %v696 = vpack.c.b16 %v592, %v588
      %v697 = vpack.c.b16 %v593, %v589
      %v698 = vpack.c.b16 %v594, %v590
      %v699 = vpack.c.b16 %v599, %v595
      %v700 = vpack.c.b16 %v600, %v596
      %v701 = vpack.c.b16 %v601, %v597
      %v702 = vpack.c.b16 %v602, %v598
      %v703 = vpack.c.b16 %v607, %v603
      %v704 = vpack.c.b16 %v608, %v604
      %v705 = vpack.c.b16 %v609, %v605
      %v706 = vpack.c.b16 %v610, %v606
      %v707 = vpack.c.b16 %v615, %v611
      %v708 = vpack.c.b16 %v616, %v612
      %v709 = vpack.c.b16 %v617, %v613
      %v710 = vpack.c.b16 %v618, %v614
      %v711 = vpack.c.b16 %v623, %v619
      %v712 = vpack.c.b16 %v624, %v620
      %v713 = vpack.c.b16 %v625, %v621
      %v714 = vpack.c.b16 %v626, %v622
      %v715 = vpack.c.b16 %v631, %v627
      %v716 = vpack.c.b16 %v632, %v628
      %v717 = vpack.c.b16 %v633, %v629
      %v718 = vpack.c.b16 %v634, %v630
      %v719 = vpack.c.b16 %v639, %v635
      %v720 = vpack.c.b16 %v640, %v636
      %v721 = vpack.c.b16 %v641, %v637
      %v722 = vpack.c.b16 %v642, %v638
      %v723 = vpack.c.b16 %v647, %v643
      %v724 = vpack.c.b16 %v648, %v644
      %v725 = vpack.c.b16 %v649, %v645
      %v726 = vpack.c.b16 %v650, %v646
      %v727 = vpack.c.b16 %v655, %v651
      %v728 = vpack.c.b16 %v656, %v652
      %v729 = vpack.c.b16 %v657, %v653
      %v730 = vpack.c.b16 %v658, %v654
      %v731 = vpack.c.b16 %v663, %v659
      %v732 = vpack.c.b16 %v664, %v660
      %v733 = vpack.c.b16 %v665, %v661
      %v734 = vpack.c.b16 %v666, %v662
      %v735 = vpack.c.b16 %v671, %v667
      %v736 = vpack.c.b16 %v672, %v668
      %v737 = vpack.c.b16 %v673, %v669
      %v738 = vpack.c.b16 %v674, %v670
      %803 = vmatpush.bf16.msra.mxu0 %v703
      %804 = vmatpush.bf16.msra.mxu0 %v699
      %805 = vmatpush.bf16.msra.mxu0 %v695
      %806 = vmatpush.bf16.msra.mxu0 %v691
      %807 = vmatpush.bf16.msra.mxu0 %v687
      %808 = vmatpush.bf16.msra.mxu0 %v683
      %809 = vmatpush.bf16.msra.mxu0 %v679
      %810 = vmatpush.bf16.msra.mxu0 %v675
      %811 = vmatmul.bf16.gmra.mxu0 %v479
      %v812 = vpop.f32.mrf.mxu0
      %v813 = vadd.f32 %v418, %v812
      %v814 = vpop.f32.mrf.mxu0
      %815 = vdwg.mxu0
      %816 = vmatpush.bf16.msra.mxu0 %v735
      %817 = vmatpush.bf16.msra.mxu0 %v731
      %818 = vmatpush.bf16.msra.mxu0 %v727
      %819 = vmatpush.bf16.msra.mxu0 %v723
      %820 = vmatpush.bf16.msra.mxu0 %v719
      %821 = vmatpush.bf16.msra.mxu0 %v715
      %822 = vmatpush.bf16.msra.mxu0 %v711
      %823 = vmatpush.bf16.msra.mxu0 %v707
      %824 = vmatmul.bf16.gmra.mxu0 %v480
      %v825 = vpop.f32.mrf.mxu0
      %v826 = vadd.f32 %v813, %v825
      %v827 = vpop.f32.mrf.mxu0
      %828 = vdwg.mxu0
      %829 = vmatpush.bf16.msra.mxu0 %v704
      %830 = vmatpush.bf16.msra.mxu0 %v700
      %831 = vmatpush.bf16.msra.mxu0 %v696
      %832 = vmatpush.bf16.msra.mxu0 %v692
      %833 = vmatpush.bf16.msra.mxu0 %v688
      %834 = vmatpush.bf16.msra.mxu0 %v684
      %835 = vmatpush.bf16.msra.mxu0 %v680
      %836 = vmatpush.bf16.msra.mxu0 %v676
      %837 = vmatmul.bf16.gmra.mxu0 %v479
      %v838 = vpop.f32.mrf.mxu0
      %v839 = vadd.f32 %v419, %v838
      %v840 = vpop.f32.mrf.mxu0
      %841 = vdwg.mxu0
      %842 = vmatpush.bf16.msra.mxu0 %v736
      %843 = vmatpush.bf16.msra.mxu0 %v732
      %844 = vmatpush.bf16.msra.mxu0 %v728
      %845 = vmatpush.bf16.msra.mxu0 %v724
      %846 = vmatpush.bf16.msra.mxu0 %v720
      %847 = vmatpush.bf16.msra.mxu0 %v716
      %848 = vmatpush.bf16.msra.mxu0 %v712
      %849 = vmatpush.bf16.msra.mxu0 %v708
      %850 = vmatmul.bf16.gmra.mxu0 %v480
      %v851 = vpop.f32.mrf.mxu0
      %v852 = vadd.f32 %v839, %v851
      %v853 = vpop.f32.mrf.mxu0
      %854 = vdwg.mxu0
      %855 = vmatpush.bf16.msra.mxu0 %v705
      %856 = vmatpush.bf16.msra.mxu0 %v701
      %857 = vmatpush.bf16.msra.mxu0 %v697
      %858 = vmatpush.bf16.msra.mxu0 %v693
      %859 = vmatpush.bf16.msra.mxu0 %v689
      %860 = vmatpush.bf16.msra.mxu0 %v685
      %861 = vmatpush.bf16.msra.mxu0 %v681
      %862 = vmatpush.bf16.msra.mxu0 %v677
      %863 = vmatmul.bf16.gmra.mxu0 %v479
      %v864 = vpop.f32.mrf.mxu0
      %v865 = vadd.f32 %v420, %v864
      %v866 = vpop.f32.mrf.mxu0
      %867 = vdwg.mxu0
      %868 = vmatpush.bf16.msra.mxu0 %v737
      %869 = vmatpush.bf16.msra.mxu0 %v733
      %870 = vmatpush.bf16.msra.mxu0 %v729
      %871 = vmatpush.bf16.msra.mxu0 %v725
      %872 = vmatpush.bf16.msra.mxu0 %v721
      %873 = vmatpush.bf16.msra.mxu0 %v717
      %874 = vmatpush.bf16.msra.mxu0 %v713
      %875 = vmatpush.bf16.msra.mxu0 %v709
      %876 = vmatmul.bf16.gmra.mxu0 %v480
      %v877 = vpop.f32.mrf.mxu0
      %v878 = vadd.f32 %v865, %v877
      %v879 = vpop.f32.mrf.mxu0
      %880 = vdwg.mxu0
      %881 = vmatpush.bf16.msra.mxu0 %v706
      %882 = vmatpush.bf16.msra.mxu0 %v702
      %883 = vmatpush.bf16.msra.mxu0 %v698
      %884 = vmatpush.bf16.msra.mxu0 %v694
      %885 = vmatpush.bf16.msra.mxu0 %v690
      %886 = vmatpush.bf16.msra.mxu0 %v686
      %887 = vmatpush.bf16.msra.mxu0 %v682
      %888 = vmatpush.bf16.msra.mxu0 %v678
      %889 = vmatmul.bf16.gmra.mxu0 %v479
      %v890 = vpop.f32.mrf.mxu0
      %v891 = vadd.f32 %v421, %v890
      %v892 = vpop.f32.mrf.mxu0
      %893 = vdwg.mxu0
      %894 = vmatpush.bf16.msra.mxu0 %v738
      %895 = vmatpush.bf16.msra.mxu0 %v734
      %896 = vmatpush.bf16.msra.mxu0 %v730
      %897 = vmatpush.bf16.msra.mxu0 %v726
      %898 = vmatpush.bf16.msra.mxu0 %v722
      %899 = vmatpush.bf16.msra.mxu0 %v718
      %900 = vmatpush.bf16.msra.mxu0 %v714
      %901 = vmatpush.bf16.msra.mxu0 %v710
      %902 = vmatmul.bf16.gmra.mxu0 %v480
      %v903 = vpop.f32.mrf.mxu0
      %v904 = vadd.f32 %v891, %v903
      %v905 = vpop.f32.mrf.mxu0
      %906 = vdwg.mxu0
      %907 = vst [vmem:[%s175] sm:$0xff] %v826
      %908 = vst [vmem:[%s175 + $0x8] sm:$0xff] %v852
      %909 = vst [vmem:[%s175 + $0x10] sm:$0xff] %v878
      %910 = vst [vmem:[%s175 + $0x18] sm:$0xff] %v904
      %p911 = scmp.lt.s32.totalorder %s14, 1
      %s912 = scalar_select %p911, %s14, 1
      %s913 = smul.addr %s912, 4
      %s914 = smul.addr %s913, 8
      %s915 = scalar_lea.vmem %s3, %s914
      // Predicated region
      $region33: #{swincvs_forward.2} parent=31 // pred_check
        %p916 = pneg %p100
      $region34: #{swincvs_forward.2} parent=31 // pred_check_branch
        %918 = sbr.rel (%p916) target = $region36
      $region35: #{swincvs_forward.2} parent=31 // pred_region
        _
      $region36: #{swincvs_forward.2} parent=31 // pred_fallthru
        _
    $region32: #{swincvs_forward.2} parent=5 // pred_fallthru
      _
    %p919 = scmp.le.s32.totalorder 2, %s9
    // Predicated region
    $region37: #{swincvs_forward.2} parent=5 // pred_check
      %p920 = pneg %p919
    $region38: #{swincvs_forward.2} parent=5 // pred_check_branch
      %922 = sbr.rel (%p920) target = $region40
    $region39: #{swincvs_forward.2} parent=5 // pred_region
      %s923 = ssub.s32 %s9, 2
      // Predicated region
      $region41: #{swincvs_forward.2} parent=39 // pred_check
        %p924 = pneg %p106
      $region42: #{swincvs_forward.2} parent=39 // pred_check_branch
        %926 = sbr.rel (%p924) target = $region44
      $region43: #{swincvs_forward.2} parent=39 // pred_region
        %p927 = scmp.lt.s32.totalorder %s15, 1
        %s928 = scalar_select %p927, %s15, 1
        %s929 = smul.addr %s928, 4
        %s930 = smul.addr %s929, 8
        %s931 = scalar_lea.vmem %s3, %s930
      $region44: #{swincvs_forward.2} parent=39 // pred_fallthru
        _
    $region40: #{swincvs_forward.2} parent=5 // pred_fallthru
      _
  $region6: #{swincvs_forward.2} parent=0 // loop_footer
    %s13 = sadd.s32 1, %s9
  $region7: #{swincvs_forward.2} parent=0 // loop_footer_branch
    %8 = sbr.rel target = $region3
  $region8: #{swincvs_forward.2} parent=0 // loop_exit
    _

// kernel: swincvs_forward.3
$region0: #{swincvs_forward.3}
  #allocation0 [shape = 'u32[]', space=smem, size = 0x4, offset = 0x4, fixed_abs, tag = 'smem constant byte address 0x4 - core index']
  #allocation1 [shape = 'u32[72,128]{1,0:T(1,128)}', space=vmem, size = 0x9000, scoped, tag = 'internal scratch']
  %s0 = inlined_call_operand.vmem [shape: f32[2,8,512], index: 0, kind: input, shape index: {}]
  %s1 = inlined_call_operand.vmem [shape: bf16[128,512], index: 1, kind: input, shape index: {}]
  %s2 = inlined_call_operand.vmem [shape: bf16[2,16,256], index: 2, kind: input, shape index: {}]
  %s3 = inlined_call_operand.vmem [shape: bf16[256,128], index: 3, kind: input, shape index: {}]
  %s4 = inlined_call_operand.vmem [shape: f32[1,128], index: 4, kind: input, shape index: {}]
  %s5 = inlined_call_operand.vmem [shape: bf16[128,128], index: 5, kind: input, shape index: {}]
  %s6 = inlined_call_operand.vmem [shape: f32[1,128], index: 6, kind: input, shape index: {}]
  %s7 = inlined_call_operand.vmem [shape: f32[2,2,128], index: 7, kind: output, shape index: {}]
  %s8 = sld [smem:[#allocation0]]
  $region38: #{swincvs_forward.3} parent=0
    _
  %s10 = ssub.s32 1, %s8
  %s11 = scalar_select 0, %s10, %s8
  // Predicated region
  $region2: #{swincvs_forward.3} parent=0 // pred_check
    _
  $region3: #{swincvs_forward.3} parent=0 // pred_check_branch
    %13 = sbr.rel (0) target = $region5
  $region4: #{swincvs_forward.3} parent=0 // pred_region
    _
  $region5: #{swincvs_forward.3} parent=0 // pred_fallthru
    _
  // Predicated region
  $region6: #{swincvs_forward.3} parent=0 // pred_check
    _
  $region7: #{swincvs_forward.3} parent=0 // pred_check_branch
    %15 = sbr.rel (0) target = $region9
  $region8: #{swincvs_forward.3} parent=0 // pred_region
    _
  $region9: #{swincvs_forward.3} parent=0 // pred_fallthru
    _
  // Predicated region
  $region10: #{swincvs_forward.3} parent=0 // pred_check
    _
  $region11: #{swincvs_forward.3} parent=0 // pred_check_branch
    %17 = sbr.rel (0) target = $region13
  $region12: #{swincvs_forward.3} parent=0 // pred_region
    _
  $region13: #{swincvs_forward.3} parent=0 // pred_fallthru
    _
  // Predicated region
  $region14: #{swincvs_forward.3} parent=0 // pred_check
    _
  $region15: #{swincvs_forward.3} parent=0 // pred_check_branch
    %19 = sbr.rel (0) target = $region17
  $region16: #{swincvs_forward.3} parent=0 // pred_region
    _
  $region17: #{swincvs_forward.3} parent=0 // pred_fallthru
    _
  // Predicated region
  $region18: #{swincvs_forward.3} parent=0 // pred_check
    _
  $region19: #{swincvs_forward.3} parent=0 // pred_check_branch
    %21 = sbr.rel (0) target = $region21
  $region20: #{swincvs_forward.3} parent=0 // pred_region
    _
  $region21: #{swincvs_forward.3} parent=0 // pred_fallthru
    _
  // Predicated region
  $region22: #{swincvs_forward.3} parent=0 // pred_check
    _
  $region23: #{swincvs_forward.3} parent=0 // pred_check_branch
    %23 = sbr.rel (0) target = $region25
  $region24: #{swincvs_forward.3} parent=0 // pred_region
    _
  $region25: #{swincvs_forward.3} parent=0 // pred_fallthru
    _
  // Predicated region
  $region26: #{swincvs_forward.3} parent=0 // pred_check
    _
  $region27: #{swincvs_forward.3} parent=0 // pred_check_branch
    %25 = sbr.rel (0) target = $region29
  $region28: #{swincvs_forward.3} parent=0 // pred_region
    _
  $region29: #{swincvs_forward.3} parent=0 // pred_fallthru
    _
  %v27 = vld [vmem:[%s1] sm:$0xff]
  %v28 = vld [vmem:[%s1 + $0x8] sm:$0xff]
  %v29 = vld [vmem:[%s1 + $0x10] sm:$0xff]
  %v30 = vld [vmem:[%s1 + $0x18] sm:$0xff]
  %v31 = vld [vmem:[%s1 + $0x20] sm:$0xff]
  %v32 = vld [vmem:[%s1 + $0x28] sm:$0xff]
  %v33 = vld [vmem:[%s1 + $0x30] sm:$0xff]
  %v34 = vld [vmem:[%s1 + $0x38] sm:$0xff]
  %v35 = vld [vmem:[%s1 + $0x40] sm:$0xff]
  %v36 = vld [vmem:[%s1 + $0x48] sm:$0xff]
  %v37 = vld [vmem:[%s1 + $0x50] sm:$0xff]
  %v38 = vld [vmem:[%s1 + $0x58] sm:$0xff]
  %v39 = vld [vmem:[%s1 + $0x60] sm:$0xff]
  %v40 = vld [vmem:[%s1 + $0x68] sm:$0xff]
  %v41 = vld [vmem:[%s1 + $0x70] sm:$0xff]
  %v42 = vld [vmem:[%s1 + $0x78] sm:$0xff]
  %v43 = vld [vmem:[%s1 + $0x80] sm:$0xff]
  %v44 = vld [vmem:[%s1 + $0x88] sm:$0xff]
  %v45 = vld [vmem:[%s1 + $0x90] sm:$0xff]
  %v46 = vld [vmem:[%s1 + $0x98] sm:$0xff]
  %v47 = vld [vmem:[%s1 + $0xa0] sm:$0xff]
  %v48 = vld [vmem:[%s1 + $0xa8] sm:$0xff]
  %v49 = vld [vmem:[%s1 + $0xb0] sm:$0xff]
  %v50 = vld [vmem:[%s1 + $0xb8] sm:$0xff]
  %v51 = vld [vmem:[%s1 + $0xc0] sm:$0xff]
  %v52 = vld [vmem:[%s1 + $0xc8] sm:$0xff]
  %v53 = vld [vmem:[%s1 + $0xd0] sm:$0xff]
  %v54 = vld [vmem:[%s1 + $0xd8] sm:$0xff]
  %v55 = vld [vmem:[%s1 + $0xe0] sm:$0xff]
  %v56 = vld [vmem:[%s1 + $0xe8] sm:$0xff]
  %v57 = vld [vmem:[%s1 + $0xf0] sm:$0xff]
  %v58 = vld [vmem:[%s1 + $0xf8] sm:$0xff]
  %v59 = vld [vmem:[%s0] ss:$8 sm:$0xf]
  %s60 = scalar_lea.vmem %s0, 32
  %v61 = vld [vmem:[%s60] ss:$8 sm:$0xf]
  %v94 = vunpack.c.l.b16 %v27
  %v95 = vunpack.c.h.b16 %v27
  %v96 = vunpack.c.l.b16 %v28
  %v97 = vunpack.c.h.b16 %v28
  %v98 = vunpack.c.l.b16 %v29
  %v99 = vunpack.c.h.b16 %v29
  %v100 = vunpack.c.l.b16 %v30
  %v101 = vunpack.c.h.b16 %v30
  %v102 = vunpack.c.l.b16 %v31
  %v103 = vunpack.c.h.b16 %v31
  %v104 = vunpack.c.l.b16 %v32
  %v105 = vunpack.c.h.b16 %v32
  %v106 = vunpack.c.l.b16 %v33
  %v107 = vunpack.c.h.b16 %v33
  %v108 = vunpack.c.l.b16 %v34
  %v109 = vunpack.c.h.b16 %v34
  %v110 = vunpack.c.l.b16 %v35
  %v111 = vunpack.c.h.b16 %v35
  %v112 = vunpack.c.l.b16 %v36
  %v113 = vunpack.c.h.b16 %v36
  %v114 = vunpack.c.l.b16 %v37
  %v115 = vunpack.c.h.b16 %v37
  %v116 = vunpack.c.l.b16 %v38
  %v117 = vunpack.c.h.b16 %v38
  %v118 = vunpack.c.l.b16 %v39
  %v119 = vunpack.c.h.b16 %v39
  %v120 = vunpack.c.l.b16 %v40
  %v121 = vunpack.c.h.b16 %v40
  %v122 = vunpack.c.l.b16 %v41
  %v123 = vunpack.c.h.b16 %v41
  %v124 = vunpack.c.l.b16 %v42
  %v125 = vunpack.c.h.b16 %v42
  %v126 = vunpack.c.l.b16 %v43
  %v127 = vunpack.c.h.b16 %v43
  %v128 = vunpack.c.l.b16 %v44
  %v129 = vunpack.c.h.b16 %v44
  %v130 = vunpack.c.l.b16 %v45
  %v131 = vunpack.c.h.b16 %v45
  %v132 = vunpack.c.l.b16 %v46
  %v133 = vunpack.c.h.b16 %v46
  %v134 = vunpack.c.l.b16 %v47
  %v135 = vunpack.c.h.b16 %v47
  %v136 = vunpack.c.l.b16 %v48
  %v137 = vunpack.c.h.b16 %v48
  %v138 = vunpack.c.l.b16 %v49
  %v139 = vunpack.c.h.b16 %v49
  %v140 = vunpack.c.l.b16 %v50
  %v141 = vunpack.c.h.b16 %v50
  %v142 = vunpack.c.l.b16 %v51
  %v143 = vunpack.c.h.b16 %v51
  %v144 = vunpack.c.l.b16 %v52
  %v145 = vunpack.c.h.b16 %v52
  %v146 = vunpack.c.l.b16 %v53
  %v147 = vunpack.c.h.b16 %v53
  %v148 = vunpack.c.l.b16 %v54
  %v149 = vunpack.c.h.b16 %v54
  %v150 = vunpack.c.l.b16 %v55
  %v151 = vunpack.c.h.b16 %v55
  %v152 = vunpack.c.l.b16 %v56
  %v153 = vunpack.c.h.b16 %v56
  %v154 = vunpack.c.l.b16 %v57
  %v155 = vunpack.c.h.b16 %v57
  %v156 = vunpack.c.l.b16 %v58
  %v157 = vunpack.c.h.b16 %v58
  %v158 = vpack.c.b16 %v98, %v94
  %v159 = vpack.c.b16 %v99, %v95
  %v160 = vpack.c.b16 %v100, %v96
  %v161 = vpack.c.b16 %v101, %v97
  %v162 = vpack.c.b16 %v106, %v102
  %v163 = vpack.c.b16 %v107, %v103
  %v164 = vpack.c.b16 %v108, %v104
  %v165 = vpack.c.b16 %v109, %v105
  %v166 = vpack.c.b16 %v114, %v110
  %v167 = vpack.c.b16 %v115, %v111
  %v168 = vpack.c.b16 %v116, %v112
  %v169 = vpack.c.b16 %v117, %v113
  %v170 = vpack.c.b16 %v122, %v118
  %v171 = vpack.c.b16 %v123, %v119
  %v172 = vpack.c.b16 %v124, %v120
  %v173 = vpack.c.b16 %v125, %v121
  %v174 = vpack.c.b16 %v130, %v126
  %v175 = vpack.c.b16 %v131, %v127
  %v176 = vpack.c.b16 %v132, %v128
  %v177 = vpack.c.b16 %v133, %v129
  %v178 = vpack.c.b16 %v138, %v134
  %v179 = vpack.c.b16 %v139, %v135
  %v180 = vpack.c.b16 %v140, %v136
  %v181 = vpack.c.b16 %v141, %v137
  %v182 = vpack.c.b16 %v146, %v142
  %v183 = vpack.c.b16 %v147, %v143
  %v184 = vpack.c.b16 %v148, %v144
  %v185 = vpack.c.b16 %v149, %v145
  %v186 = vpack.c.b16 %v154, %v150
  %v187 = vpack.c.b16 %v155, %v151
  %v188 = vpack.c.b16 %v156, %v152
  %v189 = vpack.c.b16 %v157, %v153
  %222 = vmatpush.bf16.msra.mxu0 %v186
  %223 = vmatpush.bf16.msra.mxu0 %v182
  %224 = vmatpush.bf16.msra.mxu0 %v178
  %225 = vmatpush.bf16.msra.mxu0 %v174
  %226 = vmatpush.bf16.msra.mxu0 %v170
  %227 = vmatpush.bf16.msra.mxu0 %v166
  %228 = vmatpush.bf16.msra.mxu0 %v162
  %229 = vmatpush.bf16.msra.mxu0 %v158
  %230 = vmatmul.bf16.gmra.mxu0 0
  %v231 = vpop.f32.mrf.mxu0
  %v232 = vadd.f32 0.0, %v231
  %v233 = vpop.f32.mrf.mxu0
  %234 = vdwg.mxu0
  %235 = vmatpush.bf16.msra.mxu0 %v187
  %236 = vmatpush.bf16.msra.mxu0 %v183
  %237 = vmatpush.bf16.msra.mxu0 %v179
  %238 = vmatpush.bf16.msra.mxu0 %v175
  %239 = vmatpush.bf16.msra.mxu0 %v171
  %240 = vmatpush.bf16.msra.mxu0 %v167
  %241 = vmatpush.bf16.msra.mxu0 %v163
  %242 = vmatpush.bf16.msra.mxu0 %v159
  %243 = vmatmul.bf16.gmra.mxu0 0
  %v244 = vpop.f32.mrf.mxu0
  %v245 = vadd.f32 0.0, %v244
  %v246 = vpop.f32.mrf.mxu0
  %247 = vdwg.mxu0
  %248 = vmatpush.bf16.msra.mxu0 %v188
  %249 = vmatpush.bf16.msra.mxu0 %v184
  %250 = vmatpush.bf16.msra.mxu0 %v180
  %251 = vmatpush.bf16.msra.mxu0 %v176
  %252 = vmatpush.bf16.msra.mxu0 %v172
  %253 = vmatpush.bf16.msra.mxu0 %v168
  %254 = vmatpush.bf16.msra.mxu0 %v164
  %255 = vmatpush.bf16.msra.mxu0 %v160
  %256 = vmatmul.bf16.gmra.mxu0 0
  %v257 = vpop.f32.mrf.mxu0
  %v258 = vadd.f32 0.0, %v257
  %v259 = vpop.f32.mrf.mxu0
  %260 = vdwg.mxu0
  %261 = vmatpush.bf16.msra.mxu0 %v189
  %262 = vmatpush.bf16.msra.mxu0 %v185
  %263 = vmatpush.bf16.msra.mxu0 %v181
  %264 = vmatpush.bf16.msra.mxu0 %v177
  %265 = vmatpush.bf16.msra.mxu0 %v173
  %266 = vmatpush.bf16.msra.mxu0 %v169
  %267 = vmatpush.bf16.msra.mxu0 %v165
  %268 = vmatpush.bf16.msra.mxu0 %v161
  %269 = vmatmul.bf16.gmra.mxu0 0
  %v270 = vpop.f32.mrf.mxu0
  %v271 = vadd.f32 0.0, %v270
  %v272 = vpop.f32.mrf.mxu0
  %273 = vdwg.mxu0
  %v278 = vrot.slane %v245, 7
  %v279 = vrot.slane %v258, 6
  %v280 = vrot.slane %v271, 5
  %vm281 = vcmask 1040384
  %v282 = vsel %vm281, %v232, %v278
  %vm283 = vcmask 1042434
  %v284 = vsel %vm283, %v279, %v280
  %vm285 = vcmask 1041408
  %v286 = vsel %vm285, %v282, %v284
  %vm287 = vcmask 1041409
  %v288 = vsel %vm287, %v232, %v278
  %vm289 = vcmask 1043459
  %v290 = vsel %vm289, %v279, %v280
  %vm291 = vcmask 1042433
  %v292 = vsel %vm291, %v288, %v290
  %v293 = vrot.slane %v292, 1
  %v296 = vadd.f32 %v59, %v286
  %v297 = vadd.f32 %v61, %v293
  %v298 = vxor.u32 %v296, 2147483648
  %v299 = vxor.u32 %v297, 2147483648
  %v300 = vmul.f32 %v298, 1.442695
  %v301 = vpow.pop %v300
  %v302 = vmul.f32 %v299, 1.442695
  %v303 = vpow.pop %v302
  %v304 = vadd.f32 %v301, 1.0
  %v305 = vadd.f32 %v303, 1.0
  %v306 = vrcp.pop %v304
  %v307 = vmul.f32 %v304, %v306
  %v308 = vsub.f32 1.0, %v307
  %v309 = vmul.f32 %v306, %v308
  %v310 = vadd.f32 %v306, %v309
  %vm311 = vweird.f32 %v304
  %vm312 = vweird.f32 %v306
  %vm313 = vmor %vm311, %vm312
  %v314 = vsel %vm313, %v306, %v310
  %v315 = vand.u32 2147483647, %v304
  %vm316 = vcmp.eq.f32.partialorder %v315, 8.507059e+37
  %v317 = vand.u32 %v304, 2147483648
  %v318 = vor.u32 1.1754944e-38, %v317
  %v319 = vsel %vm316, %v318, %v314
  %v320 = vmul.f32 1.0, %v319
  %v321 = vrcp.pop %v305
  %v322 = vmul.f32 %v305, %v321
  %v323 = vsub.f32 1.0, %v322
  %v324 = vmul.f32 %v321, %v323
  %v325 = vadd.f32 %v321, %v324
  %vm326 = vweird.f32 %v305
  %vm327 = vweird.f32 %v321
  %vm328 = vmor %vm326, %vm327
  %v329 = vsel %vm328, %v321, %v325
  %v330 = vand.u32 2147483647, %v305
  %vm331 = vcmp.eq.f32.partialorder %v330, 8.507059e+37
  %v332 = vand.u32 %v305, 2147483648
  %v333 = vor.u32 1.1754944e-38, %v332
  %v334 = vsel %vm331, %v333, %v329
  %v335 = vmul.f32 1.0, %v334
  %v338 = vrot.slane %v296, 1
  %v339 = vrot.slane %v297, 1
  %v342 = vxor.u32 %v338, 2147483648
  %v343 = vxor.u32 %v339, 2147483648
  %v344 = vmul.f32 %v342, 1.442695
  %v345 = vpow.pop %v344
  %v346 = vmul.f32 %v343, 1.442695
  %v347 = vpow.pop %v346
  %v348 = vadd.f32 %v345, 1.0
  %v349 = vadd.f32 %v347, 1.0
  %v350 = vrcp.pop %v348
  %v351 = vmul.f32 %v348, %v350
  %v352 = vsub.f32 1.0, %v351
  %v353 = vmul.f32 %v350, %v352
  %v354 = vadd.f32 %v350, %v353
  %vm355 = vweird.f32 %v348
  %vm356 = vweird.f32 %v350
  %vm357 = vmor %vm355, %vm356
  %v358 = vsel %vm357, %v350, %v354
  %v359 = vand.u32 2147483647, %v348
  %vm360 = vcmp.eq.f32.partialorder %v359, 8.507059e+37
  %v361 = vand.u32 %v348, 2147483648
  %v362 = vor.u32 1.1754944e-38, %v361
  %v363 = vsel %vm360, %v362, %v358
  %v364 = vmul.f32 1.0, %v363
  %v365 = vrcp.pop %v349
  %v366 = vmul.f32 %v349, %v365
  %v367 = vsub.f32 1.0, %v366
  %v368 = vmul.f32 %v365, %v367
  %v369 = vadd.f32 %v365, %v368
  %vm370 = vweird.f32 %v349
  %vm371 = vweird.f32 %v365
  %vm372 = vmor %vm370, %vm371
  %v373 = vsel %vm372, %v365, %v369
  %v374 = vand.u32 2147483647, %v349
  %vm375 = vcmp.eq.f32.partialorder %v374, 8.507059e+37
  %v376 = vand.u32 %v349, 2147483648
  %v377 = vor.u32 1.1754944e-38, %v376
  %v378 = vsel %vm375, %v377, %v373
  %v379 = vmul.f32 1.0, %v378
  %v380 = vrot.slane %v296, 2
  %v381 = vrot.slane %v297, 2
  %v384 = vtanh.pop %v380
  %v385 = vtanh.pop %v381
  %v386 = vrot.slane %v296, 3
  %v387 = vrot.slane %v297, 3
  %v390 = vxor.u32 %v386, 2147483648
  %v391 = vxor.u32 %v387, 2147483648
  %v392 = vmul.f32 %v390, 1.442695
  %v393 = vpow.pop %v392
  %v394 = vmul.f32 %v391, 1.442695
  %v395 = vpow.pop %v394
  %v396 = vadd.f32 %v393, 1.0
  %v397 = vadd.f32 %v395, 1.0
  %v398 = vrcp.pop %v396
  %v399 = vmul.f32 %v396, %v398
  %v400 = vsub.f32 1.0, %v399
  %v401 = vmul.f32 %v398, %v400
  %v402 = vadd.f32 %v398, %v401
  %vm403 = vweird.f32 %v396
  %vm404 = vweird.f32 %v398
  %vm405 = vmor %vm403, %vm404
  %v406 = vsel %vm405, %v398, %v402
  %v407 = vand.u32 2147483647, %v396
  %vm408 = vcmp.eq.f32.partialorder %v407, 8.507059e+37
  %v409 = vand.u32 %v396, 2147483648
  %v410 = vor.u32 1.1754944e-38, %v409
  %v411 = vsel %vm408, %v410, %v406
  %v412 = vmul.f32 1.0, %v411
  %v413 = vrcp.pop %v397
  %v414 = vmul.f32 %v397, %v413
  %v415 = vsub.f32 1.0, %v414
  %v416 = vmul.f32 %v413, %v415
  %v417 = vadd.f32 %v413, %v416
  %vm418 = vweird.f32 %v397
  %vm419 = vweird.f32 %v413
  %vm420 = vmor %vm418, %vm419
  %v421 = vsel %vm420, %v413, %v417
  %v422 = vand.u32 2147483647, %v397
  %vm423 = vcmp.eq.f32.partialorder %v422, 8.507059e+37
  %v424 = vand.u32 %v397, 2147483648
  %v425 = vor.u32 1.1754944e-38, %v424
  %v426 = vsel %vm423, %v425, %v421
  %v427 = vmul.f32 1.0, %v426
  %v428 = vmul.f32 %v364, 0.0
  %v429 = vmul.f32 %v379, 0.0
  %v430 = vmul.f32 %v320, %v384
  %v431 = vmul.f32 %v335, %v385
  %v432 = vadd.f32 %v428, %v430
  %v433 = vadd.f32 %v429, %v431
  %v434 = vtanh.pop %v432
  %v435 = vtanh.pop %v433
  %v436 = vmul.f32 %v412, %v434
  %v437 = vmul.f32 %v427, %v435
  %s438 = scalar_lea.vmem %s0, 1
  %v439 = vld [vmem:[%s438] ss:$8 sm:$0xf]
  %s440 = scalar_lea.vmem %s0, 33
  %v441 = vld [vmem:[%s440] ss:$8 sm:$0xf]
  %v442 = vpack.c.bf16 %v436, %v436
  %v443 = vpack.c.bf16 %v437, %v437
  %v446 = vunpack.c.l.b16 %v442
  %v447 = vunpack.c.l.b16 %v443
  %v448 = vrot.slane %v447, 7
  %v449 = vsel %vm287, %v448, %v446
  %v450 = vpack.c.b16 %v449, %v449
  %452 = vmatpush.bf16.msra.mxu0 %v186
  %453 = vmatpush.bf16.msra.mxu0 %v182
  %454 = vmatpush.bf16.msra.mxu0 %v178
  %455 = vmatpush.bf16.msra.mxu0 %v174
  %456 = vmatpush.bf16.msra.mxu0 %v170
  %457 = vmatpush.bf16.msra.mxu0 %v166
  %458 = vmatpush.bf16.msra.mxu0 %v162
  %459 = vmatpush.bf16.msra.mxu0 %v158
  %460 = vmatmul.bf16.gmra.mxu0 %v450
  %v461 = vpop.f32.mrf.mxu0
  %v462 = vadd.f32 0.0, %v461
  %v463 = vpop.f32.mrf.mxu0
  %464 = vdwg.mxu0
  %465 = vmatpush.bf16.msra.mxu0 %v187
  %466 = vmatpush.bf16.msra.mxu0 %v183
  %467 = vmatpush.bf16.msra.mxu0 %v179
  %468 = vmatpush.bf16.msra.mxu0 %v175
  %469 = vmatpush.bf16.msra.mxu0 %v171
  %470 = vmatpush.bf16.msra.mxu0 %v167
  %471 = vmatpush.bf16.msra.mxu0 %v163
  %472 = vmatpush.bf16.msra.mxu0 %v159
  %473 = vmatmul.bf16.gmra.mxu0 %v450
  %v474 = vpop.f32.mrf.mxu0
  %v475 = vadd.f32 0.0, %v474
  %v476 = vpop.f32.mrf.mxu0
  %477 = vdwg.mxu0
  %478 = vmatpush.bf16.msra.mxu0 %v188
  %479 = vmatpush.bf16.msra.mxu0 %v184
  %480 = vmatpush.bf16.msra.mxu0 %v180
  %481 = vmatpush.bf16.msra.mxu0 %v176
  %482 = vmatpush.bf16.msra.mxu0 %v172
  %483 = vmatpush.bf16.msra.mxu0 %v168
  %484 = vmatpush.bf16.msra.mxu0 %v164
  %485 = vmatpush.bf16.msra.mxu0 %v160
  %486 = vmatmul.bf16.gmra.mxu0 %v450
  %v487 = vpop.f32.mrf.mxu0
  %v488 = vadd.f32 0.0, %v487
  %v489 = vpop.f32.mrf.mxu0
  %490 = vdwg.mxu0
  %491 = vmatpush.bf16.msra.mxu0 %v189
  %492 = vmatpush.bf16.msra.mxu0 %v185
  %493 = vmatpush.bf16.msra.mxu0 %v181
  %494 = vmatpush.bf16.msra.mxu0 %v177
  %495 = vmatpush.bf16.msra.mxu0 %v173
  %496 = vmatpush.bf16.msra.mxu0 %v169
  %497 = vmatpush.bf16.msra.mxu0 %v165
  %498 = vmatpush.bf16.msra.mxu0 %v161
  %499 = vmatmul.bf16.gmra.mxu0 %v450
  %v500 = vpop.f32.mrf.mxu0
  %v501 = vadd.f32 0.0, %v500
  %v502 = vpop.f32.mrf.mxu0
  %503 = vdwg.mxu0
  %v508 = vrot.slane %v475, 7
  %v509 = vrot.slane %v488, 6
  %v510 = vrot.slane %v501, 5
  %v511 = vsel %vm281, %v462, %v508
  %v512 = vsel %vm283, %v509, %v510
  %v513 = vsel %vm285, %v511, %v512
  %v514 = vsel %vm287, %v462, %v508
  %v515 = vsel %vm289, %v509, %v510
  %v516 = vsel %vm291, %v514, %v515
  %v517 = vrot.slane %v516, 1
  %v520 = vadd.f32 %v439, %v513
  %v521 = vadd.f32 %v441, %v517
  %v522 = vxor.u32 %v520, 2147483648
  %v523 = vxor.u32 %v521, 2147483648
  %v524 = vmul.f32 %v522, 1.442695
  %v525 = vpow.pop %v524
  %v526 = vmul.f32 %v523, 1.442695
  %v527 = vpow.pop %v526
  %v528 = vadd.f32 %v525, 1.0
  %v529 = vadd.f32 %v527, 1.0
  %v530 = vrcp.pop %v528
  %v531 = vmul.f32 %v528, %v530
  %v532 = vsub.f32 1.0, %v531
  %v533 = vmul.f32 %v530, %v532
  %v534 = vadd.f32 %v530, %v533
  %vm535 = vweird.f32 %v528
  %vm536 = vweird.f32 %v530
  %vm537 = vmor %vm535, %vm536
  %v538 = vsel %vm537, %v530, %v534
  %v539 = vand.u32 2147483647, %v528
  %vm540 = vcmp.eq.f32.partialorder %v539, 8.507059e+37
  %v541 = vand.u32 %v528, 2147483648
  %v542 = vor.u32 1.1754944e-38, %v541
  %v543 = vsel %vm540, %v542, %v538
  %v544 = vmul.f32 1.0, %v543
  %v545 = vrcp.pop %v529
  %v546 = vmul.f32 %v529, %v545
  %v547 = vsub.f32 1.0, %v546
  %v548 = vmul.f32 %v545, %v547
  %v549 = vadd.f32 %v545, %v548
  %vm550 = vweird.f32 %v529
  %vm551 = vweird.f32 %v545
  %vm552 = vmor %vm550, %vm551
  %v553 = vsel %vm552, %v545, %v549
  %v554 = vand.u32 2147483647, %v529
  %vm555 = vcmp.eq.f32.partialorder %v554, 8.507059e+37
  %v556 = vand.u32 %v529, 2147483648
  %v557 = vor.u32 1.1754944e-38, %v556
  %v558 = vsel %vm555, %v557, %v553
  %v559 = vmul.f32 1.0, %v558
  %v562 = vrot.slane %v520, 1
  %v563 = vrot.slane %v521, 1
  %v566 = vxor.u32 %v562, 2147483648
  %v567 = vxor.u32 %v563, 2147483648
  %v568 = vmul.f32 %v566, 1.442695
  %v569 = vpow.pop %v568
  %v570 = vmul.f32 %v567, 1.442695
  %v571 = vpow.pop %v570
  %v572 = vadd.f32 %v569, 1.0
  %v573 = vadd.f32 %v571, 1.0
  %v574 = vrcp.pop %v572
  %v575 = vmul.f32 %v572, %v574
  %v576 = vsub.f32 1.0, %v575
  %v577 = vmul.f32 %v574, %v576
  %v578 = vadd.f32 %v574, %v577
  %vm579 = vweird.f32 %v572
  %vm580 = vweird.f32 %v574
  %vm581 = vmor %vm579, %vm580
  %v582 = vsel %vm581, %v574, %v578
  %v583 = vand.u32 2147483647, %v572
  %vm584 = vcmp.eq.f32.partialorder %v583, 8.507059e+37
  %v585 = vand.u32 %v572, 2147483648
  %v586 = vor.u32 1.1754944e-38, %v585
  %v587 = vsel %vm584, %v586, %v582
  %v588 = vmul.f32 1.0, %v587
  %v589 = vrcp.pop %v573
  %v590 = vmul.f32 %v573, %v589
  %v591 = vsub.f32 1.0, %v590
  %v592 = vmul.f32 %v589, %v591
  %v593 = vadd.f32 %v589, %v592
  %vm594 = vweird.f32 %v573
  %vm595 = vweird.f32 %v589
  %vm596 = vmor %vm594, %vm595
  %v597 = vsel %vm596, %v589, %v593
  %v598 = vand.u32 2147483647, %v573
  %vm599 = vcmp.eq.f32.partialorder %v598, 8.507059e+37
  %v600 = vand.u32 %v573, 2147483648
  %v601 = vor.u32 1.1754944e-38, %v600
  %v602 = vsel %vm599, %v601, %v597
  %v603 = vmul.f32 1.0, %v602
  %v604 = vrot.slane %v520, 2
  %v605 = vrot.slane %v521, 2
  %v608 = vtanh.pop %v604
  %v609 = vtanh.pop %v605
  %v610 = vrot.slane %v520, 3
  %v611 = vrot.slane %v521, 3
  %v614 = vxor.u32 %v610, 2147483648
  %v615 = vxor.u32 %v611, 2147483648
  %v616 = vmul.f32 %v614, 1.442695
  %v617 = vpow.pop %v616
  %v618 = vmul.f32 %v615, 1.442695
  %v619 = vpow.pop %v618
  %v620 = vadd.f32 %v617, 1.0
  %v621 = vadd.f32 %v619, 1.0
  %v622 = vrcp.pop %v620
  %v623 = vmul.f32 %v620, %v622
  %v624 = vsub.f32 1.0, %v623
  %v625 = vmul.f32 %v622, %v624
  %v626 = vadd.f32 %v622, %v625
  %vm627 = vweird.f32 %v620
  %vm628 = vweird.f32 %v622
  %vm629 = vmor %vm627, %vm628
  %v630 = vsel %vm629, %v622, %v626
  %v631 = vand.u32 2147483647, %v620
  %vm632 = vcmp.eq.f32.partialorder %v631, 8.507059e+37
  %v633 = vand.u32 %v620, 2147483648
  %v634 = vor.u32 1.1754944e-38, %v633
  %v635 = vsel %vm632, %v634, %v630
  %v636 = vmul.f32 1.0, %v635
  %v637 = vrcp.pop %v621
  %v638 = vmul.f32 %v621, %v637
  %v639 = vsub.f32 1.0, %v638
  %v640 = vmul.f32 %v637, %v639
  %v641 = vadd.f32 %v637, %v640
  %vm642 = vweird.f32 %v621
  %vm643 = vweird.f32 %v637
  %vm644 = vmor %vm642, %vm643
  %v645 = vsel %vm644, %v637, %v641
  %v646 = vand.u32 2147483647, %v621
  %vm647 = vcmp.eq.f32.partialorder %v646, 8.507059e+37
  %v648 = vand.u32 %v621, 2147483648
  %v649 = vor.u32 1.1754944e-38, %v648
  %v650 = vsel %vm647, %v649, %v645
  %v651 = vmul.f32 1.0, %v650
  %v652 = vmul.f32 %v588, %v432
  %v653 = vmul.f32 %v603, %v433
  %v654 = vmul.f32 %v544, %v608
  %v655 = vmul.f32 %v559, %v609
  %v656 = vadd.f32 %v652, %v654
  %v657 = vadd.f32 %v653, %v655
  %v658 = vtanh.pop %v656
  %v659 = vtanh.pop %v657
  %v660 = vmul.f32 %v636, %v658
  %v661 = vmul.f32 %v651, %v659
  %s662 = scalar_lea.vmem %s0, 2
  %v663 = vld [vmem:[%s662] ss:$8 sm:$0xf]
  %s664 = scalar_lea.vmem %s0, 34
  %v665 = vld [vmem:[%s664] ss:$8 sm:$0xf]
  %v666 = vpack.c.bf16 %v660, %v660
  %v667 = vpack.c.bf16 %v661, %v661
  %v670 = vunpack.c.l.b16 %v666
  %v671 = vunpack.c.l.b16 %v667
  %v672 = vrot.slane %v671, 7
  %v673 = vsel %vm287, %v672, %v670
  %v674 = vpack.c.b16 %v673, %v673
  %676 = vmatpush.bf16.msra.mxu0 %v186
  %677 = vmatpush.bf16.msra.mxu0 %v182
  %678 = vmatpush.bf16.msra.mxu0 %v178
  %679 = vmatpush.bf16.msra.mxu0 %v174
  %680 = vmatpush.bf16.msra.mxu0 %v170
  %681 = vmatpush.bf16.msra.mxu0 %v166
  %682 = vmatpush.bf16.msra.mxu0 %v162
  %683 = vmatpush.bf16.msra.mxu0 %v158
  %684 = vmatmul.bf16.gmra.mxu0 %v674
  %v685 = vpop.f32.mrf.mxu0
  %v686 = vadd.f32 0.0, %v685
  %v687 = vpop.f32.mrf.mxu0
  %688 = vdwg.mxu0
  %689 = vmatpush.bf16.msra.mxu0 %v187
  %690 = vmatpush.bf16.msra.mxu0 %v183
  %691 = vmatpush.bf16.msra.mxu0 %v179
  %692 = vmatpush.bf16.msra.mxu0 %v175
  %693 = vmatpush.bf16.msra.mxu0 %v171
  %694 = vmatpush.bf16.msra.mxu0 %v167
  %695 = vmatpush.bf16.msra.mxu0 %v163
  %696 = vmatpush.bf16.msra.mxu0 %v159
  %697 = vmatmul.bf16.gmra.mxu0 %v674
  %v698 = vpop.f32.mrf.mxu0
  %v699 = vadd.f32 0.0, %v698
  %v700 = vpop.f32.mrf.mxu0
  %701 = vdwg.mxu0
  %702 = vmatpush.bf16.msra.mxu0 %v188
  %703 = vmatpush.bf16.msra.mxu0 %v184
  %704 = vmatpush.bf16.msra.mxu0 %v180
  %705 = vmatpush.bf16.msra.mxu0 %v176
  %706 = vmatpush.bf16.msra.mxu0 %v172
  %707 = vmatpush.bf16.msra.mxu0 %v168
  %708 = vmatpush.bf16.msra.mxu0 %v164
  %709 = vmatpush.bf16.msra.mxu0 %v160
  %710 = vmatmul.bf16.gmra.mxu0 %v674
  %v711 = vpop.f32.mrf.mxu0
  %v712 = vadd.f32 0.0, %v711
  %v713 = vpop.f32.mrf.mxu0
  %714 = vdwg.mxu0
  %715 = vmatpush.bf16.msra.mxu0 %v189
  %716 = vmatpush.bf16.msra.mxu0 %v185
  %717 = vmatpush.bf16.msra.mxu0 %v181
  %718 = vmatpush.bf16.msra.mxu0 %v177
  %719 = vmatpush.bf16.msra.mxu0 %v173
  %720 = vmatpush.bf16.msra.mxu0 %v169
  %721 = vmatpush.bf16.msra.mxu0 %v165
  %722 = vmatpush.bf16.msra.mxu0 %v161
  %723 = vmatmul.bf16.gmra.mxu0 %v674
  %v724 = vpop.f32.mrf.mxu0
  %v725 = vadd.f32 0.0, %v724
  %v726 = vpop.f32.mrf.mxu0
  %727 = vdwg.mxu0
  %v732 = vrot.slane %v699, 7
  %v733 = vrot.slane %v712, 6
  %v734 = vrot.slane %v725, 5
  %v735 = vsel %vm281, %v686, %v732
  %v736 = vsel %vm283, %v733, %v734
  %v737 = vsel %vm285, %v735, %v736
  %v738 = vsel %vm287, %v686, %v732
  %v739 = vsel %vm289, %v733, %v734
  %v740 = vsel %vm291, %v738, %v739
  %v741 = vrot.slane %v740, 1
  %v744 = vadd.f32 %v663, %v737
  %v745 = vadd.f32 %v665, %v741
  %v746 = vxor.u32 %v744, 2147483648
  %v747 = vxor.u32 %v745, 2147483648
  %v748 = vmul.f32 %v746, 1.442695
  %v749 = vpow.pop %v748
  %v750 = vmul.f32 %v747, 1.442695
  %v751 = vpow.pop %v750
  %v752 = vadd.f32 %v749, 1.0
  %v753 = vadd.f32 %v751, 1.0
  %v754 = vrcp.pop %v752
  %v755 = vmul.f32 %v752, %v754
  %v756 = vsub.f32 1.0, %v755
  %v757 = vmul.f32 %v754, %v756
  %v758 = vadd.f32 %v754, %v757
  %vm759 = vweird.f32 %v752
  %vm760 = vweird.f32 %v754
  %vm761 = vmor %vm759, %vm760
  %v762 = vsel %vm761, %v754, %v758
  %v763 = vand.u32 2147483647, %v752
  %vm764 = vcmp.eq.f32.partialorder %v763, 8.507059e+37
  %v765 = vand.u32 %v752, 2147483648
  %v766 = vor.u32 1.1754944e-38, %v765
  %v767 = vsel %vm764, %v766, %v762
  %v768 = vmul.f32 1.0, %v767
  %v769 = vrcp.pop %v753
  %v770 = vmul.f32 %v753, %v769
  %v771 = vsub.f32 1.0, %v770
  %v772 = vmul.f32 %v769, %v771
  %v773 = vadd.f32 %v769, %v772
  %vm774 = vweird.f32 %v753
  %vm775 = vweird.f32 %v769
  %vm776 = vmor %vm774, %vm775
  %v777 = vsel %vm776, %v769, %v773
  %v778 = vand.u32 2147483647, %v753
  %vm779 = vcmp.eq.f32.partialorder %v778, 8.507059e+37
  %v780 = vand.u32 %v753, 2147483648
  %v781 = vor.u32 1.1754944e-38, %v780
  %v782 = vsel %vm779, %v781, %v777
  %v783 = vmul.f32 1.0, %v782
  %v786 = vrot.slane %v744, 1
  %v787 = vrot.slane %v745, 1
  %v790 = vxor.u32 %v786, 2147483648
  %v791 = vxor.u32 %v787, 2147483648
  %v792 = vmul.f32 %v790, 1.442695
  %v793 = vpow.pop %v792
  %v794 = vmul.f32 %v791, 1.442695
  %v795 = vpow.pop %v794
  %v796 = vadd.f32 %v793, 1.0
  %v797 = vadd.f32 %v795, 1.0
  %v798 = vrcp.pop %v796
  %v799 = vmul.f32 %v796, %v798
  %v800 = vsub.f32 1.0, %v799
  %v801 = vmul.f32 %v798, %v800
  %v802 = vadd.f32 %v798, %v801
  %vm803 = vweird.f32 %v796
  %vm804 = vweird.f32 %v798
  %vm805 = vmor %vm803, %vm804
  %v806 = vsel %vm805, %v798, %v802
  %v807 = vand.u32 2147483647, %v796
  %vm808 = vcmp.eq.f32.partialorder %v807, 8.507059e+37
  %v809 = vand.u32 %v796, 2147483648
  %v810 = vor.u32 1.1754944e-38, %v809
  %v811 = vsel %vm808, %v810, %v806
  %v812 = vmul.f32 1.0, %v811
  %v813 = vrcp.pop %v797
  %v814 = vmul.f32 %v797, %v813
  %v815 = vsub.f32 1.0, %v814
  %v816 = vmul.f32 %v813, %v815
  %v817 = vadd.f32 %v813, %v816
  %vm818 = vweird.f32 %v797
  %vm819 = vweird.f32 %v813
  %vm820 = vmor %vm818, %vm819
  %v821 = vsel %vm820, %v813, %v817
  %v822 = vand.u32 2147483647, %v797
  %vm823 = vcmp.eq.f32.partialorder %v822, 8.507059e+37
  %v824 = vand.u32 %v797, 2147483648
  %v825 = vor.u32 1.1754944e-38, %v824
  %v826 = vsel %vm823, %v825, %v821
  %v827 = vmul.f32 1.0, %v826
  %v828 = vrot.slane %v744, 2
  %v829 = vrot.slane %v745, 2
  %v832 = vtanh.pop %v828
  %v833 = vtanh.pop %v829
  %v834 = vrot.slane %v744, 3
  %v835 = vrot.slane %v745, 3
  %v838 = vxor.u32 %v834, 2147483648
  %v839 = vxor.u32 %v835, 2147483648
  %v840 = vmul.f32 %v838, 1.442695
  %v841 = vpow.pop %v840
  %v842 = vmul.f32 %v839, 1.442695
  %v843 = vpow.pop %v842
  %v844 = vadd.f32 %v841, 1.0
  %v845 = vadd.f32 %v843, 1.0
  %v846 = vrcp.pop %v844
  %v847 = vmul.f32 %v844, %v846
  %v848 = vsub.f32 1.0, %v847
  %v849 = vmul.f32 %v846, %v848
  %v850 = vadd.f32 %v846, %v849
  %vm851 = vweird.f32 %v844
  %vm852 = vweird.f32 %v846
  %vm853 = vmor %vm851, %vm852
  %v854 = vsel %vm853, %v846, %v850
  %v855 = vand.u32 2147483647, %v844
  %vm856 = vcmp.eq.f32.partialorder %v855, 8.507059e+37
  %v857 = vand.u32 %v844, 2147483648
  %v858 = vor.u32 1.1754944e-38, %v857
  %v859 = vsel %vm856, %v858, %v854
  %v860 = vmul.f32 1.0, %v859
  %v861 = vrcp.pop %v845
  %v862 = vmul.f32 %v845, %v861
  %v863 = vsub.f32 1.0, %v862
  %v864 = vmul.f32 %v861, %v863
  %v865 = vadd.f32 %v861, %v864
  %vm866 = vweird.f32 %v845
  %vm867 = vweird.f32 %v861
  %vm868 = vmor %vm866, %vm867
  %v869 = vsel %vm868, %v861, %v865
  %v870 = vand.u32 2147483647, %v845
  %vm871 = vcmp.eq.f32.partialorder %v870, 8.507059e+37
  %v872 = vand.u32 %v845, 2147483648
  %v873 = vor.u32 1.1754944e-38, %v872
  %v874 = vsel %vm871, %v873, %v869
  %v875 = vmul.f32 1.0, %v874
  %v876 = vmul.f32 %v812, %v656
  %v877 = vmul.f32 %v827, %v657
  %v878 = vmul.f32 %v768, %v832
  %v879 = vmul.f32 %v783, %v833
  %v880 = vadd.f32 %v876, %v878
  %v881 = vadd.f32 %v877, %v879
  %v882 = vtanh.pop %v880
  %v883 = vtanh.pop %v881
  %v884 = vmul.f32 %v860, %v882
  %v885 = vmul.f32 %v875, %v883
  %s886 = scalar_lea.vmem %s0, 3
  %v887 = vld [vmem:[%s886] ss:$8 sm:$0xf]
  %s888 = scalar_lea.vmem %s0, 35
  %v889 = vld [vmem:[%s888] ss:$8 sm:$0xf]
  %v890 = vpack.c.bf16 %v884, %v884
  %v891 = vpack.c.bf16 %v885, %v885
  %v894 = vunpack.c.l.b16 %v890
  %v895 = vunpack.c.l.b16 %v891
  %v896 = vrot.slane %v895, 7
  %v897 = vsel %vm287, %v896, %v894
  %v898 = vpack.c.b16 %v897, %v897
  %900 = vmatpush.bf16.msra.mxu0 %v186
  %901 = vmatpush.bf16.msra.mxu0 %v182
  %902 = vmatpush.bf16.msra.mxu0 %v178
  %903 = vmatpush.bf16.msra.mxu0 %v174
  %904 = vmatpush.bf16.msra.mxu0 %v170
  %905 = vmatpush.bf16.msra.mxu0 %v166
  %906 = vmatpush.bf16.msra.mxu0 %v162
  %907 = vmatpush.bf16.msra.mxu0 %v158
  %908 = vmatmul.bf16.gmra.mxu0 %v898
  %v909 = vpop.f32.mrf.mxu0
  %v910 = vadd.f32 0.0, %v909
  %v911 = vpop.f32.mrf.mxu0
  %912 = vdwg.mxu0
  %913 = vmatpush.bf16.msra.mxu0 %v187
  %914 = vmatpush.bf16.msra.mxu0 %v183
  %915 = vmatpush.bf16.msra.mxu0 %v179
  %916 = vmatpush.bf16.msra.mxu0 %v175
  %917 = vmatpush.bf16.msra.mxu0 %v171
  %918 = vmatpush.bf16.msra.mxu0 %v167
  %919 = vmatpush.bf16.msra.mxu0 %v163
  %920 = vmatpush.bf16.msra.mxu0 %v159
  %921 = vmatmul.bf16.gmra.mxu0 %v898
  %v922 = vpop.f32.mrf.mxu0
  %v923 = vadd.f32 0.0, %v922
  %v924 = vpop.f32.mrf.mxu0
  %925 = vdwg.mxu0
  %926 = vmatpush.bf16.msra.mxu0 %v188
  %927 = vmatpush.bf16.msra.mxu0 %v184
  %928 = vmatpush.bf16.msra.mxu0 %v180
  %929 = vmatpush.bf16.msra.mxu0 %v176
  %930 = vmatpush.bf16.msra.mxu0 %v172
  %931 = vmatpush.bf16.msra.mxu0 %v168
  %932 = vmatpush.bf16.msra.mxu0 %v164
  %933 = vmatpush.bf16.msra.mxu0 %v160
  %934 = vmatmul.bf16.gmra.mxu0 %v898
  %v935 = vpop.f32.mrf.mxu0
  %v936 = vadd.f32 0.0, %v935
  %v937 = vpop.f32.mrf.mxu0
  %938 = vdwg.mxu0
  %939 = vmatpush.bf16.msra.mxu0 %v189
  %940 = vmatpush.bf16.msra.mxu0 %v185
  %941 = vmatpush.bf16.msra.mxu0 %v181
  %942 = vmatpush.bf16.msra.mxu0 %v177
  %943 = vmatpush.bf16.msra.mxu0 %v173
  %944 = vmatpush.bf16.msra.mxu0 %v169
  %945 = vmatpush.bf16.msra.mxu0 %v165
  %946 = vmatpush.bf16.msra.mxu0 %v161
  %947 = vmatmul.bf16.gmra.mxu0 %v898
  %v948 = vpop.f32.mrf.mxu0
  %v949 = vadd.f32 0.0, %v948
  %v950 = vpop.f32.mrf.mxu0
  %951 = vdwg.mxu0
  %v956 = vrot.slane %v923, 7
  %v957 = vrot.slane %v936, 6
  %v958 = vrot.slane %v949, 5
  %v959 = vsel %vm281, %v910, %v956
  %v960 = vsel %vm283, %v957, %v958
  %v961 = vsel %vm285, %v959, %v960
  %v962 = vsel %vm287, %v910, %v956
  %v963 = vsel %vm289, %v957, %v958
  %v964 = vsel %vm291, %v962, %v963
  %v965 = vrot.slane %v964, 1
  %v968 = vadd.f32 %v887, %v961
  %v969 = vadd.f32 %v889, %v965
  %v970 = vxor.u32 %v968, 2147483648
  %v971 = vxor.u32 %v969, 2147483648
  %v972 = vmul.f32 %v970, 1.442695
  %v973 = vpow.pop %v972
  %v974 = vmul.f32 %v971, 1.442695
  %v975 = vpow.pop %v974
  %v976 = vadd.f32 %v973, 1.0
  %v977 = vadd.f32 %v975, 1.0
  %v978 = vrcp.pop %v976
  %v979 = vmul.f32 %v976, %v978
  %v980 = vsub.f32 1.0, %v979
  %v981 = vmul.f32 %v978, %v980
  %v982 = vadd.f32 %v978, %v981
  %vm983 = vweird.f32 %v976
  %vm984 = vweird.f32 %v978
  %vm985 = vmor %vm983, %vm984
  %v986 = vsel %vm985, %v978, %v982
  %v987 = vand.u32 2147483647, %v976
  %vm988 = vcmp.eq.f32.partialorder %v987, 8.507059e+37
  %v989 = vand.u32 %v976, 2147483648
  %v990 = vor.u32 1.1754944e-38, %v989
  %v991 = vsel %vm988, %v990, %v986
  %v992 = vmul.f32 1.0, %v991
  %v993 = vrcp.pop %v977
  %v994 = vmul.f32 %v977, %v993
  %v995 = vsub.f32 1.0, %v994
  %v996 = vmul.f32 %v993, %v995
  %v997 = vadd.f32 %v993, %v996
  %vm998 = vweird.f32 %v977
  %vm999 = vweird.f32 %v993
  %vm1000 = vmor %vm998, %vm999
  %v1001 = vsel %vm1000, %v993, %v997
  %v1002 = vand.u32 2147483647, %v977
  %vm1003 = vcmp.eq.f32.partialorder %v1002, 8.507059e+37
  %v1004 = vand.u32 %v977, 2147483648
  %v1005 = vor.u32 1.1754944e-38, %v1004
  %v1006 = vsel %vm1003, %v1005, %v1001
  %v1007 = vmul.f32 1.0, %v1006
  %v1010 = vrot.slane %v968, 1
  %v1011 = vrot.slane %v969, 1
  %v1014 = vxor.u32 %v1010, 2147483648
  %v1015 = vxor.u32 %v1011, 2147483648
  %v1016 = vmul.f32 %v1014, 1.442695
  %v1017 = vpow.pop %v1016
  %v1018 = vmul.f32 %v1015, 1.442695
  %v1019 = vpow.pop %v1018
  %v1020 = vadd.f32 %v1017, 1.0
  %v1021 = vadd.f32 %v1019, 1.0
  %v1022 = vrcp.pop %v1020
  %v1023 = vmul.f32 %v1020, %v1022
  %v1024 = vsub.f32 1.0, %v1023
  %v1025 = vmul.f32 %v1022, %v1024
  %v1026 = vadd.f32 %v1022, %v1025
  %vm1027 = vweird.f32 %v1020
  %vm1028 = vweird.f32 %v1022
  %vm1029 = vmor %vm1027, %vm1028
  %v1030 = vsel %vm1029, %v1022, %v1026
  %v1031 = vand.u32 2147483647, %v1020
  %vm1032 = vcmp.eq.f32.partialorder %v1031, 8.507059e+37
  %v1033 = vand.u32 %v1020, 2147483648
  %v1034 = vor.u32 1.1754944e-38, %v1033
  %v1035 = vsel %vm1032, %v1034, %v1030
  %v1036 = vmul.f32 1.0, %v1035
  %v1037 = vrcp.pop %v1021
  %v1038 = vmul.f32 %v1021, %v1037
  %v1039 = vsub.f32 1.0, %v1038
  %v1040 = vmul.f32 %v1037, %v1039
  %v1041 = vadd.f32 %v1037, %v1040
  %vm1042 = vweird.f32 %v1021
  %vm1043 = vweird.f32 %v1037
  %vm1044 = vmor %vm1042, %vm1043
  %v1045 = vsel %vm1044, %v1037, %v1041
  %v1046 = vand.u32 2147483647, %v1021
  %vm1047 = vcmp.eq.f32.partialorder %v1046, 8.507059e+37
  %v1048 = vand.u32 %v1021, 2147483648
  %v1049 = vor.u32 1.1754944e-38, %v1048
  %v1050 = vsel %vm1047, %v1049, %v1045
  %v1051 = vmul.f32 1.0, %v1050
  %v1052 = vrot.slane %v968, 2
  %v1053 = vrot.slane %v969, 2
  %v1056 = vtanh.pop %v1052
  %v1057 = vtanh.pop %v1053
  %v1058 = vrot.slane %v968, 3
  %v1059 = vrot.slane %v969, 3
  %v1062 = vxor.u32 %v1058, 2147483648
  %v1063 = vxor.u32 %v1059, 2147483648
  %v1064 = vmul.f32 %v1062, 1.442695
  %v1065 = vpow.pop %v1064
  %v1066 = vmul.f32 %v1063, 1.442695
  %v1067 = vpow.pop %v1066
  %v1068 = vadd.f32 %v1065, 1.0
  %v1069 = vadd.f32 %v1067, 1.0
  %v1070 = vrcp.pop %v1068
  %v1071 = vmul.f32 %v1068, %v1070
  %v1072 = vsub.f32 1.0, %v1071
  %v1073 = vmul.f32 %v1070, %v1072
  %v1074 = vadd.f32 %v1070, %v1073
  %vm1075 = vweird.f32 %v1068
  %vm1076 = vweird.f32 %v1070
  %vm1077 = vmor %vm1075, %vm1076
  %v1078 = vsel %vm1077, %v1070, %v1074
  %v1079 = vand.u32 2147483647, %v1068
  %vm1080 = vcmp.eq.f32.partialorder %v1079, 8.507059e+37
  %v1081 = vand.u32 %v1068, 2147483648
  %v1082 = vor.u32 1.1754944e-38, %v1081
  %v1083 = vsel %vm1080, %v1082, %v1078
  %v1084 = vmul.f32 1.0, %v1083
  %v1085 = vrcp.pop %v1069
  %v1086 = vmul.f32 %v1069, %v1085
  %v1087 = vsub.f32 1.0, %v1086
  %v1088 = vmul.f32 %v1085, %v1087
  %v1089 = vadd.f32 %v1085, %v1088
  %vm1090 = vweird.f32 %v1069
  %vm1091 = vweird.f32 %v1085
  %vm1092 = vmor %vm1090, %vm1091
  %v1093 = vsel %vm1092, %v1085, %v1089
  %v1094 = vand.u32 2147483647, %v1069
  %vm1095 = vcmp.eq.f32.partialorder %v1094, 8.507059e+37
  %v1096 = vand.u32 %v1069, 2147483648
  %v1097 = vor.u32 1.1754944e-38, %v1096
  %v1098 = vsel %vm1095, %v1097, %v1093
  %v1099 = vmul.f32 1.0, %v1098
  %v1100 = vmul.f32 %v1036, %v880
  %v1101 = vmul.f32 %v1051, %v881
  %v1102 = vmul.f32 %v992, %v1056
  %v1103 = vmul.f32 %v1007, %v1057
  %v1104 = vadd.f32 %v1100, %v1102
  %v1105 = vadd.f32 %v1101, %v1103
  %v1106 = vtanh.pop %v1104
  %v1107 = vtanh.pop %v1105
  %v1108 = vmul.f32 %v1084, %v1106
  %v1109 = vmul.f32 %v1099, %v1107
  %s1110 = scalar_lea.vmem %s0, 4
  %v1111 = vld [vmem:[%s1110] ss:$8 sm:$0xf]
  %s1112 = scalar_lea.vmem %s0, 36
  %v1113 = vld [vmem:[%s1112] ss:$8 sm:$0xf]
  %v1114 = vpack.c.bf16 %v1108, %v1108
  %v1115 = vpack.c.bf16 %v1109, %v1109
  %v1118 = vunpack.c.l.b16 %v1114
  %v1119 = vunpack.c.l.b16 %v1115
  %v1120 = vrot.slane %v1119, 7
  %v1121 = vsel %vm287, %v1120, %v1118
  %v1122 = vpack.c.b16 %v1121, %v1121
  %1124 = vmatpush.bf16.msra.mxu0 %v186
  %1125 = vmatpush.bf16.msra.mxu0 %v182
  %1126 = vmatpush.bf16.msra.mxu0 %v178
  %1127 = vmatpush.bf16.msra.mxu0 %v174
  %1128 = vmatpush.bf16.msra.mxu0 %v170
  %1129 = vmatpush.bf16.msra.mxu0 %v166
  %1130 = vmatpush.bf16.msra.mxu0 %v162
  %1131 = vmatpush.bf16.msra.mxu0 %v158
  %1132 = vmatmul.bf16.gmra.mxu0 %v1122
  %v1133 = vpop.f32.mrf.mxu0
  %v1134 = vadd.f32 0.0, %v1133
  %v1135 = vpop.f32.mrf.mxu0
  %1136 = vdwg.mxu0
  %1137 = vmatpush.bf16.msra.mxu0 %v187
  %1138 = vmatpush.bf16.msra.mxu0 %v183
  %1139 = vmatpush.bf16.msra.mxu0 %v179
  %1140 = vmatpush.bf16.msra.mxu0 %v175
  %1141 = vmatpush.bf16.msra.mxu0 %v171
  %1142 = vmatpush.bf16.msra.mxu0 %v167
  %1143 = vmatpush.bf16.msra.mxu0 %v163
  %1144 = vmatpush.bf16.msra.mxu0 %v159
  %1145 = vmatmul.bf16.gmra.mxu0 %v1122
  %v1146 = vpop.f32.mrf.mxu0
  %v1147 = vadd.f32 0.0, %v1146
  %v1148 = vpop.f32.mrf.mxu0
  %1149 = vdwg.mxu0
  %1150 = vmatpush.bf16.msra.mxu0 %v188
  %1151 = vmatpush.bf16.msra.mxu0 %v184
  %1152 = vmatpush.bf16.msra.mxu0 %v180
  %1153 = vmatpush.bf16.msra.mxu0 %v176
  %1154 = vmatpush.bf16.msra.mxu0 %v172
  %1155 = vmatpush.bf16.msra.mxu0 %v168
  %1156 = vmatpush.bf16.msra.mxu0 %v164
  %1157 = vmatpush.bf16.msra.mxu0 %v160
  %1158 = vmatmul.bf16.gmra.mxu0 %v1122
  %v1159 = vpop.f32.mrf.mxu0
  %v1160 = vadd.f32 0.0, %v1159
  %v1161 = vpop.f32.mrf.mxu0
  %1162 = vdwg.mxu0
  %1163 = vmatpush.bf16.msra.mxu0 %v189
  %1164 = vmatpush.bf16.msra.mxu0 %v185
  %1165 = vmatpush.bf16.msra.mxu0 %v181
  %1166 = vmatpush.bf16.msra.mxu0 %v177
  %1167 = vmatpush.bf16.msra.mxu0 %v173
  %1168 = vmatpush.bf16.msra.mxu0 %v169
  %1169 = vmatpush.bf16.msra.mxu0 %v165
  %1170 = vmatpush.bf16.msra.mxu0 %v161
  %1171 = vmatmul.bf16.gmra.mxu0 %v1122
  %v1172 = vpop.f32.mrf.mxu0
  %v1173 = vadd.f32 0.0, %v1172
  %v1174 = vpop.f32.mrf.mxu0
  %1175 = vdwg.mxu0
  %v1180 = vrot.slane %v1147, 7
  %v1181 = vrot.slane %v1160, 6
  %v1182 = vrot.slane %v1173, 5
  %v1183 = vsel %vm281, %v1134, %v1180
  %v1184 = vsel %vm283, %v1181, %v1182
  %v1185 = vsel %vm285, %v1183, %v1184
  %v1186 = vsel %vm287, %v1134, %v1180
  %v1187 = vsel %vm289, %v1181, %v1182
  %v1188 = vsel %vm291, %v1186, %v1187
  %v1189 = vrot.slane %v1188, 1
  %v1192 = vadd.f32 %v1111, %v1185
  %v1193 = vadd.f32 %v1113, %v1189
  %v1194 = vxor.u32 %v1192, 2147483648
  %v1195 = vxor.u32 %v1193, 2147483648
  %v1196 = vmul.f32 %v1194, 1.442695
  %v1197 = vpow.pop %v1196
  %v1198 = vmul.f32 %v1195, 1.442695
  %v1199 = vpow.pop %v1198
  %v1200 = vadd.f32 %v1197, 1.0
  %v1201 = vadd.f32 %v1199, 1.0
  %v1202 = vrcp.pop %v1200
  %v1203 = vmul.f32 %v1200, %v1202
  %v1204 = vsub.f32 1.0, %v1203
  %v1205 = vmul.f32 %v1202, %v1204
  %v1206 = vadd.f32 %v1202, %v1205
  %vm1207 = vweird.f32 %v1200
  %vm1208 = vweird.f32 %v1202
  %vm1209 = vmor %vm1207, %vm1208
  %v1210 = vsel %vm1209, %v1202, %v1206
  %v1211 = vand.u32 2147483647, %v1200
  %vm1212 = vcmp.eq.f32.partialorder %v1211, 8.507059e+37
  %v1213 = vand.u32 %v1200, 2147483648
  %v1214 = vor.u32 1.1754944e-38, %v1213
  %v1215 = vsel %vm1212, %v1214, %v1210
  %v1216 = vmul.f32 1.0, %v1215
  %v1217 = vrcp.pop %v1201
  %v1218 = vmul.f32 %v1201, %v1217
  %v1219 = vsub.f32 1.0, %v1218
  %v1220 = vmul.f32 %v1217, %v1219
  %v1221 = vadd.f32 %v1217, %v1220
  %vm1222 = vweird.f32 %v1201
  %vm1223 = vweird.f32 %v1217
  %vm1224 = vmor %vm1222, %vm1223
  %v1225 = vsel %vm1224, %v1217, %v1221
  %v1226 = vand.u32 2147483647, %v1201
  %vm1227 = vcmp.eq.f32.partialorder %v1226, 8.507059e+37
  %v1228 = vand.u32 %v1201, 2147483648
  %v1229 = vor.u32 1.1754944e-38, %v1228
  %v1230 = vsel %vm1227, %v1229, %v1225
  %v1231 = vmul.f32 1.0, %v1230
  %v1234 = vrot.slane %v1192, 1
  %v1235 = vrot.slane %v1193, 1
  %v1238 = vxor.u32 %v1234, 2147483648
  %v1239 = vxor.u32 %v1235, 2147483648
  %v1240 = vmul.f32 %v1238, 1.442695
  %v1241 = vpow.pop %v1240
  %v1242 = vmul.f32 %v1239, 1.442695
  %v1243 = vpow.pop %v1242
  %v1244 = vadd.f32 %v1241, 1.0
  %v1245 = vadd.f32 %v1243, 1.0
  %v1246 = vrcp.pop %v1244
  %v1247 = vmul.f32 %v1244, %v1246
  %v1248 = vsub.f32 1.0, %v1247
  %v1249 = vmul.f32 %v1246, %v1248
  %v1250 = vadd.f32 %v1246, %v1249
  %vm1251 = vweird.f32 %v1244
  %vm1252 = vweird.f32 %v1246
  %vm1253 = vmor %vm1251, %vm1252
  %v1254 = vsel %vm1253, %v1246, %v1250
  %v1255 = vand.u32 2147483647, %v1244
  %vm1256 = vcmp.eq.f32.partialorder %v1255, 8.507059e+37
  %v1257 = vand.u32 %v1244, 2147483648
  %v1258 = vor.u32 1.1754944e-38, %v1257
  %v1259 = vsel %vm1256, %v1258, %v1254
  %v1260 = vmul.f32 1.0, %v1259
  %v1261 = vrcp.pop %v1245
  %v1262 = vmul.f32 %v1245, %v1261
  %v1263 = vsub.f32 1.0, %v1262
  %v1264 = vmul.f32 %v1261, %v1263
  %v1265 = vadd.f32 %v1261, %v1264
  %vm1266 = vweird.f32 %v1245
  %vm1267 = vweird.f32 %v1261
  %vm1268 = vmor %vm1266, %vm1267
  %v1269 = vsel %vm1268, %v1261, %v1265
  %v1270 = vand.u32 2147483647, %v1245
  %vm1271 = vcmp.eq.f32.partialorder %v1270, 8.507059e+37
  %v1272 = vand.u32 %v1245, 2147483648
  %v1273 = vor.u32 1.1754944e-38, %v1272
  %v1274 = vsel %vm1271, %v1273, %v1269
  %v1275 = vmul.f32 1.0, %v1274
  %v1276 = vrot.slane %v1192, 2
  %v1277 = vrot.slane %v1193, 2
  %v1280 = vtanh.pop %v1276
  %v1281 = vtanh.pop %v1277
  %v1282 = vrot.slane %v1192, 3
  %v1283 = vrot.slane %v1193, 3
  %v1286 = vxor.u32 %v1282, 2147483648
  %v1287 = vxor.u32 %v1283, 2147483648
  %v1288 = vmul.f32 %v1286, 1.442695
  %v1289 = vpow.pop %v1288
  %v1290 = vmul.f32 %v1287, 1.442695
  %v1291 = vpow.pop %v1290
  %v1292 = vadd.f32 %v1289, 1.0
  %v1293 = vadd.f32 %v1291, 1.0
  %v1294 = vrcp.pop %v1292
  %v1295 = vmul.f32 %v1292, %v1294
  %v1296 = vsub.f32 1.0, %v1295
  %v1297 = vmul.f32 %v1294, %v1296
  %v1298 = vadd.f32 %v1294, %v1297
  %vm1299 = vweird.f32 %v1292
  %vm1300 = vweird.f32 %v1294
  %vm1301 = vmor %vm1299, %vm1300
  %v1302 = vsel %vm1301, %v1294, %v1298
  %v1303 = vand.u32 2147483647, %v1292
  %vm1304 = vcmp.eq.f32.partialorder %v1303, 8.507059e+37
  %v1305 = vand.u32 %v1292, 2147483648
  %v1306 = vor.u32 1.1754944e-38, %v1305
  %v1307 = vsel %vm1304, %v1306, %v1302
  %v1308 = vmul.f32 1.0, %v1307
  %v1309 = vrcp.pop %v1293
  %v1310 = vmul.f32 %v1293, %v1309
  %v1311 = vsub.f32 1.0, %v1310
  %v1312 = vmul.f32 %v1309, %v1311
  %v1313 = vadd.f32 %v1309, %v1312
  %vm1314 = vweird.f32 %v1293
  %vm1315 = vweird.f32 %v1309
  %vm1316 = vmor %vm1314, %vm1315
  %v1317 = vsel %vm1316, %v1309, %v1313
  %v1318 = vand.u32 2147483647, %v1293
  %vm1319 = vcmp.eq.f32.partialorder %v1318, 8.507059e+37
  %v1320 = vand.u32 %v1293, 2147483648
  %v1321 = vor.u32 1.1754944e-38, %v1320
  %v1322 = vsel %vm1319, %v1321, %v1317
  %v1323 = vmul.f32 1.0, %v1322
  %v1324 = vmul.f32 %v1260, %v1104
  %v1325 = vmul.f32 %v1275, %v1105
  %v1326 = vmul.f32 %v1216, %v1280
  %v1327 = vmul.f32 %v1231, %v1281
  %v1328 = vadd.f32 %v1324, %v1326
  %v1329 = vadd.f32 %v1325, %v1327
  %v1330 = vtanh.pop %v1328
  %v1331 = vtanh.pop %v1329
  %v1332 = vmul.f32 %v1308, %v1330
  %v1333 = vmul.f32 %v1323, %v1331
  %s1334 = scalar_lea.vmem %s0, 5
  %v1335 = vld [vmem:[%s1334] ss:$8 sm:$0xf]
  %s1336 = scalar_lea.vmem %s0, 37
  %v1337 = vld [vmem:[%s1336] ss:$8 sm:$0xf]
  %v1338 = vpack.c.bf16 %v1332, %v1332
  %v1339 = vpack.c.bf16 %v1333, %v1333
  %v1342 = vunpack.c.l.b16 %v1338
  %v1343 = vunpack.c.l.b16 %v1339
  %v1344 = vrot.slane %v1343, 7
  %v1345 = vsel %vm287, %v1344, %v1342
  %v1346 = vpack.c.b16 %v1345, %v1345
  %1348 = vmatpush.bf16.msra.mxu0 %v186
  %1349 = vmatpush.bf16.msra.mxu0 %v182
  %1350 = vmatpush.bf16.msra.mxu0 %v178
  %1351 = vmatpush.bf16.msra.mxu0 %v174
  %1352 = vmatpush.bf16.msra.mxu0 %v170
  %1353 = vmatpush.bf16.msra.mxu0 %v166
  %1354 = vmatpush.bf16.msra.mxu0 %v162
  %1355 = vmatpush.bf16.msra.mxu0 %v158
  %1356 = vmatmul.bf16.gmra.mxu0 %v1346
  %v1357 = vpop.f32.mrf.mxu0
  %v1358 = vadd.f32 0.0, %v1357
  %v1359 = vpop.f32.mrf.mxu0
  %1360 = vdwg.mxu0
  %1361 = vmatpush.bf16.msra.mxu0 %v187
  %1362 = vmatpush.bf16.msra.mxu0 %v183
  %1363 = vmatpush.bf16.msra.mxu0 %v179
  %1364 = vmatpush.bf16.msra.mxu0 %v175
  %1365 = vmatpush.bf16.msra.mxu0 %v171
  %1366 = vmatpush.bf16.msra.mxu0 %v167
  %1367 = vmatpush.bf16.msra.mxu0 %v163
  %1368 = vmatpush.bf16.msra.mxu0 %v159
  %1369 = vmatmul.bf16.gmra.mxu0 %v1346
  %v1370 = vpop.f32.mrf.mxu0
  %v1371 = vadd.f32 0.0, %v1370
  %v1372 = vpop.f32.mrf.mxu0
  %1373 = vdwg.mxu0
  %1374 = vmatpush.bf16.msra.mxu0 %v188
  %1375 = vmatpush.bf16.msra.mxu0 %v184
  %1376 = vmatpush.bf16.msra.mxu0 %v180
  %1377 = vmatpush.bf16.msra.mxu0 %v176
  %1378 = vmatpush.bf16.msra.mxu0 %v172
  %1379 = vmatpush.bf16.msra.mxu0 %v168
  %1380 = vmatpush.bf16.msra.mxu0 %v164
  %1381 = vmatpush.bf16.msra.mxu0 %v160
  %1382 = vmatmul.bf16.gmra.mxu0 %v1346
  %v1383 = vpop.f32.mrf.mxu0
  %v1384 = vadd.f32 0.0, %v1383
  %v1385 = vpop.f32.mrf.mxu0
  %1386 = vdwg.mxu0
  %1387 = vmatpush.bf16.msra.mxu0 %v189
  %1388 = vmatpush.bf16.msra.mxu0 %v185
  %1389 = vmatpush.bf16.msra.mxu0 %v181
  %1390 = vmatpush.bf16.msra.mxu0 %v177
  %1391 = vmatpush.bf16.msra.mxu0 %v173
  %1392 = vmatpush.bf16.msra.mxu0 %v169
  %1393 = vmatpush.bf16.msra.mxu0 %v165
  %1394 = vmatpush.bf16.msra.mxu0 %v161
  %1395 = vmatmul.bf16.gmra.mxu0 %v1346
  %v1396 = vpop.f32.mrf.mxu0
  %v1397 = vadd.f32 0.0, %v1396
  %v1398 = vpop.f32.mrf.mxu0
  %1399 = vdwg.mxu0
  %v1404 = vrot.slane %v1371, 7
  %v1405 = vrot.slane %v1384, 6
  %v1406 = vrot.slane %v1397, 5
  %v1407 = vsel %vm281, %v1358, %v1404
  %v1408 = vsel %vm283, %v1405, %v1406
  %v1409 = vsel %vm285, %v1407, %v1408
  %v1410 = vsel %vm287, %v1358, %v1404
  %v1411 = vsel %vm289, %v1405, %v1406
  %v1412 = vsel %vm291, %v1410, %v1411
  %v1413 = vrot.slane %v1412, 1
  %v1416 = vadd.f32 %v1335, %v1409
  %v1417 = vadd.f32 %v1337, %v1413
  %v1418 = vxor.u32 %v1416, 2147483648
  %v1419 = vxor.u32 %v1417, 2147483648
  %v1420 = vmul.f32 %v1418, 1.442695
  %v1421 = vpow.pop %v1420
  %v1422 = vmul.f32 %v1419, 1.442695
  %v1423 = vpow.pop %v1422
  %v1424 = vadd.f32 %v1421, 1.0
  %v1425 = vadd.f32 %v1423, 1.0
  %v1426 = vrcp.pop %v1424
  %v1427 = vmul.f32 %v1424, %v1426
  %v1428 = vsub.f32 1.0, %v1427
  %v1429 = vmul.f32 %v1426, %v1428
  %v1430 = vadd.f32 %v1426, %v1429
  %vm1431 = vweird.f32 %v1424
  %vm1432 = vweird.f32 %v1426
  %vm1433 = vmor %vm1431, %vm1432
  %v1434 = vsel %vm1433, %v1426, %v1430
  %v1435 = vand.u32 2147483647, %v1424
  %vm1436 = vcmp.eq.f32.partialorder %v1435, 8.507059e+37
  %v1437 = vand.u32 %v1424, 2147483648
  %v1438 = vor.u32 1.1754944e-38, %v1437
  %v1439 = vsel %vm1436, %v1438, %v1434
  %v1440 = vmul.f32 1.0, %v1439
  %v1441 = vrcp.pop %v1425
  %v1442 = vmul.f32 %v1425, %v1441
  %v1443 = vsub.f32 1.0, %v1442
  %v1444 = vmul.f32 %v1441, %v1443
  %v1445 = vadd.f32 %v1441, %v1444
  %vm1446 = vweird.f32 %v1425
  %vm1447 = vweird.f32 %v1441
  %vm1448 = vmor %vm1446, %vm1447
  %v1449 = vsel %vm1448, %v1441, %v1445
  %v1450 = vand.u32 2147483647, %v1425
  %vm1451 = vcmp.eq.f32.partialorder %v1450, 8.507059e+37
  %v1452 = vand.u32 %v1425, 2147483648
  %v1453 = vor.u32 1.1754944e-38, %v1452
  %v1454 = vsel %vm1451, %v1453, %v1449
  %v1455 = vmul.f32 1.0, %v1454
  %v1458 = vrot.slane %v1416, 1
  %v1459 = vrot.slane %v1417, 1
  %v1462 = vxor.u32 %v1458, 2147483648
  %v1463 = vxor.u32 %v1459, 2147483648
  %v1464 = vmul.f32 %v1462, 1.442695
  %v1465 = vpow.pop %v1464
  %v1466 = vmul.f32 %v1463, 1.442695
  %v1467 = vpow.pop %v1466
  %v1468 = vadd.f32 %v1465, 1.0
  %v1469 = vadd.f32 %v1467, 1.0
  %v1470 = vrcp.pop %v1468
  %v1471 = vmul.f32 %v1468, %v1470
  %v1472 = vsub.f32 1.0, %v1471
  %v1473 = vmul.f32 %v1470, %v1472
  %v1474 = vadd.f32 %v1470, %v1473
  %vm1475 = vweird.f32 %v1468
  %vm1476 = vweird.f32 %v1470
  %vm1477 = vmor %vm1475, %vm1476
  %v1478 = vsel %vm1477, %v1470, %v1474
  %v1479 = vand.u32 2147483647, %v1468
  %vm1480 = vcmp.eq.f32.partialorder %v1479, 8.507059e+37
  %v1481 = vand.u32 %v1468, 2147483648
  %v1482 = vor.u32 1.1754944e-38, %v1481
  %v1483 = vsel %vm1480, %v1482, %v1478
  %v1484 = vmul.f32 1.0, %v1483
  %v1485 = vrcp.pop %v1469
  %v1486 = vmul.f32 %v1469, %v1485
  %v1487 = vsub.f32 1.0, %v1486
  %v1488 = vmul.f32 %v1485, %v1487
  %v1489 = vadd.f32 %v1485, %v1488
  %vm1490 = vweird.f32 %v1469
  %vm1491 = vweird.f32 %v1485
  %vm1492 = vmor %vm1490, %vm1491
  %v1493 = vsel %vm1492, %v1485, %v1489
  %v1494 = vand.u32 2147483647, %v1469
  %vm1495 = vcmp.eq.f32.partialorder %v1494, 8.507059e+37
  %v1496 = vand.u32 %v1469, 2147483648
  %v1497 = vor.u32 1.1754944e-38, %v1496
  %v1498 = vsel %vm1495, %v1497, %v1493
  %v1499 = vmul.f32 1.0, %v1498
  %v1500 = vrot.slane %v1416, 2
  %v1501 = vrot.slane %v1417, 2
  %v1504 = vtanh.pop %v1500
  %v1505 = vtanh.pop %v1501
  %v1506 = vrot.slane %v1416, 3
  %v1507 = vrot.slane %v1417, 3
  %v1510 = vxor.u32 %v1506, 2147483648
  %v1511 = vxor.u32 %v1507, 2147483648
  %v1512 = vmul.f32 %v1510, 1.442695
  %v1513 = vpow.pop %v1512
  %v1514 = vmul.f32 %v1511, 1.442695
  %v1515 = vpow.pop %v1514
  %v1516 = vadd.f32 %v1513, 1.0
  %v1517 = vadd.f32 %v1515, 1.0
  %v1518 = vrcp.pop %v1516
  %v1519 = vmul.f32 %v1516, %v1518
  %v1520 = vsub.f32 1.0, %v1519
  %v1521 = vmul.f32 %v1518, %v1520
  %v1522 = vadd.f32 %v1518, %v1521
  %vm1523 = vweird.f32 %v1516
  %vm1524 = vweird.f32 %v1518
  %vm1525 = vmor %vm1523, %vm1524
  %v1526 = vsel %vm1525, %v1518, %v1522
  %v1527 = vand.u32 2147483647, %v1516
  %vm1528 = vcmp.eq.f32.partialorder %v1527, 8.507059e+37
  %v1529 = vand.u32 %v1516, 2147483648
  %v1530 = vor.u32 1.1754944e-38, %v1529
  %v1531 = vsel %vm1528, %v1530, %v1526
  %v1532 = vmul.f32 1.0, %v1531
  %v1533 = vrcp.pop %v1517
  %v1534 = vmul.f32 %v1517, %v1533
  %v1535 = vsub.f32 1.0, %v1534
  %v1536 = vmul.f32 %v1533, %v1535
  %v1537 = vadd.f32 %v1533, %v1536
  %vm1538 = vweird.f32 %v1517
  %vm1539 = vweird.f32 %v1533
  %vm1540 = vmor %vm1538, %vm1539
  %v1541 = vsel %vm1540, %v1533, %v1537
  %v1542 = vand.u32 2147483647, %v1517
  %vm1543 = vcmp.eq.f32.partialorder %v1542, 8.507059e+37
  %v1544 = vand.u32 %v1517, 2147483648
  %v1545 = vor.u32 1.1754944e-38, %v1544
  %v1546 = vsel %vm1543, %v1545, %v1541
  %v1547 = vmul.f32 1.0, %v1546
  %v1548 = vmul.f32 %v1484, %v1328
  %v1549 = vmul.f32 %v1499, %v1329
  %v1550 = vmul.f32 %v1440, %v1504
  %v1551 = vmul.f32 %v1455, %v1505
  %v1552 = vadd.f32 %v1548, %v1550
  %v1553 = vadd.f32 %v1549, %v1551
  %v1554 = vtanh.pop %v1552
  %v1555 = vtanh.pop %v1553
  %v1556 = vmul.f32 %v1532, %v1554
  %v1557 = vmul.f32 %v1547, %v1555
  %s1558 = scalar_lea.vmem %s0, 6
  %v1559 = vld [vmem:[%s1558] ss:$8 sm:$0xf]
  %s1560 = scalar_lea.vmem %s0, 38
  %v1561 = vld [vmem:[%s1560] ss:$8 sm:$0xf]
  %v1562 = vpack.c.bf16 %v1556, %v1556
  %v1563 = vpack.c.bf16 %v1557, %v1557
  %v1566 = vunpack.c.l.b16 %v1562
  %v1567 = vunpack.c.l.b16 %v1563
  %v1568 = vrot.slane %v1567, 7
  %v1569 = vsel %vm287, %v1568, %v1566
  %v1570 = vpack.c.b16 %v1569, %v1569
  %1572 = vmatpush.bf16.msra.mxu0 %v186
  %1573 = vmatpush.bf16.msra.mxu0 %v182
  %1574 = vmatpush.bf16.msra.mxu0 %v178
  %1575 = vmatpush.bf16.msra.mxu0 %v174
  %1576 = vmatpush.bf16.msra.mxu0 %v170
  %1577 = vmatpush.bf16.msra.mxu0 %v166
  %1578 = vmatpush.bf16.msra.mxu0 %v162
  %1579 = vmatpush.bf16.msra.mxu0 %v158
  %1580 = vmatmul.bf16.gmra.mxu0 %v1570
  %v1581 = vpop.f32.mrf.mxu0
  %v1582 = vadd.f32 0.0, %v1581
  %v1583 = vpop.f32.mrf.mxu0
  %1584 = vdwg.mxu0
  %1585 = vmatpush.bf16.msra.mxu0 %v187
  %1586 = vmatpush.bf16.msra.mxu0 %v183
  %1587 = vmatpush.bf16.msra.mxu0 %v179
  %1588 = vmatpush.bf16.msra.mxu0 %v175
  %1589 = vmatpush.bf16.msra.mxu0 %v171
  %1590 = vmatpush.bf16.msra.mxu0 %v167
  %1591 = vmatpush.bf16.msra.mxu0 %v163
  %1592 = vmatpush.bf16.msra.mxu0 %v159
  %1593 = vmatmul.bf16.gmra.mxu0 %v1570
  %v1594 = vpop.f32.mrf.mxu0
  %v1595 = vadd.f32 0.0, %v1594
  %v1596 = vpop.f32.mrf.mxu0
  %1597 = vdwg.mxu0
  %1598 = vmatpush.bf16.msra.mxu0 %v188
  %1599 = vmatpush.bf16.msra.mxu0 %v184
  %1600 = vmatpush.bf16.msra.mxu0 %v180
  %1601 = vmatpush.bf16.msra.mxu0 %v176
  %1602 = vmatpush.bf16.msra.mxu0 %v172
  %1603 = vmatpush.bf16.msra.mxu0 %v168
  %1604 = vmatpush.bf16.msra.mxu0 %v164
  %1605 = vmatpush.bf16.msra.mxu0 %v160
  %1606 = vmatmul.bf16.gmra.mxu0 %v1570
  %v1607 = vpop.f32.mrf.mxu0
  %v1608 = vadd.f32 0.0, %v1607
  %v1609 = vpop.f32.mrf.mxu0
  %1610 = vdwg.mxu0
  %1611 = vmatpush.bf16.msra.mxu0 %v189
  %1612 = vmatpush.bf16.msra.mxu0 %v185
  %1613 = vmatpush.bf16.msra.mxu0 %v181
  %1614 = vmatpush.bf16.msra.mxu0 %v177
  %1615 = vmatpush.bf16.msra.mxu0 %v173
  %1616 = vmatpush.bf16.msra.mxu0 %v169
  %1617 = vmatpush.bf16.msra.mxu0 %v165
  %1618 = vmatpush.bf16.msra.mxu0 %v161
  %1619 = vmatmul.bf16.gmra.mxu0 %v1570
  %v1620 = vpop.f32.mrf.mxu0
  %v1621 = vadd.f32 0.0, %v1620
  %v1622 = vpop.f32.mrf.mxu0
  %1623 = vdwg.mxu0
  %v1628 = vrot.slane %v1595, 7
  %v1629 = vrot.slane %v1608, 6
  %v1630 = vrot.slane %v1621, 5
  %v1631 = vsel %vm281, %v1582, %v1628
  %v1632 = vsel %vm283, %v1629, %v1630
  %v1633 = vsel %vm285, %v1631, %v1632
  %v1634 = vsel %vm287, %v1582, %v1628
  %v1635 = vsel %vm289, %v1629, %v1630
  %v1636 = vsel %vm291, %v1634, %v1635
  %v1637 = vrot.slane %v1636, 1
  %v1640 = vadd.f32 %v1559, %v1633
  %v1641 = vadd.f32 %v1561, %v1637
  %v1642 = vxor.u32 %v1640, 2147483648
  %v1643 = vxor.u32 %v1641, 2147483648
  %v1644 = vmul.f32 %v1642, 1.442695
  %v1645 = vpow.pop %v1644
  %v1646 = vmul.f32 %v1643, 1.442695
  %v1647 = vpow.pop %v1646
  %v1648 = vadd.f32 %v1645, 1.0
  %v1649 = vadd.f32 %v1647, 1.0
  %v1650 = vrcp.pop %v1648
  %v1651 = vmul.f32 %v1648, %v1650
  %v1652 = vsub.f32 1.0, %v1651
  %v1653 = vmul.f32 %v1650, %v1652
  %v1654 = vadd.f32 %v1650, %v1653
  %vm1655 = vweird.f32 %v1648
  %vm1656 = vweird.f32 %v1650
  %vm1657 = vmor %vm1655, %vm1656
  %v1658 = vsel %vm1657, %v1650, %v1654
  %v1659 = vand.u32 2147483647, %v1648
  %vm1660 = vcmp.eq.f32.partialorder %v1659, 8.507059e+37
  %v1661 = vand.u32 %v1648, 2147483648
  %v1662 = vor.u32 1.1754944e-38, %v1661
  %v1663 = vsel %vm1660, %v1662, %v1658
  %v1664 = vmul.f32 1.0, %v1663
  %v1665 = vrcp.pop %v1649
  %v1666 = vmul.f32 %v1649, %v1665
  %v1667 = vsub.f32 1.0, %v1666
  %v1668 = vmul.f32 %v1665, %v1667
  %v1669 = vadd.f32 %v1665, %v1668
  %vm1670 = vweird.f32 %v1649
  %vm1671 = vweird.f32 %v1665
  %vm1672 = vmor %vm1670, %vm1671
  %v1673 = vsel %vm1672, %v1665, %v1669
  %v1674 = vand.u32 2147483647, %v1649
  %vm1675 = vcmp.eq.f32.partialorder %v1674, 8.507059e+37
  %v1676 = vand.u32 %v1649, 2147483648
  %v1677 = vor.u32 1.1754944e-38, %v1676
  %v1678 = vsel %vm1675, %v1677, %v1673
  %v1679 = vmul.f32 1.0, %v1678
  %v1682 = vrot.slane %v1640, 1
  %v1683 = vrot.slane %v1641, 1
  %v1686 = vxor.u32 %v1682, 2147483648
  %v1687 = vxor.u32 %v1683, 2147483648
  %v1688 = vmul.f32 %v1686, 1.442695
  %v1689 = vpow.pop %v1688
  %v1690 = vmul.f32 %v1687, 1.442695
  %v1691 = vpow.pop %v1690
  %v1692 = vadd.f32 %v1689, 1.0
  %v1693 = vadd.f32 %v1691, 1.0
  %v1694 = vrcp.pop %v1692
  %v1695 = vmul.f32 %v1692, %v1694
  %v1696 = vsub.f32 1.0, %v1695
  %v1697 = vmul.f32 %v1694, %v1696
  %v1698 = vadd.f32 %v1694, %v1697
  %vm1699 = vweird.f32 %v1692
  %vm1700 = vweird.f32 %v1694
  %vm1701 = vmor %vm1699, %vm1700
  %v1702 = vsel %vm1701, %v1694, %v1698
  %v1703 = vand.u32 2147483647, %v1692
  %vm1704 = vcmp.eq.f32.partialorder %v1703, 8.507059e+37
  %v1705 = vand.u32 %v1692, 2147483648
  %v1706 = vor.u32 1.1754944e-38, %v1705
  %v1707 = vsel %vm1704, %v1706, %v1702
  %v1708 = vmul.f32 1.0, %v1707
  %v1709 = vrcp.pop %v1693
  %v1710 = vmul.f32 %v1693, %v1709
  %v1711 = vsub.f32 1.0, %v1710
  %v1712 = vmul.f32 %v1709, %v1711
  %v1713 = vadd.f32 %v1709, %v1712
  %vm1714 = vweird.f32 %v1693
  %vm1715 = vweird.f32 %v1709
  %vm1716 = vmor %vm1714, %vm1715
  %v1717 = vsel %vm1716, %v1709, %v1713
  %v1718 = vand.u32 2147483647, %v1693
  %vm1719 = vcmp.eq.f32.partialorder %v1718, 8.507059e+37
  %v1720 = vand.u32 %v1693, 2147483648
  %v1721 = vor.u32 1.1754944e-38, %v1720
  %v1722 = vsel %vm1719, %v1721, %v1717
  %v1723 = vmul.f32 1.0, %v1722
  %v1724 = vrot.slane %v1640, 2
  %v1725 = vrot.slane %v1641, 2
  %v1728 = vtanh.pop %v1724
  %v1729 = vtanh.pop %v1725
  %v1730 = vrot.slane %v1640, 3
  %v1731 = vrot.slane %v1641, 3
  %v1734 = vxor.u32 %v1730, 2147483648
  %v1735 = vxor.u32 %v1731, 2147483648
  %v1736 = vmul.f32 %v1734, 1.442695
  %v1737 = vpow.pop %v1736
  %v1738 = vmul.f32 %v1735, 1.442695
  %v1739 = vpow.pop %v1738
  %v1740 = vadd.f32 %v1737, 1.0
  %v1741 = vadd.f32 %v1739, 1.0
  %v1742 = vrcp.pop %v1740
  %v1743 = vmul.f32 %v1740, %v1742
  %v1744 = vsub.f32 1.0, %v1743
  %v1745 = vmul.f32 %v1742, %v1744
  %v1746 = vadd.f32 %v1742, %v1745
  %vm1747 = vweird.f32 %v1740
  %vm1748 = vweird.f32 %v1742
  %vm1749 = vmor %vm1747, %vm1748
  %v1750 = vsel %vm1749, %v1742, %v1746
  %v1751 = vand.u32 2147483647, %v1740
  %vm1752 = vcmp.eq.f32.partialorder %v1751, 8.507059e+37
  %v1753 = vand.u32 %v1740, 2147483648
  %v1754 = vor.u32 1.1754944e-38, %v1753
  %v1755 = vsel %vm1752, %v1754, %v1750
  %v1756 = vmul.f32 1.0, %v1755
  %v1757 = vrcp.pop %v1741
  %v1758 = vmul.f32 %v1741, %v1757
  %v1759 = vsub.f32 1.0, %v1758
  %v1760 = vmul.f32 %v1757, %v1759
  %v1761 = vadd.f32 %v1757, %v1760
  %vm1762 = vweird.f32 %v1741
  %vm1763 = vweird.f32 %v1757
  %vm1764 = vmor %vm1762, %vm1763
  %v1765 = vsel %vm1764, %v1757, %v1761
  %v1766 = vand.u32 2147483647, %v1741
  %vm1767 = vcmp.eq.f32.partialorder %v1766, 8.507059e+37
  %v1768 = vand.u32 %v1741, 2147483648
  %v1769 = vor.u32 1.1754944e-38, %v1768
  %v1770 = vsel %vm1767, %v1769, %v1765
  %v1771 = vmul.f32 1.0, %v1770
  %v1772 = vmul.f32 %v1708, %v1552
  %v1773 = vmul.f32 %v1723, %v1553
  %v1774 = vmul.f32 %v1664, %v1728
  %v1775 = vmul.f32 %v1679, %v1729
  %v1776 = vadd.f32 %v1772, %v1774
  %v1777 = vadd.f32 %v1773, %v1775
  %v1778 = vtanh.pop %v1776
  %v1779 = vtanh.pop %v1777
  %v1780 = vmul.f32 %v1756, %v1778
  %v1781 = vmul.f32 %v1771, %v1779
  %s1782 = scalar_lea.vmem %s0, 7
  %v1783 = vld [vmem:[%s1782] ss:$8 sm:$0xf]
  %s1784 = scalar_lea.vmem %s0, 39
  %v1785 = vld [vmem:[%s1784] ss:$8 sm:$0xf]
  %v1786 = vpack.c.bf16 %v1780, %v1780
  %v1787 = vpack.c.bf16 %v1781, %v1781
  %v1790 = vunpack.c.l.b16 %v1786
  %v1791 = vunpack.c.l.b16 %v1787
  %v1792 = vrot.slane %v1791, 7
  %v1793 = vsel %vm287, %v1792, %v1790
  %v1794 = vpack.c.b16 %v1793, %v1793
  %1796 = vmatpush.bf16.msra.mxu0 %v186
  %1797 = vmatpush.bf16.msra.mxu0 %v182
  %1798 = vmatpush.bf16.msra.mxu0 %v178
  %1799 = vmatpush.bf16.msra.mxu0 %v174
  %1800 = vmatpush.bf16.msra.mxu0 %v170
  %1801 = vmatpush.bf16.msra.mxu0 %v166
  %1802 = vmatpush.bf16.msra.mxu0 %v162
  %1803 = vmatpush.bf16.msra.mxu0 %v158
  %1804 = vmatmul.bf16.gmra.mxu0 %v1794
  %v1805 = vpop.f32.mrf.mxu0
  %v1806 = vadd.f32 0.0, %v1805
  %v1807 = vpop.f32.mrf.mxu0
  %1808 = vdwg.mxu0
  %1809 = vmatpush.bf16.msra.mxu0 %v187
  %1810 = vmatpush.bf16.msra.mxu0 %v183
  %1811 = vmatpush.bf16.msra.mxu0 %v179
  %1812 = vmatpush.bf16.msra.mxu0 %v175
  %1813 = vmatpush.bf16.msra.mxu0 %v171
  %1814 = vmatpush.bf16.msra.mxu0 %v167
  %1815 = vmatpush.bf16.msra.mxu0 %v163
  %1816 = vmatpush.bf16.msra.mxu0 %v159
  %1817 = vmatmul.bf16.gmra.mxu0 %v1794
  %v1818 = vpop.f32.mrf.mxu0
  %v1819 = vadd.f32 0.0, %v1818
  %v1820 = vpop.f32.mrf.mxu0
  %1821 = vdwg.mxu0
  %1822 = vmatpush.bf16.msra.mxu0 %v188
  %1823 = vmatpush.bf16.msra.mxu0 %v184
  %1824 = vmatpush.bf16.msra.mxu0 %v180
  %1825 = vmatpush.bf16.msra.mxu0 %v176
  %1826 = vmatpush.bf16.msra.mxu0 %v172
  %1827 = vmatpush.bf16.msra.mxu0 %v168
  %1828 = vmatpush.bf16.msra.mxu0 %v164
  %1829 = vmatpush.bf16.msra.mxu0 %v160
  %1830 = vmatmul.bf16.gmra.mxu0 %v1794
  %v1831 = vpop.f32.mrf.mxu0
  %v1832 = vadd.f32 0.0, %v1831
  %v1833 = vpop.f32.mrf.mxu0
  %1834 = vdwg.mxu0
  %1835 = vmatpush.bf16.msra.mxu0 %v189
  %1836 = vmatpush.bf16.msra.mxu0 %v185
  %1837 = vmatpush.bf16.msra.mxu0 %v181
  %1838 = vmatpush.bf16.msra.mxu0 %v177
  %1839 = vmatpush.bf16.msra.mxu0 %v173
  %1840 = vmatpush.bf16.msra.mxu0 %v169
  %1841 = vmatpush.bf16.msra.mxu0 %v165
  %1842 = vmatpush.bf16.msra.mxu0 %v161
  %1843 = vmatmul.bf16.gmra.mxu0 %v1794
  %v1844 = vpop.f32.mrf.mxu0
  %v1845 = vadd.f32 0.0, %v1844
  %v1846 = vpop.f32.mrf.mxu0
  %1847 = vdwg.mxu0
  %v1852 = vrot.slane %v1819, 7
  %v1853 = vrot.slane %v1832, 6
  %v1854 = vrot.slane %v1845, 5
  %v1855 = vsel %vm281, %v1806, %v1852
  %v1856 = vsel %vm283, %v1853, %v1854
  %v1857 = vsel %vm285, %v1855, %v1856
  %v1858 = vsel %vm287, %v1806, %v1852
  %v1859 = vsel %vm289, %v1853, %v1854
  %v1860 = vsel %vm291, %v1858, %v1859
  %v1861 = vrot.slane %v1860, 1
  %v1864 = vadd.f32 %v1783, %v1857
  %v1865 = vadd.f32 %v1785, %v1861
  %v1866 = vxor.u32 %v1864, 2147483648
  %v1867 = vxor.u32 %v1865, 2147483648
  %v1868 = vmul.f32 %v1866, 1.442695
  %v1869 = vpow.pop %v1868
  %v1870 = vmul.f32 %v1867, 1.442695
  %v1871 = vpow.pop %v1870
  %v1872 = vadd.f32 %v1869, 1.0
  %v1873 = vadd.f32 %v1871, 1.0
  %v1874 = vrcp.pop %v1872
  %v1875 = vmul.f32 %v1872, %v1874
  %v1876 = vsub.f32 1.0, %v1875
  %v1877 = vmul.f32 %v1874, %v1876
  %v1878 = vadd.f32 %v1874, %v1877
  %vm1879 = vweird.f32 %v1872
  %vm1880 = vweird.f32 %v1874
  %vm1881 = vmor %vm1879, %vm1880
  %v1882 = vsel %vm1881, %v1874, %v1878
  %v1883 = vand.u32 2147483647, %v1872
  %vm1884 = vcmp.eq.f32.partialorder %v1883, 8.507059e+37
  %v1885 = vand.u32 %v1872, 2147483648
  %v1886 = vor.u32 1.1754944e-38, %v1885
  %v1887 = vsel %vm1884, %v1886, %v1882
  %v1888 = vmul.f32 1.0, %v1887
  %v1889 = vrcp.pop %v1873
  %v1890 = vmul.f32 %v1873, %v1889
  %v1891 = vsub.f32 1.0, %v1890
  %v1892 = vmul.f32 %v1889, %v1891
  %v1893 = vadd.f32 %v1889, %v1892
  %vm1894 = vweird.f32 %v1873
  %vm1895 = vweird.f32 %v1889
  %vm1896 = vmor %vm1894, %vm1895
  %v1897 = vsel %vm1896, %v1889, %v1893
  %v1898 = vand.u32 2147483647, %v1873
  %vm1899 = vcmp.eq.f32.partialorder %v1898, 8.507059e+37
  %v1900 = vand.u32 %v1873, 2147483648
  %v1901 = vor.u32 1.1754944e-38, %v1900
  %v1902 = vsel %vm1899, %v1901, %v1897
  %v1903 = vmul.f32 1.0, %v1902
  %v1906 = vrot.slane %v1864, 1
  %v1907 = vrot.slane %v1865, 1
  %v1910 = vxor.u32 %v1906, 2147483648
  %v1911 = vxor.u32 %v1907, 2147483648
  %v1912 = vmul.f32 %v1910, 1.442695
  %v1913 = vpow.pop %v1912
  %v1914 = vmul.f32 %v1911, 1.442695
  %v1915 = vpow.pop %v1914
  %v1916 = vadd.f32 %v1913, 1.0
  %v1917 = vadd.f32 %v1915, 1.0
  %v1918 = vrcp.pop %v1916
  %v1919 = vmul.f32 %v1916, %v1918
  %v1920 = vsub.f32 1.0, %v1919
  %v1921 = vmul.f32 %v1918, %v1920
  %v1922 = vadd.f32 %v1918, %v1921
  %vm1923 = vweird.f32 %v1916
  %vm1924 = vweird.f32 %v1918
  %vm1925 = vmor %vm1923, %vm1924
  %v1926 = vsel %vm1925, %v1918, %v1922
  %v1927 = vand.u32 2147483647, %v1916
  %vm1928 = vcmp.eq.f32.partialorder %v1927, 8.507059e+37
  %v1929 = vand.u32 %v1916, 2147483648
  %v1930 = vor.u32 1.1754944e-38, %v1929
  %v1931 = vsel %vm1928, %v1930, %v1926
  %v1932 = vmul.f32 1.0, %v1931
  %v1933 = vrcp.pop %v1917
  %v1934 = vmul.f32 %v1917, %v1933
  %v1935 = vsub.f32 1.0, %v1934
  %v1936 = vmul.f32 %v1933, %v1935
  %v1937 = vadd.f32 %v1933, %v1936
  %vm1938 = vweird.f32 %v1917
  %vm1939 = vweird.f32 %v1933
  %vm1940 = vmor %vm1938, %vm1939
  %v1941 = vsel %vm1940, %v1933, %v1937
  %v1942 = vand.u32 2147483647, %v1917
  %vm1943 = vcmp.eq.f32.partialorder %v1942, 8.507059e+37
  %v1944 = vand.u32 %v1917, 2147483648
  %v1945 = vor.u32 1.1754944e-38, %v1944
  %v1946 = vsel %vm1943, %v1945, %v1941
  %v1947 = vmul.f32 1.0, %v1946
  %v1948 = vrot.slane %v1864, 2
  %v1949 = vrot.slane %v1865, 2
  %v1952 = vtanh.pop %v1948
  %v1953 = vtanh.pop %v1949
  %v1954 = vrot.slane %v1864, 3
  %v1955 = vrot.slane %v1865, 3
  %v1958 = vxor.u32 %v1954, 2147483648
  %v1959 = vxor.u32 %v1955, 2147483648
  %v1960 = vmul.f32 %v1958, 1.442695
  %v1961 = vpow.pop %v1960
  %v1962 = vmul.f32 %v1959, 1.442695
  %v1963 = vpow.pop %v1962
  %v1964 = vadd.f32 %v1961, 1.0
  %v1965 = vadd.f32 %v1963, 1.0
  %v1966 = vrcp.pop %v1964
  %v1967 = vmul.f32 %v1964, %v1966
  %v1968 = vsub.f32 1.0, %v1967
  %v1969 = vmul.f32 %v1966, %v1968
  %v1970 = vadd.f32 %v1966, %v1969
  %vm1971 = vweird.f32 %v1964
  %vm1972 = vweird.f32 %v1966
  %vm1973 = vmor %vm1971, %vm1972
  %v1974 = vsel %vm1973, %v1966, %v1970
  %v1975 = vand.u32 2147483647, %v1964
  %vm1976 = vcmp.eq.f32.partialorder %v1975, 8.507059e+37
  %v1977 = vand.u32 %v1964, 2147483648
  %v1978 = vor.u32 1.1754944e-38, %v1977
  %v1979 = vsel %vm1976, %v1978, %v1974
  %v1980 = vmul.f32 1.0, %v1979
  %v1981 = vrcp.pop %v1965
  %v1982 = vmul.f32 %v1965, %v1981
  %v1983 = vsub.f32 1.0, %v1982
  %v1984 = vmul.f32 %v1981, %v1983
  %v1985 = vadd.f32 %v1981, %v1984
  %vm1986 = vweird.f32 %v1965
  %vm1987 = vweird.f32 %v1981
  %vm1988 = vmor %vm1986, %vm1987
  %v1989 = vsel %vm1988, %v1981, %v1985
  %v1990 = vand.u32 2147483647, %v1965
  %vm1991 = vcmp.eq.f32.partialorder %v1990, 8.507059e+37
  %v1992 = vand.u32 %v1965, 2147483648
  %v1993 = vor.u32 1.1754944e-38, %v1992
  %v1994 = vsel %vm1991, %v1993, %v1989
  %v1995 = vmul.f32 1.0, %v1994
  %v1996 = vmul.f32 %v1932, %v1776
  %v1997 = vmul.f32 %v1947, %v1777
  %v1998 = vmul.f32 %v1888, %v1952
  %v1999 = vmul.f32 %v1903, %v1953
  %v2000 = vadd.f32 %v1996, %v1998
  %v2001 = vadd.f32 %v1997, %v1999
  %v2002 = vtanh.pop %v2000
  %v2003 = vtanh.pop %v2001
  %v2004 = vmul.f32 %v1980, %v2002
  %v2005 = vmul.f32 %v1995, %v2003
  %v2006 = vld [vmem:[%s2] sm:$0xff]
  %v2007 = vld [vmem:[%s2 + $0x8] sm:$0xff]
  %v2008 = vld [vmem:[%s2 + $0x10] sm:$0xff]
  %v2009 = vld [vmem:[%s2 + $0x18] sm:$0xff]
  %v2010 = vunpack.c.l.bf16 %v2006
  %v2011 = vunpack.c.h.bf16 %v2006
  %v2012 = vunpack.c.l.bf16 %v2007
  %v2013 = vunpack.c.h.bf16 %v2007
  %v2014 = vunpack.c.l.bf16 %v2008
  %v2015 = vunpack.c.h.bf16 %v2008
  %v2016 = vunpack.c.l.bf16 %v2009
  %v2017 = vunpack.c.h.bf16 %v2009
  %v2018 = vadd.f32 %v2010, %v2012
  %v2019 = vrot.slane %v2018, 4
  %v2020 = vadd.f32 %v2018, %v2019
  %v2021 = vrot.slane %v2020, 2
  %v2022 = vadd.f32 %v2020, %v2021
  %v2023 = vrot.slane %v2022, 1
  %v2024 = vadd.f32 %v2022, %v2023
  %v2025 = vadd.f32 %v2011, %v2013
  %v2026 = vrot.slane %v2025, 4
  %v2027 = vadd.f32 %v2025, %v2026
  %v2028 = vrot.slane %v2027, 2
  %v2029 = vadd.f32 %v2027, %v2028
  %v2030 = vrot.slane %v2029, 1
  %v2031 = vadd.f32 %v2029, %v2030
  %v2032 = vadd.f32 %v2014, %v2016
  %v2033 = vrot.slane %v2032, 4
  %v2034 = vadd.f32 %v2032, %v2033
  %v2035 = vrot.slane %v2034, 2
  %v2036 = vadd.f32 %v2034, %v2035
  %v2037 = vrot.slane %v2036, 1
  %v2038 = vadd.f32 %v2036, %v2037
  %v2039 = vadd.f32 %v2015, %v2017
  %v2040 = vrot.slane %v2039, 4
  %v2041 = vadd.f32 %v2039, %v2040
  %v2042 = vrot.slane %v2041, 2
  %v2043 = vadd.f32 %v2041, %v2042
  %v2044 = vrot.slane %v2043, 1
  %v2045 = vadd.f32 %v2043, %v2044
  %v2046 = vpack.c.bf16 %v2024, %v2024
  %v2047 = vpack.c.bf16 %v2031, %v2031
  %v2048 = vpack.c.bf16 %v2038, %v2038
  %v2049 = vpack.c.bf16 %v2045, %v2045
  %v2050 = vld [vmem:[%s3] sm:$0xf]
  %v2051 = vld [vmem:[%s3 + $0x4] sm:$0xf]
  %v2052 = vld [vmem:[%s3 + $0x8] sm:$0xf]
  %v2053 = vld [vmem:[%s3 + $0xc] sm:$0xf]
  %v2054 = vld [vmem:[%s3 + $0x10] sm:$0xf]
  %v2055 = vld [vmem:[%s3 + $0x14] sm:$0xf]
  %v2056 = vld [vmem:[%s3 + $0x18] sm:$0xf]
  %v2057 = vld [vmem:[%s3 + $0x1c] sm:$0xf]
  %v2058 = vld [vmem:[%s3 + $0x20] sm:$0xf]
  %v2059 = vld [vmem:[%s3 + $0x24] sm:$0xf]
  %v2060 = vld [vmem:[%s3 + $0x28] sm:$0xf]
  %v2061 = vld [vmem:[%s3 + $0x2c] sm:$0xf]
  %v2062 = vld [vmem:[%s3 + $0x30] sm:$0xf]
  %v2063 = vld [vmem:[%s3 + $0x34] sm:$0xf]
  %v2064 = vld [vmem:[%s3 + $0x38] sm:$0xf]
  %v2065 = vld [vmem:[%s3 + $0x3c] sm:$0xf]
  %v2066 = vld [vmem:[%s3 + $0x40] sm:$0xf]
  %v2067 = vld [vmem:[%s3 + $0x44] sm:$0xf]
  %v2068 = vld [vmem:[%s3 + $0x48] sm:$0xf]
  %v2069 = vld [vmem:[%s3 + $0x4c] sm:$0xf]
  %v2070 = vld [vmem:[%s3 + $0x50] sm:$0xf]
  %v2071 = vld [vmem:[%s3 + $0x54] sm:$0xf]
  %v2072 = vld [vmem:[%s3 + $0x58] sm:$0xf]
  %v2073 = vld [vmem:[%s3 + $0x5c] sm:$0xf]
  %v2074 = vld [vmem:[%s3 + $0x60] sm:$0xf]
  %v2075 = vld [vmem:[%s3 + $0x64] sm:$0xf]
  %v2076 = vld [vmem:[%s3 + $0x68] sm:$0xf]
  %v2077 = vld [vmem:[%s3 + $0x6c] sm:$0xf]
  %v2078 = vld [vmem:[%s3 + $0x70] sm:$0xf]
  %v2079 = vld [vmem:[%s3 + $0x74] sm:$0xf]
  %v2080 = vld [vmem:[%s3 + $0x78] sm:$0xf]
  %v2081 = vld [vmem:[%s3 + $0x7c] sm:$0xf]
  %v2082 = vld [vmem:[%s4] sm:$0x1]
  %v2084 = vperm.slane %v2082, 0
  %v2090 = vunpack.c.l.b16 %v2046
  %v2091 = vunpack.c.l.b16 %v2047
  %v2092 = vunpack.c.l.b16 %v2048
  %v2093 = vunpack.c.l.b16 %v2049
  %v2094 = vsel %vm287, %v2092, %v2090
  %v2095 = vsel %vm287, %v2093, %v2091
  %v2096 = vpack.c.b16 %v2094, %v2094
  %v2097 = vpack.c.b16 %v2095, %v2095
  %v2132 = vunpack.c.l.b16 %v2050
  %v2133 = vunpack.c.l.b16 %v2051
  %v2134 = vunpack.c.l.b16 %v2052
  %v2135 = vunpack.c.l.b16 %v2053
  %v2136 = vunpack.c.l.b16 %v2054
  %v2137 = vunpack.c.l.b16 %v2055
  %v2138 = vunpack.c.l.b16 %v2056
  %v2139 = vunpack.c.l.b16 %v2057
  %v2140 = vunpack.c.l.b16 %v2058
  %v2141 = vunpack.c.l.b16 %v2059
  %v2142 = vunpack.c.l.b16 %v2060
  %v2143 = vunpack.c.l.b16 %v2061
  %v2144 = vunpack.c.l.b16 %v2062
  %v2145 = vunpack.c.l.b16 %v2063
  %v2146 = vunpack.c.l.b16 %v2064
  %v2147 = vunpack.c.l.b16 %v2065
  %v2148 = vunpack.c.l.b16 %v2066
  %v2149 = vunpack.c.l.b16 %v2067
  %v2150 = vunpack.c.l.b16 %v2068
  %v2151 = vunpack.c.l.b16 %v2069
  %v2152 = vunpack.c.l.b16 %v2070
  %v2153 = vunpack.c.l.b16 %v2071
  %v2154 = vunpack.c.l.b16 %v2072
  %v2155 = vunpack.c.l.b16 %v2073
  %v2156 = vunpack.c.l.b16 %v2074
  %v2157 = vunpack.c.l.b16 %v2075
  %v2158 = vunpack.c.l.b16 %v2076
  %v2159 = vunpack.c.l.b16 %v2077
  %v2160 = vunpack.c.l.b16 %v2078
  %v2161 = vunpack.c.l.b16 %v2079
  %v2162 = vunpack.c.l.b16 %v2080
  %v2163 = vunpack.c.l.b16 %v2081
  %v2164 = vpack.c.b16 %v2133, %v2132
  %v2165 = vpack.c.b16 %v2135, %v2134
  %v2166 = vpack.c.b16 %v2137, %v2136
  %v2167 = vpack.c.b16 %v2139, %v2138
  %v2168 = vpack.c.b16 %v2141, %v2140
  %v2169 = vpack.c.b16 %v2143, %v2142
  %v2170 = vpack.c.b16 %v2145, %v2144
  %v2171 = vpack.c.b16 %v2147, %v2146
  %v2172 = vpack.c.b16 %v2149, %v2148
  %v2173 = vpack.c.b16 %v2151, %v2150
  %v2174 = vpack.c.b16 %v2153, %v2152
  %v2175 = vpack.c.b16 %v2155, %v2154
  %v2176 = vpack.c.b16 %v2157, %v2156
  %v2177 = vpack.c.b16 %v2159, %v2158
  %v2178 = vpack.c.b16 %v2161, %v2160
  %v2179 = vpack.c.b16 %v2163, %v2162
  %2196 = vmatpush.bf16.msra.mxu0 %v2171
  %2197 = vmatpush.bf16.msra.mxu0 %v2170
  %2198 = vmatpush.bf16.msra.mxu0 %v2169
  %2199 = vmatpush.bf16.msra.mxu0 %v2168
  %2200 = vmatpush.bf16.msra.mxu0 %v2167
  %2201 = vmatpush.bf16.msra.mxu0 %v2166
  %2202 = vmatpush.bf16.msra.mxu0 %v2165
  %2203 = vmatpush.bf16.msra.mxu0 %v2164
  %2204 = vmatmul.bf16.gmra.mxu0 %v2096
  %v2205 = vpop.f32.mrf.mxu0
  %v2206 = vadd.f32 %v2084, %v2205
  %v2207 = vpop.f32.mrf.mxu0
  %2208 = vdwg.mxu0
  %2209 = vmatpush.bf16.msra.mxu0 %v2179
  %2210 = vmatpush.bf16.msra.mxu0 %v2178
  %2211 = vmatpush.bf16.msra.mxu0 %v2177
  %2212 = vmatpush.bf16.msra.mxu0 %v2176
  %2213 = vmatpush.bf16.msra.mxu0 %v2175
  %2214 = vmatpush.bf16.msra.mxu0 %v2174
  %2215 = vmatpush.bf16.msra.mxu0 %v2173
  %2216 = vmatpush.bf16.msra.mxu0 %v2172
  %2217 = vmatmul.bf16.gmra.mxu0 %v2097
  %v2218 = vpop.f32.mrf.mxu0
  %v2219 = vadd.f32 %v2206, %v2218
  %v2220 = vpop.f32.mrf.mxu0
  %2221 = vdwg.mxu0
  %2222 = vst [vmem:[%s7] sm:$0x3] %v2219
  %v2223 = vpack.c.bf16 %v2004, %v2004
  %v2224 = vpack.c.bf16 %v2005, %v2005
  %v2225 = vld [vmem:[%s5] sm:$0xf]
  %v2226 = vld [vmem:[%s5 + $0x4] sm:$0xf]
  %v2227 = vld [vmem:[%s5 + $0x8] sm:$0xf]
  %v2228 = vld [vmem:[%s5 + $0xc] sm:$0xf]
  %v2229 = vld [vmem:[%s5 + $0x10] sm:$0xf]
  %v2230 = vld [vmem:[%s5 + $0x14] sm:$0xf]
  %v2231 = vld [vmem:[%s5 + $0x18] sm:$0xf]
  %v2232 = vld [vmem:[%s5 + $0x1c] sm:$0xf]
  %v2233 = vld [vmem:[%s5 + $0x20] sm:$0xf]
  %v2234 = vld [vmem:[%s5 + $0x24] sm:$0xf]
  %v2235 = vld [vmem:[%s5 + $0x28] sm:$0xf]
  %v2236 = vld [vmem:[%s5 + $0x2c] sm:$0xf]
  %v2237 = vld [vmem:[%s5 + $0x30] sm:$0xf]
  %v2238 = vld [vmem:[%s5 + $0x34] sm:$0xf]
  %v2239 = vld [vmem:[%s5 + $0x38] sm:$0xf]
  %v2240 = vld [vmem:[%s5 + $0x3c] sm:$0xf]
  %v2241 = vld [vmem:[%s6] sm:$0x1]
  %v2243 = vperm.slane %v2241, 0
  %v2247 = vunpack.c.l.b16 %v2223
  %v2248 = vunpack.c.l.b16 %v2224
  %v2249 = vrot.slane %v2248, 7
  %v2250 = vsel %vm287, %v2249, %v2247
  %v2251 = vpack.c.b16 %v2250, %v2250
  %v2269 = vunpack.c.l.b16 %v2225
  %v2270 = vunpack.c.l.b16 %v2226
  %v2271 = vunpack.c.l.b16 %v2227
  %v2272 = vunpack.c.l.b16 %v2228
  %v2273 = vunpack.c.l.b16 %v2229
  %v2274 = vunpack.c.l.b16 %v2230
  %v2275 = vunpack.c.l.b16 %v2231
  %v2276 = vunpack.c.l.b16 %v2232
  %v2277 = vunpack.c.l.b16 %v2233
  %v2278 = vunpack.c.l.b16 %v2234
  %v2279 = vunpack.c.l.b16 %v2235
  %v2280 = vunpack.c.l.b16 %v2236
  %v2281 = vunpack.c.l.b16 %v2237
  %v2282 = vunpack.c.l.b16 %v2238
  %v2283 = vunpack.c.l.b16 %v2239
  %v2284 = vunpack.c.l.b16 %v2240
  %v2285 = vpack.c.b16 %v2270, %v2269
  %v2286 = vpack.c.b16 %v2272, %v2271
  %v2287 = vpack.c.b16 %v2274, %v2273
  %v2288 = vpack.c.b16 %v2276, %v2275
  %v2289 = vpack.c.b16 %v2278, %v2277
  %v2290 = vpack.c.b16 %v2280, %v2279
  %v2291 = vpack.c.b16 %v2282, %v2281
  %v2292 = vpack.c.b16 %v2284, %v2283
  %2301 = vmatpush.bf16.msra.mxu0 %v2292
  %2302 = vmatpush.bf16.msra.mxu0 %v2291
  %2303 = vmatpush.bf16.msra.mxu0 %v2290
  %2304 = vmatpush.bf16.msra.mxu0 %v2289
  %2305 = vmatpush.bf16.msra.mxu0 %v2288
  %2306 = vmatpush.bf16.msra.mxu0 %v2287
  %2307 = vmatpush.bf16.msra.mxu0 %v2286
  %2308 = vmatpush.bf16.msra.mxu0 %v2285
  %2309 = vmatmul.bf16.gmra.mxu0 %v2251
  %v2310 = vpop.f32.mrf.mxu0
  %v2311 = vadd.f32 %v2243, %v2310
  %v2312 = vpop.f32.mrf.mxu0
  %2313 = vdwg.mxu0
  %s2314 = scalar_lea.vmem %s7, 2
  %2315 = vst [vmem:[%s2314] sm:$0x3] %v2311
  // Predicated region
  $region30: #{swincvs_forward.3} parent=0 // pred_check
    _
  $region31: #{swincvs_forward.3} parent=0 // pred_check_branch
    %2317 = sbr.rel (0) target = $region33
  $region32: #{swincvs_forward.3} parent=0 // pred_region
    _
  $region33: #{swincvs_forward.3} parent=0 // pred_fallthru
    _
  // Predicated region
  $region34: #{swincvs_forward.3} parent=0 // pred_check
    _
  $region35: #{swincvs_forward.3} parent=0 // pred_check_branch
    %2319 = sbr.rel (0) target = $region37
  $region36: #{swincvs_forward.3} parent=0 // pred_region
    _
  $region37: #{swincvs_forward.3} parent=0 // pred_fallthru
    _

</llo_original>
